<compile_context>
chip_gen: v6e
topology: v6e:2x2x1
jax: 0.10.0
libtpu: 0.0.40
codegen_flags: <defaults>
</compile_context>

<pallas_src>
import functools
import math

import jax
import jax.numpy as jnp
from jax.experimental import pallas as pl
from jax.experimental.pallas import tpu as pltpu


CFG = dict(vocab=1000, max_pos=32, type_vocab=2,
           hidden=128, heads=4, layers=2, intermediate=512,
           proj=256, n_law=118, n_accu=130, n_time=12)
LN_EPS = 1e-12


# ----------------------------- in-kernel helpers ---------------------------

def _gelu(x):
    # tanh-approx GELU (close to BERT's erf-GELU)
    return 0.5 * x * (1.0 + jnp.tanh(0.7978845608028654 * (x + 0.044715 * x * x * x)))


def _layernorm(x, g, b, eps):
    mu = jnp.mean(x, axis=-1, keepdims=True)
    var = jnp.mean(jnp.square(x - mu), axis=-1, keepdims=True)
    return (x - mu) * jax.lax.rsqrt(var + eps) * g + b


# ------------------ single-launch encoder (all layers fused) ----------------

def _encoder_kernel(emb_ref, mask_ref, embg_ref, embb_ref,
                    wqkv_ref, bqkv_ref, wo_ref, bo_ref, ln1g_ref, ln1b_ref,
                    wi_ref, bi_ref, wo2_ref, bo2_ref, ln2g_ref, ln2b_ref,
                    o_ref, hstate, *, num_heads, eps):
    layer = pl.program_id(1)

    # Prologue at the first layer: embedding LayerNorm seeds the residual stream
    # (kept resident in VMEM scratch across the layer axis of the grid).
    @pl.when(layer == 0)
    def _():
        e = emb_ref[...].astype(jnp.float32)
        hstate[...] = _layernorm(e, embg_ref[...], embb_ref[...], eps)

    S, H = hstate.shape
    hd = H // num_heads
    scale = 1.0 / math.sqrt(hd)

    x = hstate[...]                               # (S, H) residual stream (f32)
    mask = mask_ref[...].astype(jnp.float32)      # (1, S) additive key mask (hoisted)

    # fused QKV projection: one (S,H)x(H,3H) bf16 matmul, f32 accumulation
    qkv = jnp.dot(x.astype(jnp.bfloat16), wqkv_ref[...],
                  preferred_element_type=jnp.float32) + bqkv_ref[...]

    # multi-head attention + output projection, all VMEM-resident.
    # head merge is folded into per-head slices of the output-projection weight,
    # so no transpose / concat of activations is ever needed.
    attn = bo_ref[...].astype(jnp.float32)        # (1, H): bias seeds the accumulator
    for i in range(num_heads):
        q_i = qkv[:, i * hd:(i + 1) * hd].astype(jnp.bfloat16)
        k_i = qkv[:, H + i * hd:H + (i + 1) * hd].astype(jnp.bfloat16)
        v_i = qkv[:, 2 * H + i * hd:2 * H + (i + 1) * hd].astype(jnp.bfloat16)
        s = jax.lax.dot_general(q_i, k_i, (((1,), (1,)), ((), ())),
                                preferred_element_type=jnp.float32) * scale
        s = s + mask
        s = s - jnp.max(s, axis=-1, keepdims=True)
        p = jnp.exp(s)
        p = p * pl.reciprocal(jnp.sum(p, axis=-1, keepdims=True), approx=True)
        ctx = jnp.dot(p.astype(jnp.bfloat16), v_i, preferred_element_type=jnp.float32)
        attn = attn + jnp.dot(ctx.astype(jnp.bfloat16),
                              wo_ref[i * hd:(i + 1) * hd, :],
                              preferred_element_type=jnp.float32)

    # residual + LayerNorm fused as epilogue
    h1 = _layernorm(attn + x, ln1g_ref[...], ln1b_ref[...], eps)

    # feed-forward (GELU) fused with second residual + LayerNorm
    ff = _gelu(jnp.dot(h1.astype(jnp.bfloat16), wi_ref[...],
                       preferred_element_type=jnp.float32) + bi_ref[...])
    ff2 = jnp.dot(ff.astype(jnp.bfloat16), wo2_ref[...],
                  preferred_element_type=jnp.float32) + bo2_ref[...]
    h2 = _layernorm(ff2 + h1, ln2g_ref[...], ln2b_ref[...], eps)

    hstate[...] = h2
    # Output block index depends only on the batch axis -> stays VMEM-resident
    # across the layer axis; the last layer's value is what gets written to HBM.
    o_ref[...] = h2.astype(o_ref.dtype)


def bert_encoder(emb, mask_add, params, *, num_heads, seq_len, num_layers):
    M, H = emb.shape
    B = M // seq_len

    def layer_spec(name):
        shp = params[name].shape                       # (L, a, b)
        return pl.BlockSpec((None,) + shp[1:], lambda b, l: (l, 0, 0))

    kernel = functools.partial(_encoder_kernel, num_heads=num_heads, eps=LN_EPS)
    return pl.pallas_call(
        kernel,
        out_shape=jax.ShapeDtypeStruct((M, H), jnp.float32),
        grid=(B, num_layers),
        in_specs=[
            pl.BlockSpec((seq_len, H), lambda b, l: (b, 0)),           # embedding sum
            pl.BlockSpec((None, 1, seq_len), lambda b, l: (b, 0, 0)),  # additive mask
            pl.BlockSpec((1, H), lambda b, l: (0, 0)),                 # emb LN gamma
            pl.BlockSpec((1, H), lambda b, l: (0, 0)),                 # emb LN beta
            layer_spec("wqkv"), layer_spec("bqkv"),
            layer_spec("wo"), layer_spec("bo"),
            layer_spec("ln1_g"), layer_spec("ln1_b"),
            layer_spec("wi"), layer_spec("bi"),
            layer_spec("wo2"), layer_spec("bo2"),
            layer_spec("ln2_g"), layer_spec("ln2_b"),
        ],
        out_specs=pl.BlockSpec((seq_len, H), lambda b, l: (b, 0)),
        scratch_shapes=[pltpu.VMEM((seq_len, H), jnp.float32)],
        compiler_params=pltpu.CompilerParams(
            dimension_semantics=("parallel", "arbitrary")),
    )(emb, mask_add, params["emb_ln_g"], params["emb_ln_b"],
      params["wqkv"], params["bqkv"], params["wo"], params["bo"],
      params["ln1_g"], params["ln1_b"], params["wi"], params["bi"],
      params["wo2"], params["bo2"], params["ln2_g"], params["ln2_b"])


# ------------- fused head: linearF -> ReLU -> classifier (padded) ----------

def _head_kernel(cls_ref, wF_ref, bF_ref, wc_ref, bc_ref, o_ref):
    x = cls_ref[...].astype(jnp.bfloat16)
    hF = jnp.dot(x, wF_ref[...], preferred_element_type=jnp.float32) + bF_ref[...]
    hF = jnp.maximum(hF, 0.0)                       # Sequential(ReLU, Linear)
    logits = jnp.dot(hF.astype(jnp.bfloat16), wc_ref[...],
                     preferred_element_type=jnp.float32) + bc_ref[...]
    o_ref[...] = logits.astype(o_ref.dtype)


def classifier_head(cls, wF, bF, wc_pad, bc_pad):
    B, H = cls.shape
    P = wF.shape[1]
    Np = wc_pad.shape[1]   # padded to a multiple of 128 -> lane-dense store
    return pl.pallas_call(
        _head_kernel,
        out_shape=jax.ShapeDtypeStruct((B, Np), jnp.float32),
        grid=(1,),
        in_specs=[pl.BlockSpec((B, H), lambda i: (0, 0)),
                  pl.BlockSpec((H, P), lambda i: (0, 0)),
                  pl.BlockSpec((1, P), lambda i: (0, 0)),
                  pl.BlockSpec((P, Np), lambda i: (0, 0)),
                  pl.BlockSpec((1, Np), lambda i: (0, 0))],
        out_specs=pl.BlockSpec((B, Np), lambda i: (0, 0)),
        compiler_params=pltpu.CompilerParams(dimension_semantics=("arbitrary",)),
    )(cls, wF, bF, wc_pad, bc_pad)


# ---------------------------- model definition -----------------------------

def init_params(key, cfg):
    H, I, P, L = cfg["hidden"], cfg["intermediate"], cfg["proj"], cfg["layers"]
    n_cls = cfg["n_law"] + cfg["n_accu"] + cfg["n_time"]
    n_pad = ((n_cls + 127) // 128) * 128

    def nrm(k, shape, std=0.02):
        return (std * jax.random.normal(k, shape)).astype(jnp.float32)

    keys = iter(jax.random.split(key, 64))
    params = {
        "word_emb": nrm(next(keys), (cfg["vocab"], H)),
        "pos_emb": nrm(next(keys), (cfg["max_pos"], H)),
        "type_emb": nrm(next(keys), (cfg["type_vocab"], H)),
        "emb_ln_g": jnp.ones((1, H), jnp.float32),
        "emb_ln_b": jnp.zeros((1, H), jnp.float32),
        # head weights (bf16 matmul operands, f32 biases); classifier padded 260->n_pad
        "wF": nrm(next(keys), (H, P)).astype(jnp.bfloat16),
        "bF": jnp.zeros((1, P), jnp.float32),
        "wc_pad": jnp.pad(nrm(next(keys), (P, n_cls)),
                          ((0, 0), (0, n_pad - n_cls))).astype(jnp.bfloat16),
        "bc_pad": jnp.zeros((1, n_pad), jnp.float32),
        # stacked per-layer encoder weights (leading layer axis)
        "wqkv": nrm(next(keys), (L, H, 3 * H)).astype(jnp.bfloat16),
        "bqkv": jnp.zeros((L, 1, 3 * H), jnp.float32),
        "wo": nrm(next(keys), (L, H, H)).astype(jnp.bfloat16),
        "bo": jnp.zeros((L, 1, H), jnp.float32),
        "ln1_g": jnp.ones((L, 1, H), jnp.float32),
        "ln1_b": jnp.zeros((L, 1, H), jnp.float32),
        "wi": nrm(next(keys), (L, H, I)).astype(jnp.bfloat16),
        "bi": jnp.zeros((L, 1, I), jnp.float32),
        "wo2": nrm(next(keys), (L, I, H)).astype(jnp.bfloat16),
        "bo2": jnp.zeros((L, 1, H), jnp.float32),
        "ln2_g": jnp.ones((L, 1, H), jnp.float32),
        "ln2_b": jnp.zeros((L, 1, H), jnp.float32),
    }
    return params


def legal_model_forward(params, input_ids, attention_mask, cfg=CFG):
    B, S = input_ids.shape
    H, nh, L = cfg["hidden"], cfg["heads"], cfg["layers"]

    # Embeddings (gather + broadcast add are XLA glue); LayerNorm is fused into
    # the encoder kernel's first-layer prologue.
    word = jnp.take(params["word_emb"], input_ids, axis=0)                    # (B,S,H)
    pos_type = params["pos_emb"][:S] + params["type_emb"][0]                  # (S,H)
    emb = (word + pos_type[None]).reshape(B * S, H)

    # Additive attention mask computed ONCE (hoisted out of the kernel).
    mask_add = ((1.0 - attention_mask.astype(jnp.float32)) * -1e9).reshape(B, 1, S)

    # Whole encoder in one fused pallas_call (grid = batch x layers).
    h = bert_encoder(emb, mask_add, params, num_heads=nh, seq_len=S, num_layers=L)

    # CLS token -> fused (linearF -> ReLU -> classifier) kernel -> split logits.
    cls = h.reshape(B, S, H)[:, 0, :]                                         # (B, H)
    logits = classifier_head(cls, params["wF"], params["bF"],
                             params["wc_pad"], params["bc_pad"])
    n_cls = cfg["n_law"] + cfg["n_accu"] + cfg["n_time"]
    logits = logits[:, :n_cls]                                                # drop pad

    law_logits = logits[:, :cfg["n_law"]]
    accu_logits = logits[:, cfg["n_law"]:cfg["n_law"] + cfg["n_accu"]]
    time_logits = logits[:, cfg["n_law"] + cfg["n_accu"]:]
    return law_logits, accu_logits, time_logits


if __name__ == "__main__":
    key = jax.random.PRNGKey(0)
    pkey, ikey = jax.random.split(key)

    B, S = 2, 16
    params = init_params(pkey, CFG)
    input_ids = jax.random.randint(ikey, (B, S), 0, CFG["vocab"], dtype=jnp.int32)
    attention_mask = jnp.ones((B, S), jnp.int32).at[1, 12:].set(0)

    law, accu, time_ = jax.jit(legal_model_forward)(params, input_ids, attention_mask)
    jax.block_until_ready((law, accu, time_))
    assert law.shape == (B, CFG["n_law"])
    assert accu.shape == (B, CFG["n_accu"])
    assert time_.shape == (B, CFG["n_time"])
    print("KERNEL_OK")
</pallas_src>

<mosaic_0001>
module attributes {stable_mosaic.version = 11 : i64} {
  func.func @_head_kernel(%arg0: i32, %arg1: memref<2x128xf32, #tpu.memory_space<vmem>>, %arg2: memref<128x256xbf16, #tpu.memory_space<vmem>>, %arg3: memref<1x256xf32, #tpu.memory_space<vmem>>, %arg4: memref<256x384xbf16, #tpu.memory_space<vmem>>, %arg5: memref<1x384xf32, #tpu.memory_space<vmem>>, %arg6: memref<2x384xf32, #tpu.memory_space<vmem>>) attributes {dimension_semantics = [#tpu.dimension_semantics<arbitrary>], iteration_bounds = array<i64: 1>, scalar_prefetch = 0 : i64, scratch_operands = 0 : i64, tpu.core_type = #tpu.core_type<tc>, window_params = [{pipeline_mode = #tpu.pipeline_mode<synchronous>, transform_indices = @transform_0, window_bounds = array<i64: 2, 128>}, {pipeline_mode = #tpu.pipeline_mode<synchronous>, transform_indices = @transform_1, window_bounds = array<i64: 128, 256>}, {pipeline_mode = #tpu.pipeline_mode<synchronous>, transform_indices = @transform_2, window_bounds = array<i64: 1, 256>}, {pipeline_mode = #tpu.pipeline_mode<synchronous>, transform_indices = @transform_3, window_bounds = array<i64: 256, 384>}, {pipeline_mode = #tpu.pipeline_mode<synchronous>, transform_indices = @transform_4, window_bounds = array<i64: 1, 384>}, {pipeline_mode = #tpu.pipeline_mode<synchronous>, transform_indices = @transform_5, window_bounds = array<i64: 2, 384>}]} {
    %c0 = arith.constant 0 : index
    %c0_0 = arith.constant 0 : index
    %0 = vector.load %arg1[%c0, %c0_0] : memref<2x128xf32, #tpu.memory_space<vmem>>, vector<2x128xf32>
    %1 = arith.truncf %0 : vector<2x128xf32> to vector<2x128xbf16>
    %c0_1 = arith.constant 0 : index
    %c0_2 = arith.constant 0 : index
    %2 = vector.load %arg2[%c0_1, %c0_2] : memref<128x256xbf16, #tpu.memory_space<vmem>>, vector<128x256xbf16>
    %cst = arith.constant dense<0.000000e+00> : vector<2x256xf32>
    %3 = tpu.matmul %1, %2, %cst {dimension_numbers = #tpu.dot_dimension_numbers<[1], [0], [0], [1], [0, 0, 1, 1], [], []>} : vector<2x128xbf16>, vector<128x256xbf16>, vector<2x256xf32> -> vector<2x256xf32>
    %c0_3 = arith.constant 0 : index
    %c0_4 = arith.constant 0 : index
    %4 = vector.load %arg3[%c0_3, %c0_4] : memref<1x256xf32, #tpu.memory_space<vmem>>, vector<1x256xf32>
    %5 = vector.broadcast %4 : vector<1x256xf32> to vector<2x256xf32>
    %6 = arith.addf %3, %5 : vector<2x256xf32>
    %cst_5 = arith.constant 0.000000e+00 : f32
    %7 = vector.broadcast %cst_5 : f32 to vector<2x256xf32>
    %8 = arith.maximumf %6, %7 : vector<2x256xf32>
    %9 = arith.truncf %8 : vector<2x256xf32> to vector<2x256xbf16>
    %c0_6 = arith.constant 0 : index
    %c0_7 = arith.constant 0 : index
    %10 = vector.load %arg4[%c0_6, %c0_7] : memref<256x384xbf16, #tpu.memory_space<vmem>>, vector<256x384xbf16>
    %cst_8 = arith.constant dense<0.000000e+00> : vector<2x384xf32>
    %11 = tpu.matmul %9, %10, %cst_8 {dimension_numbers = #tpu.dot_dimension_numbers<[1], [0], [0], [1], [0, 0, 1, 1], [], []>} : vector<2x256xbf16>, vector<256x384xbf16>, vector<2x384xf32> -> vector<2x384xf32>
    %c0_9 = arith.constant 0 : index
    %c0_10 = arith.constant 0 : index
    %12 = vector.load %arg5[%c0_9, %c0_10] : memref<1x384xf32, #tpu.memory_space<vmem>>, vector<1x384xf32>
    %13 = vector.broadcast %12 : vector<1x384xf32> to vector<2x384xf32>
    %14 = arith.addf %11, %13 : vector<2x384xf32>
    %c0_11 = arith.constant 0 : index
    %c0_12 = arith.constant 0 : index
    %15 = vector.load %arg6[%c0_11, %c0_12] : memref<2x384xf32, #tpu.memory_space<vmem>>, vector<2x384xf32>
    tpu.vector_store %arg6[%c0_11, %c0_12], %14 {strides = array<i32>} : memref<2x384xf32, #tpu.memory_space<vmem>>, vector<2x384xf32>,
    return
  }
  func.func @transform_0(%arg0: i32) -> (i32, i32) {
    %c0_i32 = arith.constant 0 : i32
    %c0_i32_0 = arith.constant 0 : i32
    %c0_i32_1 = arith.constant 0 : i32
    return %c0_i32, %c0_i32_0 : i32, i32
  }
  func.func @transform_1(%arg0: i32) -> (i32, i32) {
    %c0_i32 = arith.constant 0 : i32
    %c0_i32_0 = arith.constant 0 : i32
    %c0_i32_1 = arith.constant 0 : i32
    return %c0_i32, %c0_i32_0 : i32, i32
  }
  func.func @transform_2(%arg0: i32) -> (i32, i32) {
    %c0_i32 = arith.constant 0 : i32
    %c0_i32_0 = arith.constant 0 : i32
    %c0_i32_1 = arith.constant 0 : i32
    return %c0_i32, %c0_i32_0 : i32, i32
  }
  func.func @transform_3(%arg0: i32) -> (i32, i32) {
    %c0_i32 = arith.constant 0 : i32
    %c0_i32_0 = arith.constant 0 : i32
    %c0_i32_1 = arith.constant 0 : i32
    return %c0_i32, %c0_i32_0 : i32, i32
  }
  func.func @transform_4(%arg0: i32) -> (i32, i32) {
    %c0_i32 = arith.constant 0 : i32
    %c0_i32_0 = arith.constant 0 : i32
    %c0_i32_1 = arith.constant 0 : i32
    return %c0_i32, %c0_i32_0 : i32, i32
  }
  func.func @transform_5(%arg0: i32) -> (i32, i32) {
    %c0_i32 = arith.constant 0 : i32
    %c0_i32_0 = arith.constant 0 : i32
    %c0_i32_1 = arith.constant 0 : i32
    return %c0_i32, %c0_i32_0 : i32, i32
  }
}

module attributes {stable_mosaic.version = 11 : i64} {
  func.func @_encoder_kernel(%arg0: i32, %arg1: i32, %arg2: memref<16x128xf32, #tpu.memory_space<vmem>>, %arg3: memref<1x1x16xf32, #tpu.memory_space<vmem>>, %arg4: memref<1x128xf32, #tpu.memory_space<vmem>>, %arg5: memref<1x128xf32, #tpu.memory_space<vmem>>, %arg6: memref<1x128x384xbf16, #tpu.memory_space<vmem>>, %arg7: memref<1x1x384xf32, #tpu.memory_space<vmem>>, %arg8: memref<1x128x128xbf16, #tpu.memory_space<vmem>>, %arg9: memref<1x1x128xf32, #tpu.memory_space<vmem>>, %arg10: memref<1x1x128xf32, #tpu.memory_space<vmem>>, %arg11: memref<1x1x128xf32, #tpu.memory_space<vmem>>, %arg12: memref<1x128x512xbf16, #tpu.memory_space<vmem>>, %arg13: memref<1x1x512xf32, #tpu.memory_space<vmem>>, %arg14: memref<1x512x128xbf16, #tpu.memory_space<vmem>>, %arg15: memref<1x1x128xf32, #tpu.memory_space<vmem>>, %arg16: memref<1x1x128xf32, #tpu.memory_space<vmem>>, %arg17: memref<1x1x128xf32, #tpu.memory_space<vmem>>, %arg18: memref<16x128xf32, #tpu.memory_space<vmem>>, %arg19: memref<16x128xf32, #tpu.memory_space<vmem>>) attributes {dimension_semantics = [#tpu.dimension_semantics<parallel>, #tpu.dimension_semantics<arbitrary>], iteration_bounds = array<i64: 2, 2>, scalar_prefetch = 0 : i64, scratch_operands = 1 : i64, tpu.core_type = #tpu.core_type<tc>, window_params = [{transform_indices = @transform_0, window_bounds = array<i64: 16, 128>}, {transform_indices = @transform_1, window_bounds = array<i64: 1, 1, 16>}, {pipeline_mode = #tpu.pipeline_mode<synchronous>, transform_indices = @transform_2, window_bounds = array<i64: 1, 128>}, {pipeline_mode = #tpu.pipeline_mode<synchronous>, transform_indices = @transform_3, window_bounds = array<i64: 1, 128>}, {transform_indices = @transform_4, window_bounds = array<i64: 1, 128, 384>}, {transform_indices = @transform_5, window_bounds = array<i64: 1, 1, 384>}, {transform_indices = @transform_6, window_bounds = array<i64: 1, 128, 128>}, {transform_indices = @transform_7, window_bounds = array<i64: 1, 1, 128>}, {transform_indices = @transform_8, window_bounds = array<i64: 1, 1, 128>}, {transform_indices = @transform_9, window_bounds = array<i64: 1, 1, 128>}, {transform_indices = @transform_10, window_bounds = array<i64: 1, 128, 512>}, {transform_indices = @transform_11, window_bounds = array<i64: 1, 1, 512>}, {transform_indices = @transform_12, window_bounds = array<i64: 1, 512, 128>}, {transform_indices = @transform_13, window_bounds = array<i64: 1, 1, 128>}, {transform_indices = @transform_14, window_bounds = array<i64: 1, 1, 128>}, {transform_indices = @transform_15, window_bounds = array<i64: 1, 1, 128>}, {transform_indices = @transform_16, window_bounds = array<i64: 16, 128>}]} {
    %c0_i32 = arith.constant 0 : i32
    %0 = arith.cmpi eq, %arg1, %c0_i32 : i32
    %1 = arith.extui %0 : i1 to i32
    %c0_i32_0 = arith.constant 0 : i32
    %2 = arith.cmpi ne, %1, %c0_i32_0 : i32
    scf.if %2 {
      %c0_91 = arith.constant 0 : index
      %c0_92 = arith.constant 0 : index
      %214 = vector.load %arg2[%c0_91, %c0_92] : memref<16x128xf32, #tpu.memory_space<vmem>>, vector<16x128xf32>
      %c0_93 = arith.constant 0 : index
      %c0_94 = arith.constant 0 : index
      %215 = vector.load %arg4[%c0_93, %c0_94] : memref<1x128xf32, #tpu.memory_space<vmem>>, vector<1x128xf32>
      %c0_95 = arith.constant 0 : index
      %c0_96 = arith.constant 0 : index
      %216 = vector.load %arg5[%c0_95, %c0_96] : memref<1x128xf32, #tpu.memory_space<vmem>>, vector<1x128xf32>
      %cst_97 = arith.constant dense<0.000000e+00> : vector<16xf32>
      %217 = vector.multi_reduction <add>, %214, %cst_97 [1] : vector<16x128xf32> to vector<16xf32>
      %218 = vector.shape_cast %217 : vector<16xf32> to vector<16x1xf32>
      %cst_98 = arith.constant 1.280000e+02 : f32
      %219 = vector.broadcast %cst_98 : f32 to vector<16x1xf32>
      %220 = arith.divf %218, %219 : vector<16x1xf32>
      %221 = vector.broadcast %220 : vector<16x1xf32> to vector<16x128xf32>
      %222 = arith.subf %214, %221 : vector<16x128xf32>
      %223 = arith.mulf %222, %222 : vector<16x128xf32>
      %cst_99 = arith.constant dense<0.000000e+00> : vector<16xf32>
      %224 = vector.multi_reduction <add>, %223, %cst_99 [1] : vector<16x128xf32> to vector<16xf32>
      %225 = vector.shape_cast %224 : vector<16xf32> to vector<16x1xf32>
      %cst_100 = arith.constant 1.280000e+02 : f32
      %226 = vector.broadcast %cst_100 : f32 to vector<16x1xf32>
      %227 = arith.divf %225, %226 : vector<16x1xf32>
      %228 = vector.broadcast %220 : vector<16x1xf32> to vector<16x128xf32>
      %229 = arith.subf %214, %228 : vector<16x128xf32>
      %cst_101 = arith.constant 9.99999996E-13 : f32
      %230 = vector.broadcast %cst_101 : f32 to vector<16x1xf32>
      %231 = arith.addf %227, %230 : vector<16x1xf32>
      %232 = math.rsqrt %231 : vector<16x1xf32>
      %233 = vector.broadcast %232 : vector<16x1xf32> to vector<16x128xf32>
      %234 = arith.mulf %229, %233 : vector<16x128xf32>
      %235 = vector.broadcast %215 : vector<1x128xf32> to vector<16x128xf32>
      %236 = arith.mulf %234, %235 : vector<16x128xf32>
      %237 = vector.broadcast %216 : vector<1x128xf32> to vector<16x128xf32>
      %238 = arith.addf %236, %237 : vector<16x128xf32>
      %c0_102 = arith.constant 0 : index
      %c0_103 = arith.constant 0 : index
      %239 = vector.load %arg19[%c0_102, %c0_103] : memref<16x128xf32, #tpu.memory_space<vmem>>, vector<16x128xf32>
      tpu.vector_store %arg19[%c0_102, %c0_103], %238 {strides = array<i32>} : memref<16x128xf32, #tpu.memory_space<vmem>>, vector<16x128xf32>,
    } else {
    }
    %c0 = arith.constant 0 : index
    %c0_1 = arith.constant 0 : index
    %3 = vector.load %arg19[%c0, %c0_1] : memref<16x128xf32, #tpu.memory_space<vmem>>, vector<16x128xf32>
    %c0_2 = arith.constant 0 : index
    %c0_3 = arith.constant 0 : index
    %c0_4 = arith.constant 0 : index
    %4 = vector.load %arg3[%c0_2, %c0_3, %c0_4] : memref<1x1x16xf32, #tpu.memory_space<vmem>>, vector<1x1x16xf32>
    %5 = vector.shape_cast %4 : vector<1x1x16xf32> to vector<1x16xf32>
    %6 = arith.truncf %3 : vector<16x128xf32> to vector<16x128xbf16>
    %c0_5 = arith.constant 0 : index
    %c0_6 = arith.constant 0 : index
    %c0_7 = arith.constant 0 : index
    %7 = vector.load %arg6[%c0_5, %c0_6, %c0_7] : memref<1x128x384xbf16, #tpu.memory_space<vmem>>, vector<1x128x384xbf16>
    %8 = vector.shape_cast %7 : vector<1x128x384xbf16> to vector<128x384xbf16>
    %cst = arith.constant dense<0.000000e+00> : vector<16x384xf32>
    %9 = tpu.matmul %6, %8, %cst {dimension_numbers = #tpu.dot_dimension_numbers<[1], [0], [0], [1], [0, 0, 1, 1], [], []>} : vector<16x128xbf16>, vector<128x384xbf16>, vector<16x384xf32> -> vector<16x384xf32>
    %c0_8 = arith.constant 0 : index
    %c0_9 = arith.constant 0 : index
    %c0_10 = arith.constant 0 : index
    %10 = vector.load %arg7[%c0_8, %c0_9, %c0_10] : memref<1x1x384xf32, #tpu.memory_space<vmem>>, vector<1x1x384xf32>
    %11 = vector.shape_cast %10 : vector<1x1x384xf32> to vector<1x384xf32>
    %12 = vector.broadcast %11 : vector<1x384xf32> to vector<16x384xf32>
    %13 = arith.addf %9, %12 : vector<16x384xf32>
    %c0_11 = arith.constant 0 : index
    %c0_12 = arith.constant 0 : index
    %c0_13 = arith.constant 0 : index
    %14 = vector.load %arg9[%c0_11, %c0_12, %c0_13] : memref<1x1x128xf32, #tpu.memory_space<vmem>>, vector<1x1x128xf32>
    %15 = vector.shape_cast %14 : vector<1x1x128xf32> to vector<1x128xf32>
    %16 = vector.extract_strided_slice %13 {offsets = [0, 0], sizes = [16, 32], strides = [1, 1]} : vector<16x384xf32> to vector<16x32xf32>
    %17 = arith.truncf %16 : vector<16x32xf32> to vector<16x32xbf16>
    %18 = vector.extract_strided_slice %13 {offsets = [0, 128], sizes = [16, 32], strides = [1, 1]} : vector<16x384xf32> to vector<16x32xf32>
    %19 = arith.truncf %18 : vector<16x32xf32> to vector<16x32xbf16>
    %20 = vector.extract_strided_slice %13 {offsets = [0, 256], sizes = [16, 32], strides = [1, 1]} : vector<16x384xf32> to vector<16x32xf32>
    %21 = arith.truncf %20 : vector<16x32xf32> to vector<16x32xbf16>
    %cst_14 = arith.constant dense<0.000000e+00> : vector<16x16xf32>
    %22 = tpu.matmul %17, %19, %cst_14 {dimension_numbers = #tpu.dot_dimension_numbers<[1], [1], [0], [0], [0, 0, 1, 0], [], []>} : vector<16x32xbf16>, vector<16x32xbf16>, vector<16x16xf32> -> vector<16x16xf32>
    %cst_15 = arith.constant 0.176776692 : f32
    %23 = vector.broadcast %cst_15 : f32 to vector<16x16xf32>
    %24 = arith.mulf %22, %23 : vector<16x16xf32>
    %25 = vector.broadcast %5 : vector<1x16xf32> to vector<16x16xf32>
    %26 = arith.addf %24, %25 : vector<16x16xf32>
    %cst_16 = arith.constant dense<0xFF800000> : vector<16xf32>
    %27 = vector.multi_reduction <maximumf>, %26, %cst_16 [1] : vector<16x16xf32> to vector<16xf32>
    %28 = vector.shape_cast %27 : vector<16xf32> to vector<16x1xf32>
    %29 = vector.broadcast %28 : vector<16x1xf32> to vector<16x16xf32>
    %30 = arith.subf %26, %29 : vector<16x16xf32>
    %31 = math.exp %30 : vector<16x16xf32>
    %cst_17 = arith.constant dense<0.000000e+00> : vector<16xf32>
    %32 = vector.multi_reduction <add>, %31, %cst_17 [1] : vector<16x16xf32> to vector<16xf32>
    %33 = vector.shape_cast %32 : vector<16xf32> to vector<16x1xf32>
    %34 = tpu.reciprocal %33 {approx = true} : vector<16x1xf32> -> vector<16x1xf32>
    %35 = vector.broadcast %34 : vector<16x1xf32> to vector<16x16xf32>
    %36 = arith.mulf %31, %35 : vector<16x16xf32>
    %37 = arith.truncf %36 : vector<16x16xf32> to vector<16x16xbf16>
    %cst_18 = arith.constant dense<0.000000e+00> : vector<16x32xf32>
    %38 = tpu.matmul %37, %21, %cst_18 {dimension_numbers = #tpu.dot_dimension_numbers<[1], [0], [0], [1], [0, 0, 1, 1], [], []>} : vector<16x16xbf16>, vector<16x32xbf16>, vector<16x32xf32> -> vector<16x32xf32>
    %39 = arith.truncf %38 : vector<16x32xf32> to vector<16x32xbf16>
    %c0_19 = arith.constant 0 : index
    %c0_20 = arith.constant 0 : index
    %c0_21 = arith.constant 0 : index
    %40 = vector.load %arg8[%c0_19, %c0_20, %c0_21] : memref<1x128x128xbf16, #tpu.memory_space<vmem>>, vector<1x32x128xbf16>
    %41 = vector.shape_cast %40 : vector<1x32x128xbf16> to vector<32x128xbf16>
    %cst_22 = arith.constant dense<0.000000e+00> : vector<16x128xf32>
    %42 = tpu.matmul %39, %41, %cst_22 {dimension_numbers = #tpu.dot_dimension_numbers<[1], [0], [0], [1], [0, 0, 1, 1], [], []>} : vector<16x32xbf16>, vector<32x128xbf16>, vector<16x128xf32> -> vector<16x128xf32>
    %43 = vector.broadcast %15 : vector<1x128xf32> to vector<16x128xf32>
    %44 = arith.addf %43, %42 : vector<16x128xf32>
    %45 = vector.extract_strided_slice %13 {offsets = [0, 32], sizes = [16, 32], strides = [1, 1]} : vector<16x384xf32> to vector<16x32xf32>
    %46 = arith.truncf %45 : vector<16x32xf32> to vector<16x32xbf16>
    %47 = vector.extract_strided_slice %13 {offsets = [0, 160], sizes = [16, 32], strides = [1, 1]} : vector<16x384xf32> to vector<16x32xf32>
    %48 = arith.truncf %47 : vector<16x32xf32> to vector<16x32xbf16>
    %49 = vector.extract_strided_slice %13 {offsets = [0, 288], sizes = [16, 32], strides = [1, 1]} : vector<16x384xf32> to vector<16x32xf32>
    %50 = arith.truncf %49 : vector<16x32xf32> to vector<16x32xbf16>
    %cst_23 = arith.constant dense<0.000000e+00> : vector<16x16xf32>
    %51 = tpu.matmul %46, %48, %cst_23 {dimension_numbers = #tpu.dot_dimension_numbers<[1], [1], [0], [0], [0, 0, 1, 0], [], []>} : vector<16x32xbf16>, vector<16x32xbf16>, vector<16x16xf32> -> vector<16x16xf32>
    %cst_24 = arith.constant 0.176776692 : f32
    %52 = vector.broadcast %cst_24 : f32 to vector<16x16xf32>
    %53 = arith.mulf %51, %52 : vector<16x16xf32>
    %54 = vector.broadcast %5 : vector<1x16xf32> to vector<16x16xf32>
    %55 = arith.addf %53, %54 : vector<16x16xf32>
    %cst_25 = arith.constant dense<0xFF800000> : vector<16xf32>
    %56 = vector.multi_reduction <maximumf>, %55, %cst_25 [1] : vector<16x16xf32> to vector<16xf32>
    %57 = vector.shape_cast %56 : vector<16xf32> to vector<16x1xf32>
    %58 = vector.broadcast %57 : vector<16x1xf32> to vector<16x16xf32>
    %59 = arith.subf %55, %58 : vector<16x16xf32>
    %60 = math.exp %59 : vector<16x16xf32>
    %cst_26 = arith.constant dense<0.000000e+00> : vector<16xf32>
    %61 = vector.multi_reduction <add>, %60, %cst_26 [1] : vector<16x16xf32> to vector<16xf32>
    %62 = vector.shape_cast %61 : vector<16xf32> to vector<16x1xf32>
    %63 = tpu.reciprocal %62 {approx = true} : vector<16x1xf32> -> vector<16x1xf32>
    %64 = vector.broadcast %63 : vector<16x1xf32> to vector<16x16xf32>
    %65 = arith.mulf %60, %64 : vector<16x16xf32>
    %66 = arith.truncf %65 : vector<16x16xf32> to vector<16x16xbf16>
    %cst_27 = arith.constant dense<0.000000e+00> : vector<16x32xf32>
    %67 = tpu.matmul %66, %50, %cst_27 {dimension_numbers = #tpu.dot_dimension_numbers<[1], [0], [0], [1], [0, 0, 1, 1], [], []>} : vector<16x16xbf16>, vector<16x32xbf16>, vector<16x32xf32> -> vector<16x32xf32>
    %68 = arith.truncf %67 : vector<16x32xf32> to vector<16x32xbf16>
    %c0_28 = arith.constant 0 : index
    %c32 = arith.constant 32 : index
    %c0_29 = arith.constant 0 : index
    %69 = vector.load %arg8[%c0_28, %c32, %c0_29] : memref<1x128x128xbf16, #tpu.memory_space<vmem>>, vector<1x32x128xbf16>
    %70 = vector.shape_cast %69 : vector<1x32x128xbf16> to vector<32x128xbf16>
    %cst_30 = arith.constant dense<0.000000e+00> : vector<16x128xf32>
    %71 = tpu.matmul %68, %70, %cst_30 {dimension_numbers = #tpu.dot_dimension_numbers<[1], [0], [0], [1], [0, 0, 1, 1], [], []>} : vector<16x32xbf16>, vector<32x128xbf16>, vector<16x128xf32> -> vector<16x128xf32>
    %72 = arith.addf %44, %71 : vector<16x128xf32>
    %73 = vector.extract_strided_slice %13 {offsets = [0, 64], sizes = [16, 32], strides = [1, 1]} : vector<16x384xf32> to vector<16x32xf32>
    %74 = arith.truncf %73 : vector<16x32xf32> to vector<16x32xbf16>
    %75 = vector.extract_strided_slice %13 {offsets = [0, 192], sizes = [16, 32], strides = [1, 1]} : vector<16x384xf32> to vector<16x32xf32>
    %76 = arith.truncf %75 : vector<16x32xf32> to vector<16x32xbf16>
    %77 = vector.extract_strided_slice %13 {offsets = [0, 320], sizes = [16, 32], strides = [1, 1]} : vector<16x384xf32> to vector<16x32xf32>
    %78 = arith.truncf %77 : vector<16x32xf32> to vector<16x32xbf16>
    %cst_31 = arith.constant dense<0.000000e+00> : vector<16x16xf32>
    %79 = tpu.matmul %74, %76, %cst_31 {dimension_numbers = #tpu.dot_dimension_numbers<[1], [1], [0], [0], [0, 0, 1, 0], [], []>} : vector<16x32xbf16>, vector<16x32xbf16>, vector<16x16xf32> -> vector<16x16xf32>
    %cst_32 = arith.constant 0.176776692 : f32
    %80 = vector.broadcast %cst_32 : f32 to vector<16x16xf32>
    %81 = arith.mulf %79, %80 : vector<16x16xf32>
    %82 = vector.broadcast %5 : vector<1x16xf32> to vector<16x16xf32>
    %83 = arith.addf %81, %82 : vector<16x16xf32>
    %cst_33 = arith.constant dense<0xFF800000> : vector<16xf32>
    %84 = vector.multi_reduction <maximumf>, %83, %cst_33 [1] : vector<16x16xf32> to vector<16xf32>
    %85 = vector.shape_cast %84 : vector<16xf32> to vector<16x1xf32>
    %86 = vector.broadcast %85 : vector<16x1xf32> to vector<16x16xf32>
    %87 = arith.subf %83, %86 : vector<16x16xf32>
    %88 = math.exp %87 : vector<16x16xf32>
    %cst_34 = arith.constant dense<0.000000e+00> : vector<16xf32>
    %89 = vector.multi_reduction <add>, %88, %cst_34 [1] : vector<16x16xf32> to vector<16xf32>
    %90 = vector.shape_cast %89 : vector<16xf32> to vector<16x1xf32>
    %91 = tpu.reciprocal %90 {approx = true} : vector<16x1xf32> -> vector<16x1xf32>
    %92 = vector.broadcast %91 : vector<16x1xf32> to vector<16x16xf32>
    %93 = arith.mulf %88, %92 : vector<16x16xf32>
    %94 = arith.truncf %93 : vector<16x16xf32> to vector<16x16xbf16>
    %cst_35 = arith.constant dense<0.000000e+00> : vector<16x32xf32>
    %95 = tpu.matmul %94, %78, %cst_35 {dimension_numbers = #tpu.dot_dimension_numbers<[1], [0], [0], [1], [0, 0, 1, 1], [], []>} : vector<16x16xbf16>, vector<16x32xbf16>, vector<16x32xf32> -> vector<16x32xf32>
    %96 = arith.truncf %95 : vector<16x32xf32> to vector<16x32xbf16>
    %c0_36 = arith.constant 0 : index
    %c64 = arith.constant 64 : index
    %c0_37 = arith.constant 0 : index
    %97 = vector.load %arg8[%c0_36, %c64, %c0_37] : memref<1x128x128xbf16, #tpu.memory_space<vmem>>, vector<1x32x128xbf16>
    %98 = vector.shape_cast %97 : vector<1x32x128xbf16> to vector<32x128xbf16>
    %cst_38 = arith.constant dense<0.000000e+00> : vector<16x128xf32>
    %99 = tpu.matmul %96, %98, %cst_38 {dimension_numbers = #tpu.dot_dimension_numbers<[1], [0], [0], [1], [0, 0, 1, 1], [], []>} : vector<16x32xbf16>, vector<32x128xbf16>, vector<16x128xf32> -> vector<16x128xf32>
    %100 = arith.addf %72, %99 : vector<16x128xf32>
    %101 = vector.extract_strided_slice %13 {offsets = [0, 96], sizes = [16, 32], strides = [1, 1]} : vector<16x384xf32> to vector<16x32xf32>
    %102 = arith.truncf %101 : vector<16x32xf32> to vector<16x32xbf16>
    %103 = vector.extract_strided_slice %13 {offsets = [0, 224], sizes = [16, 32], strides = [1, 1]} : vector<16x384xf32> to vector<16x32xf32>
    %104 = arith.truncf %103 : vector<16x32xf32> to vector<16x32xbf16>
    %105 = vector.extract_strided_slice %13 {offsets = [0, 352], sizes = [16, 32], strides = [1, 1]} : vector<16x384xf32> to vector<16x32xf32>
    %106 = arith.truncf %105 : vector<16x32xf32> to vector<16x32xbf16>
    %cst_39 = arith.constant dense<0.000000e+00> : vector<16x16xf32>
    %107 = tpu.matmul %102, %104, %cst_39 {dimension_numbers = #tpu.dot_dimension_numbers<[1], [1], [0], [0], [0, 0, 1, 0], [], []>} : vector<16x32xbf16>, vector<16x32xbf16>, vector<16x16xf32> -> vector<16x16xf32>
    %cst_40 = arith.constant 0.176776692 : f32
    %108 = vector.broadcast %cst_40 : f32 to vector<16x16xf32>
    %109 = arith.mulf %107, %108 : vector<16x16xf32>
    %110 = vector.broadcast %5 : vector<1x16xf32> to vector<16x16xf32>
    %111 = arith.addf %109, %110 : vector<16x16xf32>
    %cst_41 = arith.constant dense<0xFF800000> : vector<16xf32>
    %112 = vector.multi_reduction <maximumf>, %111, %cst_41 [1] : vector<16x16xf32> to vector<16xf32>
    %113 = vector.shape_cast %112 : vector<16xf32> to vector<16x1xf32>
    %114 = vector.broadcast %113 : vector<16x1xf32> to vector<16x16xf32>
    %115 = arith.subf %111, %114 : vector<16x16xf32>
    %116 = math.exp %115 : vector<16x16xf32>
    %cst_42 = arith.constant dense<0.000000e+00> : vector<16xf32>
    %117 = vector.multi_reduction <add>, %116, %cst_42 [1] : vector<16x16xf32> to vector<16xf32>
    %118 = vector.shape_cast %117 : vector<16xf32> to vector<16x1xf32>
    %119 = tpu.reciprocal %118 {approx = true} : vector<16x1xf32> -> vector<16x1xf32>
    %120 = vector.broadcast %119 : vector<16x1xf32> to vector<16x16xf32>
    %121 = arith.mulf %116, %120 : vector<16x16xf32>
    %122 = arith.truncf %121 : vector<16x16xf32> to vector<16x16xbf16>
    %cst_43 = arith.constant dense<0.000000e+00> : vector<16x32xf32>
    %123 = tpu.matmul %122, %106, %cst_43 {dimension_numbers = #tpu.dot_dimension_numbers<[1], [0], [0], [1], [0, 0, 1, 1], [], []>} : vector<16x16xbf16>, vector<16x32xbf16>, vector<16x32xf32> -> vector<16x32xf32>
    %124 = arith.truncf %123 : vector<16x32xf32> to vector<16x32xbf16>
    %c0_44 = arith.constant 0 : index
    %c96 = arith.constant 96 : index
    %c0_45 = arith.constant 0 : index
    %125 = vector.load %arg8[%c0_44, %c96, %c0_45] : memref<1x128x128xbf16, #tpu.memory_space<vmem>>, vector<1x32x128xbf16>
    %126 = vector.shape_cast %125 : vector<1x32x128xbf16> to vector<32x128xbf16>
    %cst_46 = arith.constant dense<0.000000e+00> : vector<16x128xf32>
    %127 = tpu.matmul %124, %126, %cst_46 {dimension_numbers = #tpu.dot_dimension_numbers<[1], [0], [0], [1], [0, 0, 1, 1], [], []>} : vector<16x32xbf16>, vector<32x128xbf16>, vector<16x128xf32> -> vector<16x128xf32>
    %128 = arith.addf %100, %127 : vector<16x128xf32>
    %129 = arith.addf %128, %3 : vector<16x128xf32>
    %c0_47 = arith.constant 0 : index
    %c0_48 = arith.constant 0 : index
    %c0_49 = arith.constant 0 : index
    %130 = vector.load %arg10[%c0_47, %c0_48, %c0_49] : memref<1x1x128xf32, #tpu.memory_space<vmem>>, vector<1x1x128xf32>
    %131 = vector.shape_cast %130 : vector<1x1x128xf32> to vector<1x128xf32>
    %c0_50 = arith.constant 0 : index
    %c0_51 = arith.constant 0 : index
    %c0_52 = arith.constant 0 : index
    %132 = vector.load %arg11[%c0_50, %c0_51, %c0_52] : memref<1x1x128xf32, #tpu.memory_space<vmem>>, vector<1x1x128xf32>
    %133 = vector.shape_cast %132 : vector<1x1x128xf32> to vector<1x128xf32>
    %cst_53 = arith.constant dense<0.000000e+00> : vector<16xf32>
    %134 = vector.multi_reduction <add>, %129, %cst_53 [1] : vector<16x128xf32> to vector<16xf32>
    %135 = vector.shape_cast %134 : vector<16xf32> to vector<16x1xf32>
    %cst_54 = arith.constant 1.280000e+02 : f32
    %136 = vector.broadcast %cst_54 : f32 to vector<16x1xf32>
    %137 = arith.divf %135, %136 : vector<16x1xf32>
    %138 = vector.broadcast %137 : vector<16x1xf32> to vector<16x128xf32>
    %139 = arith.subf %129, %138 : vector<16x128xf32>
    %140 = arith.mulf %139, %139 : vector<16x128xf32>
    %cst_55 = arith.constant dense<0.000000e+00> : vector<16xf32>
    %141 = vector.multi_reduction <add>, %140, %cst_55 [1] : vector<16x128xf32> to vector<16xf32>
    %142 = vector.shape_cast %141 : vector<16xf32> to vector<16x1xf32>
    %cst_56 = arith.constant 1.280000e+02 : f32
    %143 = vector.broadcast %cst_56 : f32 to vector<16x1xf32>
    %144 = arith.divf %142, %143 : vector<16x1xf32>
    %145 = vector.broadcast %137 : vector<16x1xf32> to vector<16x128xf32>
    %146 = arith.subf %129, %145 : vector<16x128xf32>
    %cst_57 = arith.constant 9.99999996E-13 : f32
    %147 = vector.broadcast %cst_57 : f32 to vector<16x1xf32>
    %148 = arith.addf %144, %147 : vector<16x1xf32>
    %149 = math.rsqrt %148 : vector<16x1xf32>
    %150 = vector.broadcast %149 : vector<16x1xf32> to vector<16x128xf32>
    %151 = arith.mulf %146, %150 : vector<16x128xf32>
    %152 = vector.broadcast %131 : vector<1x128xf32> to vector<16x128xf32>
    %153 = arith.mulf %151, %152 : vector<16x128xf32>
    %154 = vector.broadcast %133 : vector<1x128xf32> to vector<16x128xf32>
    %155 = arith.addf %153, %154 : vector<16x128xf32>
    %156 = arith.truncf %155 : vector<16x128xf32> to vector<16x128xbf16>
    %c0_58 = arith.constant 0 : index
    %c0_59 = arith.constant 0 : index
    %c0_60 = arith.constant 0 : index
    %157 = vector.load %arg12[%c0_58, %c0_59, %c0_60] : memref<1x128x512xbf16, #tpu.memory_space<vmem>>, vector<1x128x512xbf16>
    %158 = vector.shape_cast %157 : vector<1x128x512xbf16> to vector<128x512xbf16>
    %cst_61 = arith.constant dense<0.000000e+00> : vector<16x512xf32>
    %159 = tpu.matmul %156, %158, %cst_61 {dimension_numbers = #tpu.dot_dimension_numbers<[1], [0], [0], [1], [0, 0, 1, 1], [], []>} : vector<16x128xbf16>, vector<128x512xbf16>, vector<16x512xf32> -> vector<16x512xf32>
    %c0_62 = arith.constant 0 : index
    %c0_63 = arith.constant 0 : index
    %c0_64 = arith.constant 0 : index
    %160 = vector.load %arg13[%c0_62, %c0_63, %c0_64] : memref<1x1x512xf32, #tpu.memory_space<vmem>>, vector<1x1x512xf32>
    %161 = vector.shape_cast %160 : vector<1x1x512xf32> to vector<1x512xf32>
    %162 = vector.broadcast %161 : vector<1x512xf32> to vector<16x512xf32>
    %163 = arith.addf %159, %162 : vector<16x512xf32>
    %cst_65 = arith.constant 5.000000e-01 : f32
    %164 = vector.broadcast %cst_65 : f32 to vector<16x512xf32>
    %165 = arith.mulf %164, %163 : vector<16x512xf32>
    %cst_66 = arith.constant 4.471500e-02 : f32
    %166 = vector.broadcast %cst_66 : f32 to vector<16x512xf32>
    %167 = arith.mulf %166, %163 : vector<16x512xf32>
    %168 = arith.mulf %167, %163 : vector<16x512xf32>
    %169 = arith.mulf %168, %163 : vector<16x512xf32>
    %170 = arith.addf %163, %169 : vector<16x512xf32>
    %cst_67 = arith.constant 0.797884583 : f32
    %171 = vector.broadcast %cst_67 : f32 to vector<16x512xf32>
    %172 = arith.mulf %171, %170 : vector<16x512xf32>
    %173 = math.tanh %172 : vector<16x512xf32>
    %cst_68 = arith.constant 1.000000e+00 : f32
    %174 = vector.broadcast %cst_68 : f32 to vector<16x512xf32>
    %175 = arith.addf %174, %173 : vector<16x512xf32>
    %176 = arith.mulf %165, %175 : vector<16x512xf32>
    %177 = arith.truncf %176 : vector<16x512xf32> to vector<16x512xbf16>
    %c0_69 = arith.constant 0 : index
    %c0_70 = arith.constant 0 : index
    %c0_71 = arith.constant 0 : index
    %178 = vector.load %arg14[%c0_69, %c0_70, %c0_71] : memref<1x512x128xbf16, #tpu.memory_space<vmem>>, vector<1x512x128xbf16>
    %179 = vector.shape_cast %178 : vector<1x512x128xbf16> to vector<512x128xbf16>
    %cst_72 = arith.constant dense<0.000000e+00> : vector<16x128xf32>
    %180 = tpu.matmul %177, %179, %cst_72 {dimension_numbers = #tpu.dot_dimension_numbers<[1], [0], [0], [1], [0, 0, 1, 1], [], []>} : vector<16x512xbf16>, vector<512x128xbf16>, vector<16x128xf32> -> vector<16x128xf32>
    %c0_73 = arith.constant 0 : index
    %c0_74 = arith.constant 0 : index
    %c0_75 = arith.constant 0 : index
    %181 = vector.load %arg15[%c0_73, %c0_74, %c0_75] : memref<1x1x128xf32, #tpu.memory_space<vmem>>, vector<1x1x128xf32>
    %182 = vector.shape_cast %181 : vector<1x1x128xf32> to vector<1x128xf32>
    %183 = vector.broadcast %182 : vector<1x128xf32> to vector<16x128xf32>
    %184 = arith.addf %180, %183 : vector<16x128xf32>
    %185 = arith.addf %184, %155 : vector<16x128xf32>
    %c0_76 = arith.constant 0 : index
    %c0_77 = arith.constant 0 : index
    %c0_78 = arith.constant 0 : index
    %186 = vector.load %arg16[%c0_76, %c0_77, %c0_78] : memref<1x1x128xf32, #tpu.memory_space<vmem>>, vector<1x1x128xf32>
    %187 = vector.shape_cast %186 : vector<1x1x128xf32> to vector<1x128xf32>
    %c0_79 = arith.constant 0 : index
    %c0_80 = arith.constant 0 : index
    %c0_81 = arith.constant 0 : index
    %188 = vector.load %arg17[%c0_79, %c0_80, %c0_81] : memref<1x1x128xf32, #tpu.memory_space<vmem>>, vector<1x1x128xf32>
    %189 = vector.shape_cast %188 : vector<1x1x128xf32> to vector<1x128xf32>
    %cst_82 = arith.constant dense<0.000000e+00> : vector<16xf32>
    %190 = vector.multi_reduction <add>, %185, %cst_82 [1] : vector<16x128xf32> to vector<16xf32>
    %191 = vector.shape_cast %190 : vector<16xf32> to vector<16x1xf32>
    %cst_83 = arith.constant 1.280000e+02 : f32
    %192 = vector.broadcast %cst_83 : f32 to vector<16x1xf32>
    %193 = arith.divf %191, %192 : vector<16x1xf32>
    %194 = vector.broadcast %193 : vector<16x1xf32> to vector<16x128xf32>
    %195 = arith.subf %185, %194 : vector<16x128xf32>
    %196 = arith.mulf %195, %195 : vector<16x128xf32>
    %cst_84 = arith.constant dense<0.000000e+00> : vector<16xf32>
    %197 = vector.multi_reduction <add>, %196, %cst_84 [1] : vector<16x128xf32> to vector<16xf32>
    %198 = vector.shape_cast %197 : vector<16xf32> to vector<16x1xf32>
    %cst_85 = arith.constant 1.280000e+02 : f32
    %199 = vector.broadcast %cst_85 : f32 to vector<16x1xf32>
    %200 = arith.divf %198, %199 : vector<16x1xf32>
    %201 = vector.broadcast %193 : vector<16x1xf32> to vector<16x128xf32>
    %202 = arith.subf %185, %201 : vector<16x128xf32>
    %cst_86 = arith.constant 9.99999996E-13 : f32
    %203 = vector.broadcast %cst_86 : f32 to vector<16x1xf32>
    %204 = arith.addf %200, %203 : vector<16x1xf32>
    %205 = math.rsqrt %204 : vector<16x1xf32>
    %206 = vector.broadcast %205 : vector<16x1xf32> to vector<16x128xf32>
    %207 = arith.mulf %202, %206 : vector<16x128xf32>
    %208 = vector.broadcast %187 : vector<1x128xf32> to vector<16x128xf32>
    %209 = arith.mulf %207, %208 : vector<16x128xf32>
    %210 = vector.broadcast %189 : vector<1x128xf32> to vector<16x128xf32>
    %211 = arith.addf %209, %210 : vector<16x128xf32>
    %c0_87 = arith.constant 0 : index
    %c0_88 = arith.constant 0 : index
    %212 = vector.load %arg19[%c0_87, %c0_88] : memref<16x128xf32, #tpu.memory_space<vmem>>, vector<16x128xf32>
    tpu.vector_store %arg19[%c0_87, %c0_88], %211 {strides = array<i32>} : memref<16x128xf32, #tpu.memory_space<vmem>>, vector<16x128xf32>,
    %c0_89 = arith.constant 0 : index
    %c0_90 = arith.constant 0 : index
    %213 = vector.load %arg18[%c0_89, %c0_90] : memref<16x128xf32, #tpu.memory_space<vmem>>, vector<16x128xf32>
    tpu.vector_store %arg18[%c0_89, %c0_90], %211 {strides = array<i32>} : memref<16x128xf32, #tpu.memory_space<vmem>>, vector<16x128xf32>,
    return
  }
  func.func @transform_0(%arg0: i32, %arg1: i32) -> (i32, i32) {
    %c0_i32 = arith.constant 0 : i32
    %c0_i32_0 = arith.constant 0 : i32
    return %arg0, %c0_i32 : i32, i32
  }
  func.func @transform_1(%arg0: i32, %arg1: i32) -> (i32, i32, i32) {
    %c0_i32 = arith.constant 0 : i32
    %c0_i32_0 = arith.constant 0 : i32
    %c0_i32_1 = arith.constant 0 : i32
    return %arg0, %c0_i32, %c0_i32_0 : i32, i32, i32
  }
  func.func @transform_2(%arg0: i32, %arg1: i32) -> (i32, i32) {
    %c0_i32 = arith.constant 0 : i32
    %c0_i32_0 = arith.constant 0 : i32
    %c0_i32_1 = arith.constant 0 : i32
    return %c0_i32, %c0_i32_0 : i32, i32
  }
  func.func @transform_3(%arg0: i32, %arg1: i32) -> (i32, i32) {
    %c0_i32 = arith.constant 0 : i32
    %c0_i32_0 = arith.constant 0 : i32
    %c0_i32_1 = arith.constant 0 : i32
    return %c0_i32, %c0_i32_0 : i32, i32
  }
  func.func @transform_4(%arg0: i32, %arg1: i32) -> (i32, i32, i32) {
    %c0_i32 = arith.constant 0 : i32
    %c0_i32_0 = arith.constant 0 : i32
    %c0_i32_1 = arith.constant 0 : i32
    return %arg1, %c0_i32, %c0_i32_0 : i32, i32, i32
  }
  func.func @transform_5(%arg0: i32, %arg1: i32) -> (i32, i32, i32) {
    %c0_i32 = arith.constant 0 : i32
    %c0_i32_0 = arith.constant 0 : i32
    %c0_i32_1 = arith.constant 0 : i32
    return %arg1, %c0_i32, %c0_i32_0 : i32, i32, i32
  }
  func.func @transform_6(%arg0: i32, %arg1: i32) -> (i32, i32, i32) {
    %c0_i32 = arith.constant 0 : i32
    %c0_i32_0 = arith.constant 0 : i32
    %c0_i32_1 = arith.constant 0 : i32
    return %arg1, %c0_i32, %c0_i32_0 : i32, i32, i32
  }
  func.func @transform_7(%arg0: i32, %arg1: i32) -> (i32, i32, i32) {
    %c0_i32 = arith.constant 0 : i32
    %c0_i32_0 = arith.constant 0 : i32
    %c0_i32_1 = arith.constant 0 : i32
    return %arg1, %c0_i32, %c0_i32_0 : i32, i32, i32
  }
  func.func @transform_8(%arg0: i32, %arg1: i32) -> (i32, i32, i32) {
    %c0_i32 = arith.constant 0 : i32
    %c0_i32_0 = arith.constant 0 : i32
    %c0_i32_1 = arith.constant 0 : i32
    return %arg1, %c0_i32, %c0_i32_0 : i32, i32, i32
  }
  func.func @transform_9(%arg0: i32, %arg1: i32) -> (i32, i32, i32) {
    %c0_i32 = arith.constant 0 : i32
    %c0_i32_0 = arith.constant 0 : i32
    %c0_i32_1 = arith.constant 0 : i32
    return %arg1, %c0_i32, %c0_i32_0 : i32, i32, i32
  }
  func.func @transform_10(%arg0: i32, %arg1: i32) -> (i32, i32, i32) {
    %c0_i32 = arith.constant 0 : i32
    %c0_i32_0 = arith.constant 0 : i32
    %c0_i32_1 = arith.constant 0 : i32
    return %arg1, %c0_i32, %c0_i32_0 : i32, i32, i32
  }
  func.func @transform_11(%arg0: i32, %arg1: i32) -> (i32, i32, i32) {
    %c0_i32 = arith.constant 0 : i32
    %c0_i32_0 = arith.constant 0 : i32
    %c0_i32_1 = arith.constant 0 : i32
    return %arg1, %c0_i32, %c0_i32_0 : i32, i32, i32
  }
  func.func @transform_12(%arg0: i32, %arg1: i32) -> (i32, i32, i32) {
    %c0_i32 = arith.constant 0 : i32
    %c0_i32_0 = arith.constant 0 : i32
    %c0_i32_1 = arith.constant 0 : i32
    return %arg1, %c0_i32, %c0_i32_0 : i32, i32, i32
  }
  func.func @transform_13(%arg0: i32, %arg1: i32) -> (i32, i32, i32) {
    %c0_i32 = arith.constant 0 : i32
    %c0_i32_0 = arith.constant 0 : i32
    %c0_i32_1 = arith.constant 0 : i32
    return %arg1, %c0_i32, %c0_i32_0 : i32, i32, i32
  }
  func.func @transform_14(%arg0: i32, %arg1: i32) -> (i32, i32, i32) {
    %c0_i32 = arith.constant 0 : i32
    %c0_i32_0 = arith.constant 0 : i32
    %c0_i32_1 = arith.constant 0 : i32
    return %arg1, %c0_i32, %c0_i32_0 : i32, i32, i32
  }
  func.func @transform_15(%arg0: i32, %arg1: i32) -> (i32, i32, i32) {
    %c0_i32 = arith.constant 0 : i32
    %c0_i32_0 = arith.constant 0 : i32
    %c0_i32_1 = arith.constant 0 : i32
    return %arg1, %c0_i32, %c0_i32_0 : i32, i32, i32
  }
  func.func @transform_16(%arg0: i32, %arg1: i32) -> (i32, i32) {
    %c0_i32 = arith.constant 0 : i32
    %c0_i32_0 = arith.constant 0 : i32
    return %arg0, %c0_i32 : i32, i32
  }
}

</mosaic_0001>

<llo_original>
// kernel: legal_model_forward.3
$region0: #{legal_model_forward.3}
  #allocation0 [shape = 'u32[]', space=smem, size = 0x4, offset = 0x4, fixed_abs, tag = 'smem constant byte address 0x4 - core index']
  #allocation1 [shape = 'u32[144,128]{1,0:T(1,128)}', space=vmem, size = 0x12000, scoped, tag = 'internal scratch']
  %s0 = inlined_call_operand.vmem [shape: f32[2,128], index: 0, kind: input, shape index: {}]
  %s1 = inlined_call_operand.vmem [shape: bf16[128,256], index: 1, kind: input, shape index: {}]
  %s2 = inlined_call_operand.vmem [shape: f32[1,256], index: 2, kind: input, shape index: {}]
  %s3 = inlined_call_operand.vmem [shape: bf16[256,384], index: 3, kind: input, shape index: {}]
  %s4 = inlined_call_operand.vmem [shape: f32[1,384], index: 4, kind: input, shape index: {}]
  %s5 = inlined_call_operand.vmem [shape: f32[2,384], index: 5, kind: output, shape index: {}]
  %s6 = sld [smem:[#allocation0]]
  $region30: #{legal_model_forward.3} parent=0
    _
  %s8 = ssub.s32 1, %s6
  %s9 = scalar_select 0, %s8, %s6
  // Predicated region
  $region2: #{legal_model_forward.3} parent=0 // pred_check
    _
  $region3: #{legal_model_forward.3} parent=0 // pred_check_branch
    %11 = sbr.rel (0) target = $region5
  $region4: #{legal_model_forward.3} parent=0 // pred_region
    _
  $region5: #{legal_model_forward.3} parent=0 // pred_fallthru
    _
  // Predicated region
  $region6: #{legal_model_forward.3} parent=0 // pred_check
    _
  $region7: #{legal_model_forward.3} parent=0 // pred_check_branch
    %13 = sbr.rel (0) target = $region9
  $region8: #{legal_model_forward.3} parent=0 // pred_region
    _
  $region9: #{legal_model_forward.3} parent=0 // pred_fallthru
    _
  // Predicated region
  $region10: #{legal_model_forward.3} parent=0 // pred_check
    _
  $region11: #{legal_model_forward.3} parent=0 // pred_check_branch
    %15 = sbr.rel (0) target = $region13
  $region12: #{legal_model_forward.3} parent=0 // pred_region
    _
  $region13: #{legal_model_forward.3} parent=0 // pred_fallthru
    _
  // Predicated region
  $region14: #{legal_model_forward.3} parent=0 // pred_check
    _
  $region15: #{legal_model_forward.3} parent=0 // pred_check_branch
    %17 = sbr.rel (0) target = $region17
  $region16: #{legal_model_forward.3} parent=0 // pred_region
    _
  $region17: #{legal_model_forward.3} parent=0 // pred_fallthru
    _
  // Predicated region
  $region18: #{legal_model_forward.3} parent=0 // pred_check
    _
  $region19: #{legal_model_forward.3} parent=0 // pred_check_branch
    %19 = sbr.rel (0) target = $region21
  $region20: #{legal_model_forward.3} parent=0 // pred_region
    _
  $region21: #{legal_model_forward.3} parent=0 // pred_fallthru
    _
  %v21 = vld [vmem:[%s0] sm:$0x3]
  %v22 = vpack.c.bf16 %v21, %v21
  %v23 = vld [vmem:[%s1] sm:$0xff]
  %v24 = vld [vmem:[%s1 + $0x8] sm:$0xff]
  %v25 = vld [vmem:[%s1 + $0x10] sm:$0xff]
  %v26 = vld [vmem:[%s1 + $0x18] sm:$0xff]
  %v27 = vld [vmem:[%s1 + $0x20] sm:$0xff]
  %v28 = vld [vmem:[%s1 + $0x28] sm:$0xff]
  %v29 = vld [vmem:[%s1 + $0x30] sm:$0xff]
  %v30 = vld [vmem:[%s1 + $0x38] sm:$0xff]
  %v31 = vld [vmem:[%s1 + $0x40] sm:$0xff]
  %v32 = vld [vmem:[%s1 + $0x48] sm:$0xff]
  %v33 = vld [vmem:[%s1 + $0x50] sm:$0xff]
  %v34 = vld [vmem:[%s1 + $0x58] sm:$0xff]
  %v35 = vld [vmem:[%s1 + $0x60] sm:$0xff]
  %v36 = vld [vmem:[%s1 + $0x68] sm:$0xff]
  %v37 = vld [vmem:[%s1 + $0x70] sm:$0xff]
  %v38 = vld [vmem:[%s1 + $0x78] sm:$0xff]
  %v39 = vld [vmem:[%s2] sm:$0x3]
  %v41 = vlaneseq
  %v42 = vshrl.u32 %v41, 7
  %v43 = vsub.s32 0, %v42
  %v44 = vrot.slane %v39, %v43
  %v45 = vlaneseq
  %v46 = vshrl.u32 %v45, 7
  %v47 = vsub.s32 1, %v46
  %v48 = vrot.slane %v39, %v47
  %v67 = vunpack.c.l.b16 %v23
  %v68 = vunpack.c.h.b16 %v23
  %v69 = vunpack.c.l.b16 %v24
  %v70 = vunpack.c.h.b16 %v24
  %v71 = vunpack.c.l.b16 %v25
  %v72 = vunpack.c.h.b16 %v25
  %v73 = vunpack.c.l.b16 %v26
  %v74 = vunpack.c.h.b16 %v26
  %v75 = vunpack.c.l.b16 %v27
  %v76 = vunpack.c.h.b16 %v27
  %v77 = vunpack.c.l.b16 %v28
  %v78 = vunpack.c.h.b16 %v28
  %v79 = vunpack.c.l.b16 %v29
  %v80 = vunpack.c.h.b16 %v29
  %v81 = vunpack.c.l.b16 %v30
  %v82 = vunpack.c.h.b16 %v30
  %v83 = vunpack.c.l.b16 %v31
  %v84 = vunpack.c.h.b16 %v31
  %v85 = vunpack.c.l.b16 %v32
  %v86 = vunpack.c.h.b16 %v32
  %v87 = vunpack.c.l.b16 %v33
  %v88 = vunpack.c.h.b16 %v33
  %v89 = vunpack.c.l.b16 %v34
  %v90 = vunpack.c.h.b16 %v34
  %v91 = vunpack.c.l.b16 %v35
  %v92 = vunpack.c.h.b16 %v35
  %v93 = vunpack.c.l.b16 %v36
  %v94 = vunpack.c.h.b16 %v36
  %v95 = vunpack.c.l.b16 %v37
  %v96 = vunpack.c.h.b16 %v37
  %v97 = vunpack.c.l.b16 %v38
  %v98 = vunpack.c.h.b16 %v38
  %v99 = vpack.c.b16 %v69, %v67
  %v100 = vpack.c.b16 %v70, %v68
  %v101 = vpack.c.b16 %v73, %v71
  %v102 = vpack.c.b16 %v74, %v72
  %v103 = vpack.c.b16 %v77, %v75
  %v104 = vpack.c.b16 %v78, %v76
  %v105 = vpack.c.b16 %v81, %v79
  %v106 = vpack.c.b16 %v82, %v80
  %v107 = vpack.c.b16 %v85, %v83
  %v108 = vpack.c.b16 %v86, %v84
  %v109 = vpack.c.b16 %v89, %v87
  %v110 = vpack.c.b16 %v90, %v88
  %v111 = vpack.c.b16 %v93, %v91
  %v112 = vpack.c.b16 %v94, %v92
  %v113 = vpack.c.b16 %v97, %v95
  %v114 = vpack.c.b16 %v98, %v96
  %131 = vmatprep.subr.bf16.mxu0 %v114
  %132 = vmatpush1.bf16.msra.mxu0 %v113
  %133 = vmatprep.subr.bf16.mxu0 %v112
  %134 = vmatpush1.bf16.msra.mxu0 %v111
  %135 = vmatprep.subr.bf16.mxu0 %v110
  %136 = vmatpush1.bf16.msra.mxu0 %v109
  %137 = vmatprep.subr.bf16.mxu0 %v108
  %138 = vmatpush1.bf16.msra.mxu0 %v107
  %139 = vmatprep.subr.bf16.mxu0 %v106
  %140 = vmatpush1.bf16.msra.mxu0 %v105
  %141 = vmatprep.subr.bf16.mxu0 %v104
  %142 = vmatpush1.bf16.msra.mxu0 %v103
  %143 = vmatprep.subr.bf16.mxu0 %v102
  %144 = vmatpush1.bf16.msra.mxu0 %v101
  %145 = vmatprep.subr.bf16.mxu0 %v100
  %146 = vmatpush1.bf16.msra.mxu0 %v99
  %147 = vmatprep.subr.bf16.mxu0 0
  %148 = vmatpush2.bf16.msra.mxu0 0
  %149 = vmatprep.subr.bf16.mxu0 0
  %150 = vmatpush2.bf16.msra.mxu0 0
  %151 = vmatprep.subr.bf16.mxu0 0
  %152 = vmatpush2.bf16.msra.mxu0 0
  %153 = vmatprep.subr.bf16.mxu0 0
  %154 = vmatpush2.bf16.msra.mxu0 0
  %155 = vmatprep.subr.bf16.mxu0 0
  %156 = vmatpush2.bf16.msra.mxu0 0
  %157 = vmatprep.subr.bf16.mxu0 0
  %158 = vmatpush2.bf16.msra.mxu0 0
  %159 = vmatprep.subr.bf16.mxu0 0
  %160 = vmatpush2.bf16.msra.mxu0 0
  %161 = vmatprep.subr.bf16.mxu0 0
  %162 = vmatpush2.bf16.msra.mxu0 0
  %163 = vmatprep.mubr.bf16.mxu0 0
  %164 = vmatmul.mubr.bf16.gmra.mxu0 %v22
  %v165 = vpop.f32.mrf.mxu0
  %v166 = vadd.f32 %v44, %v165
  %v167 = vpop.f32.mrf.mxu0
  %v168 = vadd.f32 %v48, %v167
  %v169 = vpop.f32.mrf.mxu0
  %v170 = vpop.f32.mrf.mxu0
  %171 = vdwg.mxu0
  %v172 = vmax.f32 %v166, 0.0
  %v173 = vmax.f32 %v168, 0.0
  %v174 = vpack.c.bf16 %v172, %v172
  %v175 = vpack.c.bf16 %v173, %v173
  %v176 = vld [vmem:[%s3] sm:$0xff]
  %v177 = vld [vmem:[%s3 + $0x8] sm:$0xf]
  %v178 = vld [vmem:[%s3 + $0xc] sm:$0xff]
  %v179 = vld [vmem:[%s3 + $0x14] sm:$0xf]
  %v180 = vld [vmem:[%s3 + $0x18] sm:$0xff]
  %v181 = vld [vmem:[%s3 + $0x20] sm:$0xf]
  %v182 = vld [vmem:[%s3 + $0x24] sm:$0xff]
  %v183 = vld [vmem:[%s3 + $0x2c] sm:$0xf]
  %v184 = vld [vmem:[%s3 + $0x30] sm:$0xff]
  %v185 = vld [vmem:[%s3 + $0x38] sm:$0xf]
  %v186 = vld [vmem:[%s3 + $0x3c] sm:$0xff]
  %v187 = vld [vmem:[%s3 + $0x44] sm:$0xf]
  %v188 = vld [vmem:[%s3 + $0x48] sm:$0xff]
  %v189 = vld [vmem:[%s3 + $0x50] sm:$0xf]
  %v190 = vld [vmem:[%s3 + $0x54] sm:$0xff]
  %v191 = vld [vmem:[%s3 + $0x5c] sm:$0xf]
  %v192 = vld [vmem:[%s3 + $0x60] sm:$0xff]
  %v193 = vld [vmem:[%s3 + $0x68] sm:$0xf]
  %v194 = vld [vmem:[%s3 + $0x6c] sm:$0xff]
  %v195 = vld [vmem:[%s3 + $0x74] sm:$0xf]
  %v196 = vld [vmem:[%s3 + $0x78] sm:$0xff]
  %v197 = vld [vmem:[%s3 + $0x80] sm:$0xf]
  %v198 = vld [vmem:[%s3 + $0x84] sm:$0xff]
  %v199 = vld [vmem:[%s3 + $0x8c] sm:$0xf]
  %v200 = vld [vmem:[%s3 + $0x90] sm:$0xff]
  %v201 = vld [vmem:[%s3 + $0x98] sm:$0xf]
  %v202 = vld [vmem:[%s3 + $0x9c] sm:$0xff]
  %v203 = vld [vmem:[%s3 + $0xa4] sm:$0xf]
  %v204 = vld [vmem:[%s3 + $0xa8] sm:$0xff]
  %v205 = vld [vmem:[%s3 + $0xb0] sm:$0xf]
  %v206 = vld [vmem:[%s3 + $0xb4] sm:$0xff]
  %v207 = vld [vmem:[%s3 + $0xbc] sm:$0xf]
  %v208 = vld [vmem:[%s3 + $0xc0] sm:$0xff]
  %v209 = vld [vmem:[%s3 + $0xc8] sm:$0xf]
  %v210 = vld [vmem:[%s3 + $0xcc] sm:$0xff]
  %v211 = vld [vmem:[%s3 + $0xd4] sm:$0xf]
  %v212 = vld [vmem:[%s3 + $0xd8] sm:$0xff]
  %v213 = vld [vmem:[%s3 + $0xe0] sm:$0xf]
  %v214 = vld [vmem:[%s3 + $0xe4] sm:$0xff]
  %v215 = vld [vmem:[%s3 + $0xec] sm:$0xf]
  %v216 = vld [vmem:[%s3 + $0xf0] sm:$0xff]
  %v217 = vld [vmem:[%s3 + $0xf8] sm:$0xf]
  %v218 = vld [vmem:[%s3 + $0xfc] sm:$0xff]
  %v219 = vld [vmem:[%s3 + $0x104] sm:$0xf]
  %v220 = vld [vmem:[%s3 + $0x108] sm:$0xff]
  %v221 = vld [vmem:[%s3 + $0x110] sm:$0xf]
  %v222 = vld [vmem:[%s3 + $0x114] sm:$0xff]
  %v223 = vld [vmem:[%s3 + $0x11c] sm:$0xf]
  %v224 = vld [vmem:[%s3 + $0x120] sm:$0xff]
  %v225 = vld [vmem:[%s3 + $0x128] sm:$0xf]
  %v226 = vld [vmem:[%s3 + $0x12c] sm:$0xff]
  %v227 = vld [vmem:[%s3 + $0x134] sm:$0xf]
  %v228 = vld [vmem:[%s3 + $0x138] sm:$0xff]
  %v229 = vld [vmem:[%s3 + $0x140] sm:$0xf]
  %v230 = vld [vmem:[%s3 + $0x144] sm:$0xff]
  %v231 = vld [vmem:[%s3 + $0x14c] sm:$0xf]
  %v232 = vld [vmem:[%s3 + $0x150] sm:$0xff]
  %v233 = vld [vmem:[%s3 + $0x158] sm:$0xf]
  %v234 = vld [vmem:[%s3 + $0x15c] sm:$0xff]
  %v235 = vld [vmem:[%s3 + $0x164] sm:$0xf]
  %v236 = vld [vmem:[%s3 + $0x168] sm:$0xff]
  %v237 = vld [vmem:[%s3 + $0x170] sm:$0xf]
  %v238 = vld [vmem:[%s3 + $0x174] sm:$0xff]
  %v239 = vld [vmem:[%s3 + $0x17c] sm:$0xf]
  %v240 = vld [vmem:[%s4] sm:$0x7]
  %v242 = vlaneseq
  %v243 = vshrl.u32 %v242, 7
  %v244 = vsub.s32 0, %v243
  %v245 = vrot.slane %v240, %v244
  %v246 = vlaneseq
  %v247 = vshrl.u32 %v246, 7
  %v248 = vsub.s32 1, %v247
  %v249 = vrot.slane %v240, %v248
  %v250 = vlaneseq
  %v251 = vshrl.u32 %v250, 7
  %v252 = vsub.s32 2, %v251
  %v253 = vrot.slane %v240, %v252
  %v321 = vunpack.c.l.b16 %v176
  %v322 = vunpack.c.h.b16 %v176
  %v323 = vunpack.c.l.b16 %v177
  %v324 = vunpack.c.l.b16 %v178
  %v325 = vunpack.c.h.b16 %v178
  %v326 = vunpack.c.l.b16 %v179
  %v327 = vunpack.c.l.b16 %v180
  %v328 = vunpack.c.h.b16 %v180
  %v329 = vunpack.c.l.b16 %v181
  %v330 = vunpack.c.l.b16 %v182
  %v331 = vunpack.c.h.b16 %v182
  %v332 = vunpack.c.l.b16 %v183
  %v333 = vunpack.c.l.b16 %v184
  %v334 = vunpack.c.h.b16 %v184
  %v335 = vunpack.c.l.b16 %v185
  %v336 = vunpack.c.l.b16 %v186
  %v337 = vunpack.c.h.b16 %v186
  %v338 = vunpack.c.l.b16 %v187
  %v339 = vunpack.c.l.b16 %v188
  %v340 = vunpack.c.h.b16 %v188
  %v341 = vunpack.c.l.b16 %v189
  %v342 = vunpack.c.l.b16 %v190
  %v343 = vunpack.c.h.b16 %v190
  %v344 = vunpack.c.l.b16 %v191
  %v345 = vunpack.c.l.b16 %v192
  %v346 = vunpack.c.h.b16 %v192
  %v347 = vunpack.c.l.b16 %v193
  %v348 = vunpack.c.l.b16 %v194
  %v349 = vunpack.c.h.b16 %v194
  %v350 = vunpack.c.l.b16 %v195
  %v351 = vunpack.c.l.b16 %v196
  %v352 = vunpack.c.h.b16 %v196
  %v353 = vunpack.c.l.b16 %v197
  %v354 = vunpack.c.l.b16 %v198
  %v355 = vunpack.c.h.b16 %v198
  %v356 = vunpack.c.l.b16 %v199
  %v357 = vunpack.c.l.b16 %v200
  %v358 = vunpack.c.h.b16 %v200
  %v359 = vunpack.c.l.b16 %v201
  %v360 = vunpack.c.l.b16 %v202
  %v361 = vunpack.c.h.b16 %v202
  %v362 = vunpack.c.l.b16 %v203
  %v363 = vunpack.c.l.b16 %v204
  %v364 = vunpack.c.h.b16 %v204
  %v365 = vunpack.c.l.b16 %v205
  %v366 = vunpack.c.l.b16 %v206
  %v367 = vunpack.c.h.b16 %v206
  %v368 = vunpack.c.l.b16 %v207
  %v369 = vunpack.c.l.b16 %v208
  %v370 = vunpack.c.h.b16 %v208
  %v371 = vunpack.c.l.b16 %v209
  %v372 = vunpack.c.l.b16 %v210
  %v373 = vunpack.c.h.b16 %v210
  %v374 = vunpack.c.l.b16 %v211
  %v375 = vunpack.c.l.b16 %v212
  %v376 = vunpack.c.h.b16 %v212
  %v377 = vunpack.c.l.b16 %v213
  %v378 = vunpack.c.l.b16 %v214
  %v379 = vunpack.c.h.b16 %v214
  %v380 = vunpack.c.l.b16 %v215
  %v381 = vunpack.c.l.b16 %v216
  %v382 = vunpack.c.h.b16 %v216
  %v383 = vunpack.c.l.b16 %v217
  %v384 = vunpack.c.l.b16 %v218
  %v385 = vunpack.c.h.b16 %v218
  %v386 = vunpack.c.l.b16 %v219
  %v387 = vunpack.c.l.b16 %v220
  %v388 = vunpack.c.h.b16 %v220
  %v389 = vunpack.c.l.b16 %v221
  %v390 = vunpack.c.l.b16 %v222
  %v391 = vunpack.c.h.b16 %v222
  %v392 = vunpack.c.l.b16 %v223
  %v393 = vunpack.c.l.b16 %v224
  %v394 = vunpack.c.h.b16 %v224
  %v395 = vunpack.c.l.b16 %v225
  %v396 = vunpack.c.l.b16 %v226
  %v397 = vunpack.c.h.b16 %v226
  %v398 = vunpack.c.l.b16 %v227
  %v399 = vunpack.c.l.b16 %v228
  %v400 = vunpack.c.h.b16 %v228
  %v401 = vunpack.c.l.b16 %v229
  %v402 = vunpack.c.l.b16 %v230
  %v403 = vunpack.c.h.b16 %v230
  %v404 = vunpack.c.l.b16 %v231
  %v405 = vunpack.c.l.b16 %v232
  %v406 = vunpack.c.h.b16 %v232
  %v407 = vunpack.c.l.b16 %v233
  %v408 = vunpack.c.l.b16 %v234
  %v409 = vunpack.c.h.b16 %v234
  %v410 = vunpack.c.l.b16 %v235
  %v411 = vunpack.c.l.b16 %v236
  %v412 = vunpack.c.h.b16 %v236
  %v413 = vunpack.c.l.b16 %v237
  %v414 = vunpack.c.l.b16 %v238
  %v415 = vunpack.c.h.b16 %v238
  %v416 = vunpack.c.l.b16 %v239
  %v417 = vpack.c.b16 %v324, %v321
  %v418 = vpack.c.b16 %v325, %v322
  %v419 = vpack.c.b16 %v326, %v323
  %v420 = vpack.c.b16 %v330, %v327
  %v421 = vpack.c.b16 %v331, %v328
  %v422 = vpack.c.b16 %v332, %v329
  %v423 = vpack.c.b16 %v336, %v333
  %v424 = vpack.c.b16 %v337, %v334
  %v425 = vpack.c.b16 %v338, %v335
  %v426 = vpack.c.b16 %v342, %v339
  %v427 = vpack.c.b16 %v343, %v340
  %v428 = vpack.c.b16 %v344, %v341
  %v429 = vpack.c.b16 %v348, %v345
  %v430 = vpack.c.b16 %v349, %v346
  %v431 = vpack.c.b16 %v350, %v347
  %v432 = vpack.c.b16 %v354, %v351
  %v433 = vpack.c.b16 %v355, %v352
  %v434 = vpack.c.b16 %v356, %v353
  %v435 = vpack.c.b16 %v360, %v357
  %v436 = vpack.c.b16 %v361, %v358
  %v437 = vpack.c.b16 %v362, %v359
  %v438 = vpack.c.b16 %v366, %v363
  %v439 = vpack.c.b16 %v367, %v364
  %v440 = vpack.c.b16 %v368, %v365
  %v441 = vpack.c.b16 %v372, %v369
  %v442 = vpack.c.b16 %v373, %v370
  %v443 = vpack.c.b16 %v374, %v371
  %v444 = vpack.c.b16 %v378, %v375
  %v445 = vpack.c.b16 %v379, %v376
  %v446 = vpack.c.b16 %v380, %v377
  %v447 = vpack.c.b16 %v384, %v381
  %v448 = vpack.c.b16 %v385, %v382
  %v449 = vpack.c.b16 %v386, %v383
  %v450 = vpack.c.b16 %v390, %v387
  %v451 = vpack.c.b16 %v391, %v388
  %v452 = vpack.c.b16 %v392, %v389
  %v453 = vpack.c.b16 %v396, %v393
  %v454 = vpack.c.b16 %v397, %v394
  %v455 = vpack.c.b16 %v398, %v395
  %v456 = vpack.c.b16 %v402, %v399
  %v457 = vpack.c.b16 %v403, %v400
  %v458 = vpack.c.b16 %v404, %v401
  %v459 = vpack.c.b16 %v408, %v405
  %v460 = vpack.c.b16 %v409, %v406
  %v461 = vpack.c.b16 %v410, %v407
  %v462 = vpack.c.b16 %v414, %v411
  %v463 = vpack.c.b16 %v415, %v412
  %v464 = vpack.c.b16 %v416, %v413
  %513 = vmatprep.subr.bf16.mxu0 %v439
  %514 = vmatpush1.bf16.msra.mxu0 %v438
  %515 = vmatprep.subr.bf16.mxu0 %v436
  %516 = vmatpush1.bf16.msra.mxu0 %v435
  %517 = vmatprep.subr.bf16.mxu0 %v433
  %518 = vmatpush1.bf16.msra.mxu0 %v432
  %519 = vmatprep.subr.bf16.mxu0 %v430
  %520 = vmatpush1.bf16.msra.mxu0 %v429
  %521 = vmatprep.subr.bf16.mxu0 %v427
  %522 = vmatpush1.bf16.msra.mxu0 %v426
  %523 = vmatprep.subr.bf16.mxu0 %v424
  %524 = vmatpush1.bf16.msra.mxu0 %v423
  %525 = vmatprep.subr.bf16.mxu0 %v421
  %526 = vmatpush1.bf16.msra.mxu0 %v420
  %527 = vmatprep.subr.bf16.mxu0 %v418
  %528 = vmatpush1.bf16.msra.mxu0 %v417
  %529 = vmatprep.subr.bf16.mxu0 %v463
  %530 = vmatpush2.bf16.msra.mxu0 %v462
  %531 = vmatprep.subr.bf16.mxu0 %v460
  %532 = vmatpush2.bf16.msra.mxu0 %v459
  %533 = vmatprep.subr.bf16.mxu0 %v457
  %534 = vmatpush2.bf16.msra.mxu0 %v456
  %535 = vmatprep.subr.bf16.mxu0 %v454
  %536 = vmatpush2.bf16.msra.mxu0 %v453
  %537 = vmatprep.subr.bf16.mxu0 %v451
  %538 = vmatpush2.bf16.msra.mxu0 %v450
  %539 = vmatprep.subr.bf16.mxu0 %v448
  %540 = vmatpush2.bf16.msra.mxu0 %v447
  %541 = vmatprep.subr.bf16.mxu0 %v445
  %542 = vmatpush2.bf16.msra.mxu0 %v444
  %543 = vmatprep.subr.bf16.mxu0 %v442
  %544 = vmatpush2.bf16.msra.mxu0 %v441
  %545 = vmatprep.mubr.bf16.mxu0 %v175
  %546 = vmatmul.mubr.bf16.gmra.mxu0 %v174
  %v547 = vpop.f32.mrf.mxu0
  %v548 = vadd.f32 %v245, %v547
  %v549 = vpop.f32.mrf.mxu0
  %v550 = vadd.f32 %v249, %v549
  %v551 = vpop.f32.mrf.mxu0
  %v552 = vpop.f32.mrf.mxu0
  %553 = vdwg.mxu0
  %554 = vmatprep.subr.bf16.mxu0 0
  %555 = vmatpush1.bf16.msra.mxu0 %v440
  %556 = vmatprep.subr.bf16.mxu0 0
  %557 = vmatpush1.bf16.msra.mxu0 %v437
  %558 = vmatprep.subr.bf16.mxu0 0
  %559 = vmatpush1.bf16.msra.mxu0 %v434
  %560 = vmatprep.subr.bf16.mxu0 0
  %561 = vmatpush1.bf16.msra.mxu0 %v431
  %562 = vmatprep.subr.bf16.mxu0 0
  %563 = vmatpush1.bf16.msra.mxu0 %v428
  %564 = vmatprep.subr.bf16.mxu0 0
  %565 = vmatpush1.bf16.msra.mxu0 %v425
  %566 = vmatprep.subr.bf16.mxu0 0
  %567 = vmatpush1.bf16.msra.mxu0 %v422
  %568 = vmatprep.subr.bf16.mxu0 0
  %569 = vmatpush1.bf16.msra.mxu0 %v419
  %570 = vmatprep.subr.bf16.mxu0 0
  %571 = vmatpush2.bf16.msra.mxu0 %v464
  %572 = vmatprep.subr.bf16.mxu0 0
  %573 = vmatpush2.bf16.msra.mxu0 %v461
  %574 = vmatprep.subr.bf16.mxu0 0
  %575 = vmatpush2.bf16.msra.mxu0 %v458
  %576 = vmatprep.subr.bf16.mxu0 0
  %577 = vmatpush2.bf16.msra.mxu0 %v455
  %578 = vmatprep.subr.bf16.mxu0 0
  %579 = vmatpush2.bf16.msra.mxu0 %v452
  %580 = vmatprep.subr.bf16.mxu0 0
  %581 = vmatpush2.bf16.msra.mxu0 %v449
  %582 = vmatprep.subr.bf16.mxu0 0
  %583 = vmatpush2.bf16.msra.mxu0 %v446
  %584 = vmatprep.subr.bf16.mxu0 0
  %585 = vmatpush2.bf16.msra.mxu0 %v443
  %586 = vmatprep.mubr.bf16.mxu0 %v175
  %587 = vmatmul.mubr.bf16.gmra.mxu0 %v174
  %v588 = vpop.f32.mrf.mxu0
  %v589 = vadd.f32 %v253, %v588
  %v590 = vpop.f32.mrf.mxu0
  %v591 = vpop.f32.mrf.mxu0
  %v592 = vpop.f32.mrf.mxu0
  %593 = vdwg.mxu0
  %v597 = vcombine.low %v548, %v550
  %v599 = vunpack.c.l.s4 1983009808
  %v600 = vunpack.c.0.s8 %v599
  %v601 = vlaneseq
  %v602 = vshrl.u32 %v601, 7
  %v603 = vsub.s32 %v600, %v602
  %v604 = vrot.slane %v597, %v603
  %v606 = vunpack.c.l.s4 1983009808
  %v607 = vunpack.c.0.s8 %v606
  %v608 = vlaneseq
  %v609 = vshrl.u32 %v608, 7
  %v610 = vsub.s32 %v607, %v609
  %v611 = vrot.slane %v589, %v610
  %v612 = vcombine.low %v604, %v611
  %614 = vst [vmem:[%s5] sm:$0x3f] %v612
  // Predicated region
  $region22: #{legal_model_forward.3} parent=0 // pred_check
    _
  $region23: #{legal_model_forward.3} parent=0 // pred_check_branch
    %616 = sbr.rel (0) target = $region25
  $region24: #{legal_model_forward.3} parent=0 // pred_region
    _
  $region25: #{legal_model_forward.3} parent=0 // pred_fallthru
    _
  // Predicated region
  $region26: #{legal_model_forward.3} parent=0 // pred_check
    _
  $region27: #{legal_model_forward.3} parent=0 // pred_check_branch
    %618 = sbr.rel (0) target = $region29
  $region28: #{legal_model_forward.3} parent=0 // pred_region
    _
  $region29: #{legal_model_forward.3} parent=0 // pred_fallthru
    _

// kernel: legal_model_forward.2
$region0: #{legal_model_forward.2}
  #allocation0 [shape = 'u32[]', space=smem, size = 0x4, offset = 0x4, fixed_abs, tag = 'smem constant byte address 0x4 - core index']
  #allocation1 [shape = 'u32[144,128]{1,0:T(1,128)}', space=vmem, size = 0x12000, scoped, tag = 'internal scratch']
  #allocation2 [shape = 'f32[16,128]{1,0:T(8,128)}', space=vmem, size = 0x2000, scoped, tag = 'scratch operand']
  %s0 = inlined_call_operand.vmem [shape: f32[32,128], index: 0, kind: input, shape index: {}]
  %s1 = inlined_call_operand.vmem [shape: f32[2,1,16], index: 1, kind: input, shape index: {}]
  %s2 = inlined_call_operand.vmem [shape: f32[1,128], index: 2, kind: input, shape index: {}]
  %s3 = inlined_call_operand.vmem [shape: f32[1,128], index: 3, kind: input, shape index: {}]
  %s4 = inlined_call_operand.vmem [shape: bf16[2,128,384], index: 4, kind: input, shape index: {}]
  %s5 = inlined_call_operand.vmem [shape: f32[2,1,384], index: 5, kind: input, shape index: {}]
  %s6 = inlined_call_operand.hbm [shape: bf16[2,128,128], index: 6, kind: input, shape index: {}]
  %s7 = inlined_call_operand.vmem [shape: f32[2,1,128], index: 7, kind: input, shape index: {}]
  %s8 = inlined_call_operand.vmem [shape: f32[2,1,128], index: 8, kind: input, shape index: {}]
  %s9 = inlined_call_operand.vmem [shape: f32[2,1,128], index: 9, kind: input, shape index: {}]
  %s10 = inlined_call_operand.hbm [shape: bf16[2,128,512], index: 10, kind: input, shape index: {}]
  %s11 = inlined_call_operand.vmem [shape: f32[2,1,512], index: 11, kind: input, shape index: {}]
  %s12 = inlined_call_operand.hbm [shape: bf16[2,512,128], index: 12, kind: input, shape index: {}]
  %s13 = inlined_call_operand.vmem [shape: f32[2,1,128], index: 13, kind: input, shape index: {}]
  %s14 = inlined_call_operand.vmem [shape: f32[2,1,128], index: 14, kind: input, shape index: {}]
  %s15 = inlined_call_operand.vmem [shape: f32[2,1,128], index: 15, kind: input, shape index: {}]
  %s16 = inlined_call_operand.vmem [shape: f32[32,128], index: 16, kind: output, shape index: {}]
  %s17 = sld [smem:[#allocation0]]
  $region113: #{legal_model_forward.2} parent=0
    _
  %s19 = ssub.s32 1, %s17
  %s20 = scalar_select 0, %s19, %s17
  $region1: #{legal_model_forward.2} parent=0
    #allocation3 [shape = 'u8[65536]{0}', space=vmem, size = 0x10000, scoped, tag = 'input window, operand 6']
    #allocation4 [shape = 's32[2]{0}', space=sflag, size = 0x8, scoped, tag = 'scoped memory for legal_model_forward.2']
    #allocation5 [shape = 'u8[262144]{0}', space=vmem, size = 0x40000, scoped, tag = 'input window, operand 10']
    #allocation6 [shape = 's32[2]{0}', space=sflag, size = 0x8, scoped, tag = 'scoped memory for legal_model_forward.2']
    #allocation7 [shape = 'u8[262144]{0}', space=vmem, size = 0x40000, scoped, tag = 'input window, operand 12']
    %21 = vsyncpa [#allocation4], 0
    %s22 = scalar_lea.sflag [#allocation4], 1
    %23 = vsyncpa %s22, 0
    %24 = vsyncpa [#allocation6], 0
    %s25 = scalar_lea.sflag [#allocation6], 1
    %26 = vsyncpa %s25, 0
    loop: start=0, step=1, limit=6
    $region2: #{legal_model_forward.2} parent=1 // loop_pre_header
      _
    $region3: #{legal_model_forward.2} parent=1 // loop_header
      %s28 = sphi 0, %s32
      %p29 = scmp.ge.s32.totalorder %s28, 6
      %s35 = sphi 0, %s47
      %s36 = sphi 0, %s43
      %s37 = sphi 0, %s35
      %s38 = sphi 0, %s36
      %s39 = sphi 0, %s37
      %s40 = sphi 0, %s38
      %s50 = sphi 0, %s52
      %s53 = sphi 0, %s50
      %s54 = sphi 0, %s53
      %s70 = sphi 0, %s54
      %s76 = sphi 0, %s78
      %s79 = sphi 0, %s76
      %s80 = sphi 0, %s79
      %s96 = sphi 0, %s80
      %s100 = sphi 0, %s100
      %s102 = sphi 0, %s100
      %s103 = sphi 0, %s102
      %s117 = sphi 0, %s103
      %s121 = sphi 0, %s121
      %s123 = sphi 0, %s121
      %s124 = sphi 0, %s123
      %s138 = sphi 0, %s124
      %s144 = sphi 0, %s146
      %s147 = sphi 0, %s144
      %s148 = sphi 0, %s147
      %s164 = sphi 0, %s148
      %s170 = sphi 0, %s172
      %s173 = sphi 0, %s170
      %s174 = sphi 0, %s173
      %s190 = sphi 0, %s174
      %s196 = sphi 0, %s198
      %s199 = sphi 0, %s196
      %s200 = sphi 0, %s199
      %s216 = sphi 0, %s200
      %s222 = sphi 0, %s224
      %s225 = sphi 0, %s222
      %s226 = sphi 0, %s225
      %s242 = sphi 0, %s226
      %s248 = sphi 0, %s250
      %s251 = sphi 0, %s248
      %s252 = sphi 0, %s251
      %s268 = sphi 0, %s252
      %s274 = sphi 0, %s276
      %s277 = sphi 0, %s274
      %s278 = sphi 0, %s277
      %s294 = sphi 0, %s278
      %s300 = sphi 0, %s302
      %s303 = sphi 0, %s300
      %s304 = sphi 0, %s303
      %s320 = sphi 0, %s304
      %s326 = sphi 0, %s328
      %s329 = sphi 0, %s326
      %s330 = sphi 0, %s329
      %s346 = sphi 0, %s330
      %s352 = sphi 0, %s354
      %s355 = sphi 0, %s352
      %s356 = sphi 0, %s355
      %s372 = sphi 0, %s356
      %s378 = sphi 0, %s380
      %s381 = sphi 0, %s378
      %s382 = sphi 0, %s381
      %s398 = sphi 0, %s382
      %s404 = sphi 0, %s406
      %s407 = sphi 0, %s404
      %s408 = sphi 0, %s407
      %s424 = sphi 0, %s408
      %s430 = sphi 0, %s432
      %s433 = sphi 0, %s430
      %s434 = sphi 0, %s433
      %s450 = sphi 0, %s434
      %s456 = sphi 0, %s458
      %s459 = sphi 0, %s456
      %s460 = sphi 0, %s459
      %s476 = sphi 0, %s460
    $region4: #{legal_model_forward.2} parent=1 // loop_header_branch
      %31 = sbr.rel (%p29) target = $region8
    $region5: #{legal_model_forward.2} parent=1 // loop_body
      %s33 = ssub.s32 %s28, 1
      %s34 = ssub.s32 %s28, 2
      %s41 = sadd.s32 1, %s36
      %p42 = scmp.ge.s32.totalorder %s41, 2
      %s43 = scalar_select %p42, 0, %s41
      %s44 = sadd.s32 1, %s35
      %s45 = scalar_select %p42, %s44, %s35
      %p46 = scmp.ge.s32.totalorder %s45, 2
      %s47 = scalar_select %p46, 0, %s45
      %s48 = ssub.s32 %s35, %s47
      %p49 = scmp.eq.s32.totalorder %s48, 0
      %s51 = sadd.s32 %s50, 1
      %s52 = scalar_select %p49, %s50, %s51
      %p55 = pneg %p49
      %p56 = scmp.eq.s32.totalorder %s28, 3
      %p57 = por %p55, %p56
      %p58 = scmp.ne.s32.totalorder %s50, %s53
      %p59 = scmp.eq.s32.totalorder %s28, 0
      %p60 = por %p58, %p59
      %p61 = scmp.ne.s32.totalorder %s50, %s53
      %p62 = scmp.eq.s32.totalorder %s33, 3
      %p63 = por %p61, %p62
      %p64 = scmp.ne.s32.totalorder %s53, %s54
      %p65 = scmp.eq.s32.totalorder %s33, 0
      %p66 = por %p64, %p65
      %p67 = scmp.ne.s32.totalorder %s53, %s54
      %p68 = scmp.eq.s32.totalorder %s34, 3
      %p69 = por %p67, %p68
      %p71 = scmp.ne.s32.totalorder %s54, %s70
      %p72 = scmp.eq.s32.totalorder %s34, 0
      %p73 = por %p71, %p72
      %s74 = ssub.s32 %s35, %s47
      %p75 = scmp.eq.s32.totalorder %s74, 0
      %s77 = sadd.s32 %s76, 1
      %s78 = scalar_select %p75, %s76, %s77
      %p81 = pneg %p75
      %p82 = scmp.eq.s32.totalorder %s28, 3
      %p83 = por %p81, %p82
      %p84 = scmp.ne.s32.totalorder %s76, %s79
      %p85 = scmp.eq.s32.totalorder %s28, 0
      %p86 = por %p84, %p85
      %p87 = scmp.ne.s32.totalorder %s76, %s79
      %p88 = scmp.eq.s32.totalorder %s33, 3
      %p89 = por %p87, %p88
      %p90 = scmp.ne.s32.totalorder %s79, %s80
      %p91 = scmp.eq.s32.totalorder %s33, 0
      %p92 = por %p90, %p91
      %p93 = scmp.ne.s32.totalorder %s79, %s80
      %p94 = scmp.eq.s32.totalorder %s34, 3
      %p95 = por %p93, %p94
      %p97 = scmp.ne.s32.totalorder %s80, %s96
      %p98 = scmp.eq.s32.totalorder %s34, 0
      %p99 = por %p97, %p98
      %s101 = sadd.s32 %s100, 1
      %p104 = scmp.eq.s32.totalorder %s28, 3
      %p105 = scmp.ne.s32.totalorder %s100, %s102
      %p106 = scmp.eq.s32.totalorder %s28, 0
      %p107 = por %p105, %p106
      %p108 = scmp.ne.s32.totalorder %s100, %s102
      %p109 = scmp.eq.s32.totalorder %s33, 3
      %p110 = por %p108, %p109
      %p111 = scmp.ne.s32.totalorder %s102, %s103
      %p112 = scmp.eq.s32.totalorder %s33, 0
      %p113 = por %p111, %p112
      %p114 = scmp.ne.s32.totalorder %s102, %s103
      %p115 = scmp.eq.s32.totalorder %s34, 3
      %p116 = por %p114, %p115
      %p118 = scmp.ne.s32.totalorder %s103, %s117
      %p119 = scmp.eq.s32.totalorder %s34, 0
      %p120 = por %p118, %p119
      %s122 = sadd.s32 %s121, 1
      %p125 = scmp.eq.s32.totalorder %s28, 3
      %p126 = scmp.ne.s32.totalorder %s121, %s123
      %p127 = scmp.eq.s32.totalorder %s28, 0
      %p128 = por %p126, %p127
      %p129 = scmp.ne.s32.totalorder %s121, %s123
      %p130 = scmp.eq.s32.totalorder %s33, 3
      %p131 = por %p129, %p130
      %p132 = scmp.ne.s32.totalorder %s123, %s124
      %p133 = scmp.eq.s32.totalorder %s33, 0
      %p134 = por %p132, %p133
      %p135 = scmp.ne.s32.totalorder %s123, %s124
      %p136 = scmp.eq.s32.totalorder %s34, 3
      %p137 = por %p135, %p136
      %p139 = scmp.ne.s32.totalorder %s124, %s138
      %p140 = scmp.eq.s32.totalorder %s34, 0
      %p141 = por %p139, %p140
      %s142 = ssub.s32 %s36, %s43
      %p143 = scmp.eq.s32.totalorder %s142, 0
      %s145 = sadd.s32 %s144, 1
      %s146 = scalar_select %p143, %s144, %s145
      %p149 = pneg %p143
      %p150 = scmp.eq.s32.totalorder %s28, 3
      %p151 = por %p149, %p150
      %p152 = scmp.ne.s32.totalorder %s144, %s147
      %p153 = scmp.eq.s32.totalorder %s28, 0
      %p154 = por %p152, %p153
      %p155 = scmp.ne.s32.totalorder %s144, %s147
      %p156 = scmp.eq.s32.totalorder %s33, 3
      %p157 = por %p155, %p156
      %p158 = scmp.ne.s32.totalorder %s147, %s148
      %p159 = scmp.eq.s32.totalorder %s33, 0
      %p160 = por %p158, %p159
      %p161 = scmp.ne.s32.totalorder %s147, %s148
      %p162 = scmp.eq.s32.totalorder %s34, 3
      %p163 = por %p161, %p162
      %p165 = scmp.ne.s32.totalorder %s148, %s164
      %p166 = scmp.eq.s32.totalorder %s34, 0
      %p167 = por %p165, %p166
      %s168 = ssub.s32 %s36, %s43
      %p169 = scmp.eq.s32.totalorder %s168, 0
      %s171 = sadd.s32 %s170, 1
      %s172 = scalar_select %p169, %s170, %s171
      %p175 = pneg %p169
      %p176 = scmp.eq.s32.totalorder %s28, 3
      %p177 = por %p175, %p176
      %p178 = scmp.ne.s32.totalorder %s170, %s173
      %p179 = scmp.eq.s32.totalorder %s28, 0
      %p180 = por %p178, %p179
      %p181 = scmp.ne.s32.totalorder %s170, %s173
      %p182 = scmp.eq.s32.totalorder %s33, 3
      %p183 = por %p181, %p182
      %p184 = scmp.ne.s32.totalorder %s173, %s174
      %p185 = scmp.eq.s32.totalorder %s33, 0
      %p186 = por %p184, %p185
      %p187 = scmp.ne.s32.totalorder %s173, %s174
      %p188 = scmp.eq.s32.totalorder %s34, 3
      %p189 = por %p187, %p188
      %p191 = scmp.ne.s32.totalorder %s174, %s190
      %p192 = scmp.eq.s32.totalorder %s34, 0
      %p193 = por %p191, %p192
      %s194 = ssub.s32 %s36, %s43
      %p195 = scmp.eq.s32.totalorder %s194, 0
      %s197 = sadd.s32 %s196, 1
      %s198 = scalar_select %p195, %s196, %s197
      %p201 = pneg %p195
      %p202 = scmp.eq.s32.totalorder %s28, 3
      %p203 = por %p201, %p202
      %p204 = scmp.ne.s32.totalorder %s196, %s199
      %p205 = scmp.eq.s32.totalorder %s28, 0
      %p206 = por %p204, %p205
      %p207 = scmp.ne.s32.totalorder %s196, %s199
      %p208 = scmp.eq.s32.totalorder %s33, 3
      %p209 = por %p207, %p208
      %p210 = scmp.ne.s32.totalorder %s199, %s200
      %p211 = scmp.eq.s32.totalorder %s33, 0
      %p212 = por %p210, %p211
      %p213 = scmp.ne.s32.totalorder %s199, %s200
      %p214 = scmp.eq.s32.totalorder %s34, 3
      %p215 = por %p213, %p214
      %p217 = scmp.ne.s32.totalorder %s200, %s216
      %p218 = scmp.eq.s32.totalorder %s34, 0
      %p219 = por %p217, %p218
      %s220 = ssub.s32 %s36, %s43
      %p221 = scmp.eq.s32.totalorder %s220, 0
      %s223 = sadd.s32 %s222, 1
      %s224 = scalar_select %p221, %s222, %s223
      %p227 = pneg %p221
      %p228 = scmp.eq.s32.totalorder %s28, 3
      %p229 = por %p227, %p228
      %p230 = scmp.ne.s32.totalorder %s222, %s225
      %p231 = scmp.eq.s32.totalorder %s28, 0
      %p232 = por %p230, %p231
      %p233 = scmp.ne.s32.totalorder %s222, %s225
      %p234 = scmp.eq.s32.totalorder %s33, 3
      %p235 = por %p233, %p234
      %p236 = scmp.ne.s32.totalorder %s225, %s226
      %p237 = scmp.eq.s32.totalorder %s33, 0
      %p238 = por %p236, %p237
      %p239 = scmp.ne.s32.totalorder %s225, %s226
      %p240 = scmp.eq.s32.totalorder %s34, 3
      %p241 = por %p239, %p240
      %p243 = scmp.ne.s32.totalorder %s226, %s242
      %p244 = scmp.eq.s32.totalorder %s34, 0
      %p245 = por %p243, %p244
      %s246 = ssub.s32 %s36, %s43
      %p247 = scmp.eq.s32.totalorder %s246, 0
      %s249 = sadd.s32 %s248, 1
      %s250 = scalar_select %p247, %s248, %s249
      %p253 = pneg %p247
      %p254 = scmp.eq.s32.totalorder %s28, 3
      %p255 = por %p253, %p254
      %p256 = scmp.ne.s32.totalorder %s248, %s251
      %p257 = scmp.eq.s32.totalorder %s28, 0
      %p258 = por %p256, %p257
      %p259 = scmp.ne.s32.totalorder %s248, %s251
      %p260 = scmp.eq.s32.totalorder %s33, 3
      %p261 = por %p259, %p260
      %p262 = scmp.ne.s32.totalorder %s251, %s252
      %p263 = scmp.eq.s32.totalorder %s33, 0
      %p264 = por %p262, %p263
      %p265 = scmp.ne.s32.totalorder %s251, %s252
      %p266 = scmp.eq.s32.totalorder %s34, 3
      %p267 = por %p265, %p266
      %p269 = scmp.ne.s32.totalorder %s252, %s268
      %p270 = scmp.eq.s32.totalorder %s34, 0
      %p271 = por %p269, %p270
      %s272 = ssub.s32 %s36, %s43
      %p273 = scmp.eq.s32.totalorder %s272, 0
      %s275 = sadd.s32 %s274, 1
      %s276 = scalar_select %p273, %s274, %s275
      %p279 = pneg %p273
      %p280 = scmp.eq.s32.totalorder %s28, 3
      %p281 = por %p279, %p280
      %p282 = scmp.ne.s32.totalorder %s274, %s277
      %p283 = scmp.eq.s32.totalorder %s28, 0
      %p284 = por %p282, %p283
      %p285 = scmp.ne.s32.totalorder %s274, %s277
      %p286 = scmp.eq.s32.totalorder %s33, 3
      %p287 = por %p285, %p286
      %p288 = scmp.ne.s32.totalorder %s277, %s278
      %p289 = scmp.eq.s32.totalorder %s33, 0
      %p290 = por %p288, %p289
      %p291 = scmp.ne.s32.totalorder %s277, %s278
      %p292 = scmp.eq.s32.totalorder %s34, 3
      %p293 = por %p291, %p292
      %p295 = scmp.ne.s32.totalorder %s278, %s294
      %p296 = scmp.eq.s32.totalorder %s34, 0
      %p297 = por %p295, %p296
      %s298 = ssub.s32 %s36, %s43
      %p299 = scmp.eq.s32.totalorder %s298, 0
      %s301 = sadd.s32 %s300, 1
      %s302 = scalar_select %p299, %s300, %s301
      %p305 = pneg %p299
      %p306 = scmp.eq.s32.totalorder %s28, 3
      %p307 = por %p305, %p306
      %p308 = scmp.ne.s32.totalorder %s300, %s303
      %p309 = scmp.eq.s32.totalorder %s28, 0
      %p310 = por %p308, %p309
      %p311 = scmp.ne.s32.totalorder %s300, %s303
      %p312 = scmp.eq.s32.totalorder %s33, 3
      %p313 = por %p311, %p312
      %p314 = scmp.ne.s32.totalorder %s303, %s304
      %p315 = scmp.eq.s32.totalorder %s33, 0
      %p316 = por %p314, %p315
      %p317 = scmp.ne.s32.totalorder %s303, %s304
      %p318 = scmp.eq.s32.totalorder %s34, 3
      %p319 = por %p317, %p318
      %p321 = scmp.ne.s32.totalorder %s304, %s320
      %p322 = scmp.eq.s32.totalorder %s34, 0
      %p323 = por %p321, %p322
      %s324 = ssub.s32 %s36, %s43
      %p325 = scmp.eq.s32.totalorder %s324, 0
      %s327 = sadd.s32 %s326, 1
      %s328 = scalar_select %p325, %s326, %s327
      %p331 = pneg %p325
      %p332 = scmp.eq.s32.totalorder %s28, 3
      %p333 = por %p331, %p332
      %p334 = scmp.ne.s32.totalorder %s326, %s329
      %p335 = scmp.eq.s32.totalorder %s28, 0
      %p336 = por %p334, %p335
      %p337 = scmp.ne.s32.totalorder %s326, %s329
      %p338 = scmp.eq.s32.totalorder %s33, 3
      %p339 = por %p337, %p338
      %p340 = scmp.ne.s32.totalorder %s329, %s330
      %p341 = scmp.eq.s32.totalorder %s33, 0
      %p342 = por %p340, %p341
      %p343 = scmp.ne.s32.totalorder %s329, %s330
      %p344 = scmp.eq.s32.totalorder %s34, 3
      %p345 = por %p343, %p344
      %p347 = scmp.ne.s32.totalorder %s330, %s346
      %p348 = scmp.eq.s32.totalorder %s34, 0
      %p349 = por %p347, %p348
      %s350 = ssub.s32 %s36, %s43
      %p351 = scmp.eq.s32.totalorder %s350, 0
      %s353 = sadd.s32 %s352, 1
      %s354 = scalar_select %p351, %s352, %s353
      %p357 = pneg %p351
      %p358 = scmp.eq.s32.totalorder %s28, 3
      %p359 = por %p357, %p358
      %p360 = scmp.ne.s32.totalorder %s352, %s355
      %p361 = scmp.eq.s32.totalorder %s28, 0
      %p362 = por %p360, %p361
      %p363 = scmp.ne.s32.totalorder %s352, %s355
      %p364 = scmp.eq.s32.totalorder %s33, 3
      %p365 = por %p363, %p364
      %p366 = scmp.ne.s32.totalorder %s355, %s356
      %p367 = scmp.eq.s32.totalorder %s33, 0
      %p368 = por %p366, %p367
      %p369 = scmp.ne.s32.totalorder %s355, %s356
      %p370 = scmp.eq.s32.totalorder %s34, 3
      %p371 = por %p369, %p370
      %p373 = scmp.ne.s32.totalorder %s356, %s372
      %p374 = scmp.eq.s32.totalorder %s34, 0
      %p375 = por %p373, %p374
      %s376 = ssub.s32 %s36, %s43
      %p377 = scmp.eq.s32.totalorder %s376, 0
      %s379 = sadd.s32 %s378, 1
      %s380 = scalar_select %p377, %s378, %s379
      %p383 = pneg %p377
      %p384 = scmp.eq.s32.totalorder %s28, 3
      %p385 = por %p383, %p384
      %p386 = scmp.ne.s32.totalorder %s378, %s381
      %p387 = scmp.eq.s32.totalorder %s28, 0
      %p388 = por %p386, %p387
      %p389 = scmp.ne.s32.totalorder %s378, %s381
      %p390 = scmp.eq.s32.totalorder %s33, 3
      %p391 = por %p389, %p390
      %p392 = scmp.ne.s32.totalorder %s381, %s382
      %p393 = scmp.eq.s32.totalorder %s33, 0
      %p394 = por %p392, %p393
      %p395 = scmp.ne.s32.totalorder %s381, %s382
      %p396 = scmp.eq.s32.totalorder %s34, 3
      %p397 = por %p395, %p396
      %p399 = scmp.ne.s32.totalorder %s382, %s398
      %p400 = scmp.eq.s32.totalorder %s34, 0
      %p401 = por %p399, %p400
      %s402 = ssub.s32 %s36, %s43
      %p403 = scmp.eq.s32.totalorder %s402, 0
      %s405 = sadd.s32 %s404, 1
      %s406 = scalar_select %p403, %s404, %s405
      %p409 = pneg %p403
      %p410 = scmp.eq.s32.totalorder %s28, 3
      %p411 = por %p409, %p410
      %p412 = scmp.ne.s32.totalorder %s404, %s407
      %p413 = scmp.eq.s32.totalorder %s28, 0
      %p414 = por %p412, %p413
      %p415 = scmp.ne.s32.totalorder %s404, %s407
      %p416 = scmp.eq.s32.totalorder %s33, 3
      %p417 = por %p415, %p416
      %p418 = scmp.ne.s32.totalorder %s407, %s408
      %p419 = scmp.eq.s32.totalorder %s33, 0
      %p420 = por %p418, %p419
      %p421 = scmp.ne.s32.totalorder %s407, %s408
      %p422 = scmp.eq.s32.totalorder %s34, 3
      %p423 = por %p421, %p422
      %p425 = scmp.ne.s32.totalorder %s408, %s424
      %p426 = scmp.eq.s32.totalorder %s34, 0
      %p427 = por %p425, %p426
      %s428 = ssub.s32 %s36, %s43
      %p429 = scmp.eq.s32.totalorder %s428, 0
      %s431 = sadd.s32 %s430, 1
      %s432 = scalar_select %p429, %s430, %s431
      %p435 = pneg %p429
      %p436 = scmp.eq.s32.totalorder %s28, 3
      %p437 = por %p435, %p436
      %p438 = scmp.ne.s32.totalorder %s430, %s433
      %p439 = scmp.eq.s32.totalorder %s28, 0
      %p440 = por %p438, %p439
      %p441 = scmp.ne.s32.totalorder %s430, %s433
      %p442 = scmp.eq.s32.totalorder %s33, 3
      %p443 = por %p441, %p442
      %p444 = scmp.ne.s32.totalorder %s433, %s434
      %p445 = scmp.eq.s32.totalorder %s33, 0
      %p446 = por %p444, %p445
      %p447 = scmp.ne.s32.totalorder %s433, %s434
      %p448 = scmp.eq.s32.totalorder %s34, 3
      %p449 = por %p447, %p448
      %p451 = scmp.ne.s32.totalorder %s434, %s450
      %p452 = scmp.eq.s32.totalorder %s34, 0
      %p453 = por %p451, %p452
      %s454 = ssub.s32 %s35, %s47
      %p455 = scmp.eq.s32.totalorder %s454, 0
      %s457 = sadd.s32 %s456, 1
      %s458 = scalar_select %p455, %s456, %s457
      %p461 = pneg %p455
      %p462 = scmp.eq.s32.totalorder %s28, 3
      %p463 = por %p461, %p462
      %p464 = scmp.ne.s32.totalorder %s456, %s459
      %p465 = scmp.eq.s32.totalorder %s28, 0
      %p466 = por %p464, %p465
      %p467 = scmp.ne.s32.totalorder %s456, %s459
      %p468 = scmp.eq.s32.totalorder %s33, 3
      %p469 = por %p467, %p468
      %p470 = scmp.ne.s32.totalorder %s459, %s460
      %p471 = scmp.eq.s32.totalorder %s33, 0
      %p472 = por %p470, %p471
      %p473 = scmp.ne.s32.totalorder %s459, %s460
      %p474 = scmp.eq.s32.totalorder %s34, 3
      %p475 = por %p473, %p474
      %p477 = scmp.ne.s32.totalorder %s460, %s476
      %p478 = scmp.eq.s32.totalorder %s34, 0
      %p479 = por %p477, %p478
      %p480 = scmp.le.s32.totalorder 1, %s28
      %p481 = scmp.lt.s32.totalorder %s28, 5
      %p482 = pnand %p480, %p481
      %p483 = pneg %p482
      // Predicated region
      $region9: #{legal_model_forward.2} parent=5 // pred_check
        _
      $region10: #{legal_model_forward.2} parent=5 // pred_check_branch
        %485 = sbr.rel (%p482) target = $region12
      $region11: #{legal_model_forward.2} parent=5 // pred_region
        %s486 = ssub.s32 %s28, 1
        // Predicated region
        $region13: #{legal_model_forward.2} parent=11 // pred_check
          %p487 = pneg %p113
        $region14: #{legal_model_forward.2} parent=11 // pred_check_branch
          %489 = sbr.rel (%p487) target = $region16
        $region15: #{legal_model_forward.2} parent=11 // pred_region
          _
        $region16: #{legal_model_forward.2} parent=11 // pred_fallthru
          _
        // Predicated region
        $region17: #{legal_model_forward.2} parent=11 // pred_check
          %p490 = pneg %p134
        $region18: #{legal_model_forward.2} parent=11 // pred_check_branch
          %492 = sbr.rel (%p490) target = $region20
        $region19: #{legal_model_forward.2} parent=11 // pred_region
          _
        $region20: #{legal_model_forward.2} parent=11 // pred_fallthru
          _
      $region12: #{legal_model_forward.2} parent=5 // pred_fallthru
        _
      %p493 = scmp.lt.s32.totalorder %s28, 4
      // Predicated region
      $region21: #{legal_model_forward.2} parent=5 // pred_check
        %p494 = pneg %p493
      $region22: #{legal_model_forward.2} parent=5 // pred_check_branch
        %496 = sbr.rel (%p494) target = $region24
      $region23: #{legal_model_forward.2} parent=5 // pred_region
        // Predicated region
        $region25: #{legal_model_forward.2} parent=23 // pred_check
          %p497 = pneg %p60
        $region26: #{legal_model_forward.2} parent=23 // pred_check_branch
          %499 = sbr.rel (%p497) target = $region28
        $region27: #{legal_model_forward.2} parent=23 // pred_region
          %s500 = smul.u32 2, %s35
          %p501 = scmp.lt.s32.totalorder %s500, 3
          %s502 = scalar_select %p501, %s500, 3
          %s503 = smul.addr %s502, 8
          %s504 = scalar_lea.vmem %s0, %s503
          %s505 = smul.u32 2, %s35
        $region28: #{legal_model_forward.2} parent=23 // pred_fallthru
          _
        // Predicated region
        $region29: #{legal_model_forward.2} parent=23 // pred_check
          %p506 = pneg %p86
        $region30: #{legal_model_forward.2} parent=23 // pred_check_branch
          %508 = sbr.rel (%p506) target = $region32
        $region31: #{legal_model_forward.2} parent=23 // pred_region
          %p509 = scmp.lt.s32.totalorder %s35, 1
          %s510 = scalar_select %p509, %s35, 1
          %s511 = scalar_lea.vmem %s1, %s510
        $region32: #{legal_model_forward.2} parent=23 // pred_fallthru
          _
        // Predicated region
        $region33: #{legal_model_forward.2} parent=23 // pred_check
          %p512 = pneg %p154
        $region34: #{legal_model_forward.2} parent=23 // pred_check_branch
          %514 = sbr.rel (%p512) target = $region36
        $region35: #{legal_model_forward.2} parent=23 // pred_region
          %p515 = scmp.lt.s32.totalorder %s36, 1
          %s516 = scalar_select %p515, %s36, 1
          %s517 = smul.addr %s516, 48
          %s518 = smul.addr %s517, 4
          %s519 = scalar_lea.vmem %s4, %s518
        $region36: #{legal_model_forward.2} parent=23 // pred_fallthru
          _
        // Predicated region
        $region37: #{legal_model_forward.2} parent=23 // pred_check
          %p520 = pneg %p180
        $region38: #{legal_model_forward.2} parent=23 // pred_check_branch
          %522 = sbr.rel (%p520) target = $region40
        $region39: #{legal_model_forward.2} parent=23 // pred_region
          %p523 = scmp.lt.s32.totalorder %s36, 1
          %s524 = scalar_select %p523, %s36, 1
          %s525 = smul.addr %s524, 3
          %s526 = scalar_lea.vmem %s5, %s525
        $region40: #{legal_model_forward.2} parent=23 // pred_fallthru
          _
        // Predicated region
        $region41: #{legal_model_forward.2} parent=23 // pred_check
          %p527 = pneg %p206
        $region42: #{legal_model_forward.2} parent=23 // pred_check_branch
          %529 = sbr.rel (%p527) target = $region44
        $region43: #{legal_model_forward.2} parent=23 // pred_region
          %s530 = sand.u32 %s196, 1
          %s531 = scalar_lea.sflag [#allocation4], %s530
          %s532 = sand.u32 %s196, 1
          %s533 = smul.addr %s532, 64
          %s534 = scalar_lea.vmem [#allocation3], %s533
          %s536 = ssub.s32 1024, 1024
          %537 = vsyncadd %s531, %s536
          %s538 = smul.addr %s36, 16
          %s539 = smul.addr %s538, 64
          %s540 = scalar_lea.hbm %s6, %s539
          %s541 = sshll.u32 %s534, 4
          %s542 = int_to_ptr.vmem [resolvable:$true] %s541
          %547 = dma.hbm_to_vmem [thread:$0]  %s540, 1024, %s542, %s531, 64, 64, 4
        $region44: #{legal_model_forward.2} parent=23 // pred_fallthru
          _
        // Predicated region
        $region45: #{legal_model_forward.2} parent=23 // pred_check
          %p548 = pneg %p232
        $region46: #{legal_model_forward.2} parent=23 // pred_check_branch
          %550 = sbr.rel (%p548) target = $region48
        $region47: #{legal_model_forward.2} parent=23 // pred_region
          %p551 = scmp.lt.s32.totalorder %s36, 1
          %s552 = scalar_select %p551, %s36, 1
          %s553 = scalar_lea.vmem %s7, %s552
        $region48: #{legal_model_forward.2} parent=23 // pred_fallthru
          _
        // Predicated region
        $region49: #{legal_model_forward.2} parent=23 // pred_check
          %p554 = pneg %p258
        $region50: #{legal_model_forward.2} parent=23 // pred_check_branch
          %556 = sbr.rel (%p554) target = $region52
        $region51: #{legal_model_forward.2} parent=23 // pred_region
          %p557 = scmp.lt.s32.totalorder %s36, 1
          %s558 = scalar_select %p557, %s36, 1
          %s559 = scalar_lea.vmem %s8, %s558
        $region52: #{legal_model_forward.2} parent=23 // pred_fallthru
          _
        // Predicated region
        $region53: #{legal_model_forward.2} parent=23 // pred_check
          %p560 = pneg %p284
        $region54: #{legal_model_forward.2} parent=23 // pred_check_branch
          %562 = sbr.rel (%p560) target = $region56
        $region55: #{legal_model_forward.2} parent=23 // pred_region
          %p563 = scmp.lt.s32.totalorder %s36, 1
          %s564 = scalar_select %p563, %s36, 1
          %s565 = scalar_lea.vmem %s9, %s564
        $region56: #{legal_model_forward.2} parent=23 // pred_fallthru
          _
        // Predicated region
        $region57: #{legal_model_forward.2} parent=23 // pred_check
          %p566 = pneg %p310
        $region58: #{legal_model_forward.2} parent=23 // pred_check_branch
          %568 = sbr.rel (%p566) target = $region60
        $region59: #{legal_model_forward.2} parent=23 // pred_region
          %s569 = sand.u32 %s28, 1
          %s570 = scalar_lea.sflag [#allocation6], %s569
          %s571 = sand.u32 %s300, 1
          %s572 = smul.addr %s571, 256
          %s573 = scalar_lea.vmem [#allocation5], %s572
          %s575 = ssub.s32 4096, 4096
          %576 = vsyncadd %s570, %s575
          %s577 = smul.addr %s36, 64
          %s578 = smul.addr %s577, 64
          %s579 = scalar_lea.hbm %s10, %s578
          %s580 = sshll.u32 %s573, 4
          %s581 = int_to_ptr.vmem [resolvable:$true] %s580
          %586 = dma.hbm_to_vmem [thread:$0]  %s579, 4096, %s581, %s570, 256, 256, 16
        $region60: #{legal_model_forward.2} parent=23 // pred_fallthru
          _
        // Predicated region
        $region61: #{legal_model_forward.2} parent=23 // pred_check
          %p587 = pneg %p336
        $region62: #{legal_model_forward.2} parent=23 // pred_check_branch
          %589 = sbr.rel (%p587) target = $region64
        $region63: #{legal_model_forward.2} parent=23 // pred_region
          %p590 = scmp.lt.s32.totalorder %s36, 1
          %s591 = scalar_select %p590, %s36, 1
          %s592 = smul.addr %s591, 4
          %s593 = scalar_lea.vmem %s11, %s592
        $region64: #{legal_model_forward.2} parent=23 // pred_fallthru
          _
        // Predicated region
        $region65: #{legal_model_forward.2} parent=23 // pred_check
          %p594 = pneg %p362
        $region66: #{legal_model_forward.2} parent=23 // pred_check_branch
          %596 = sbr.rel (%p594) target = $region68
        $region67: #{legal_model_forward.2} parent=23 // pred_region
          %s597 = sand.u32 %s28, 1
          %s598 = scalar_lea.sflag [#allocation6], %s597
          %s599 = sand.u32 %s352, 1
          %s600 = smul.addr %s599, 256
          %s601 = scalar_lea.vmem [#allocation7], %s600
          %s603 = ssub.s32 4096, 4096
          %604 = vsyncadd %s598, %s603
          %s605 = smul.addr %s36, 64
          %s606 = smul.addr %s605, 64
          %s607 = scalar_lea.hbm %s12, %s606
          %s608 = sshll.u32 %s601, 4
          %s609 = int_to_ptr.vmem [resolvable:$true] %s608
          %614 = dma.hbm_to_vmem [thread:$0]  %s607, 4096, %s609, %s598, 64, 64, 4
        $region68: #{legal_model_forward.2} parent=23 // pred_fallthru
          _
        // Predicated region
        $region69: #{legal_model_forward.2} parent=23 // pred_check
          %p615 = pneg %p388
        $region70: #{legal_model_forward.2} parent=23 // pred_check_branch
          %617 = sbr.rel (%p615) target = $region72
        $region71: #{legal_model_forward.2} parent=23 // pred_region
          %p618 = scmp.lt.s32.totalorder %s36, 1
          %s619 = scalar_select %p618, %s36, 1
          %s620 = scalar_lea.vmem %s13, %s619
        $region72: #{legal_model_forward.2} parent=23 // pred_fallthru
          _
        // Predicated region
        $region73: #{legal_model_forward.2} parent=23 // pred_check
          %p621 = pneg %p414
        $region74: #{legal_model_forward.2} parent=23 // pred_check_branch
          %623 = sbr.rel (%p621) target = $region76
        $region75: #{legal_model_forward.2} parent=23 // pred_region
          %p624 = scmp.lt.s32.totalorder %s36, 1
          %s625 = scalar_select %p624, %s36, 1
          %s626 = scalar_lea.vmem %s14, %s625
        $region76: #{legal_model_forward.2} parent=23 // pred_fallthru
          _
        // Predicated region
        $region77: #{legal_model_forward.2} parent=23 // pred_check
          %p627 = pneg %p440
        $region78: #{legal_model_forward.2} parent=23 // pred_check_branch
          %629 = sbr.rel (%p627) target = $region80
        $region79: #{legal_model_forward.2} parent=23 // pred_region
          %p630 = scmp.lt.s32.totalorder %s36, 1
          %s631 = scalar_select %p630, %s36, 1
          %s632 = scalar_lea.vmem %s15, %s631
        $region80: #{legal_model_forward.2} parent=23 // pred_fallthru
          _
      $region24: #{legal_model_forward.2} parent=5 // pred_fallthru
        _
      %p633 = scmp.le.s32.totalorder 1, %s28
      %p634 = scmp.lt.s32.totalorder %s28, 5
      %p635 = pnand %p633, %p634
      %p636 = pneg %p635
      // Predicated region
      $region81: #{legal_model_forward.2} parent=5 // pred_check
        _
      $region82: #{legal_model_forward.2} parent=5 // pred_check_branch
        %638 = sbr.rel (%p635) target = $region84
      $region83: #{legal_model_forward.2} parent=5 // pred_region
        %s639 = ssub.s32 %s28, 1
        %s640 = sand.u32 %s199, 1
        %s641 = scalar_lea.sflag [#allocation4], %s640
        %s642 = sand.u32 %s199, 1
        %s643 = smul.addr %s642, 64
        %s644 = scalar_lea.vmem [#allocation3], %s643
        // Predicated region
        $region85: #{legal_model_forward.2} parent=83 // pred_check
          %p645 = pneg %p212
        $region86: #{legal_model_forward.2} parent=83 // pred_check_branch
          %647 = sbr.rel (%p645) target = $region88
        $region87: #{legal_model_forward.2} parent=83 // pred_region
          %648 = dma.done %s641, 1024
        $region88: #{legal_model_forward.2} parent=83 // pred_fallthru
          _
        %s649 = sand.u32 %s33, 1
        %s650 = scalar_lea.sflag [#allocation6], %s649
        %s651 = sand.u32 %s303, 1
        %s652 = smul.addr %s651, 256
        %s653 = scalar_lea.vmem [#allocation5], %s652
        // Predicated region
        $region89: #{legal_model_forward.2} parent=83 // pred_check
          %p654 = pneg %p316
        $region90: #{legal_model_forward.2} parent=83 // pred_check_branch
          %656 = sbr.rel (%p654) target = $region92
        $region91: #{legal_model_forward.2} parent=83 // pred_region
          %657 = dma.done %s650, 4096
        $region92: #{legal_model_forward.2} parent=83 // pred_fallthru
          _
        %s658 = sand.u32 %s33, 1
        %s659 = scalar_lea.sflag [#allocation6], %s658
        %s660 = sand.u32 %s355, 1
        %s661 = smul.addr %s660, 256
        %s662 = scalar_lea.vmem [#allocation7], %s661
        // Predicated region
        $region93: #{legal_model_forward.2} parent=83 // pred_check
          %p663 = pneg %p368
        $region94: #{legal_model_forward.2} parent=83 // pred_check_branch
          %665 = sbr.rel (%p663) target = $region96
        $region95: #{legal_model_forward.2} parent=83 // pred_region
          %666 = dma.done %s659, 4096
        $region96: #{legal_model_forward.2} parent=83 // pred_fallthru
          _
        %s667 = smul.u32 2, %s37
        %p668 = scmp.lt.s32.totalorder %s667, 3
        %s669 = scalar_select %p668, %s667, 3
        %s670 = smul.addr %s669, 8
        %s671 = scalar_lea.vmem %s0, %s670
        %p672 = pneg %p66
        %p673 = pneg %p63
        %p674 = scmp.lt.s32.totalorder %s37, 1
        %s675 = scalar_select %p674, %s37, 1
        %s676 = scalar_lea.vmem %s1, %s675
        %p677 = pneg %p92
        %p678 = pneg %p89
        %p679 = pneg %p113
        %p680 = pneg %p110
        %p681 = pneg %p134
        %p682 = pneg %p131
        %p683 = scmp.lt.s32.totalorder %s38, 1
        %s684 = scalar_select %p683, %s38, 1
        %s685 = smul.addr %s684, 48
        %s686 = smul.addr %s685, 4
        %s687 = scalar_lea.vmem %s4, %s686
        %p688 = pneg %p160
        %p689 = pneg %p157
        %p690 = scmp.lt.s32.totalorder %s38, 1
        %s691 = scalar_select %p690, %s38, 1
        %s692 = smul.addr %s691, 3
        %s693 = scalar_lea.vmem %s5, %s692
        %p694 = pneg %p186
        %p695 = pneg %p183
        %s696 = sand.u32 %s199, 1
        %s697 = scalar_lea.sflag [#allocation4], %s696
        %s698 = sand.u32 %s199, 1
        %s699 = smul.addr %s698, 64
        %s700 = scalar_lea.vmem [#allocation3], %s699
        %p701 = pneg %p212
        %p702 = pneg %p209
        %p703 = scmp.lt.s32.totalorder %s38, 1
        %s704 = scalar_select %p703, %s38, 1
        %s705 = scalar_lea.vmem %s7, %s704
        %p706 = pneg %p238
        %p707 = pneg %p235
        %p708 = scmp.lt.s32.totalorder %s38, 1
        %s709 = scalar_select %p708, %s38, 1
        %s710 = scalar_lea.vmem %s8, %s709
        %p711 = pneg %p264
        %p712 = pneg %p261
        %p713 = scmp.lt.s32.totalorder %s38, 1
        %s714 = scalar_select %p713, %s38, 1
        %s715 = scalar_lea.vmem %s9, %s714
        %p716 = pneg %p290
        %p717 = pneg %p287
        %s718 = sand.u32 %s33, 1
        %s719 = scalar_lea.sflag [#allocation6], %s718
        %s720 = sand.u32 %s303, 1
        %s721 = smul.addr %s720, 256
        %s722 = scalar_lea.vmem [#allocation5], %s721
        %p723 = pneg %p316
        %p724 = pneg %p313
        %p725 = scmp.lt.s32.totalorder %s38, 1
        %s726 = scalar_select %p725, %s38, 1
        %s727 = smul.addr %s726, 4
        %s728 = scalar_lea.vmem %s11, %s727
        %p729 = pneg %p342
        %p730 = pneg %p339
        %s731 = sand.u32 %s33, 1
        %s732 = scalar_lea.sflag [#allocation6], %s731
        %s733 = sand.u32 %s355, 1
        %s734 = smul.addr %s733, 256
        %s735 = scalar_lea.vmem [#allocation7], %s734
        %p736 = pneg %p368
        %p737 = pneg %p365
        %p738 = scmp.lt.s32.totalorder %s38, 1
        %s739 = scalar_select %p738, %s38, 1
        %s740 = scalar_lea.vmem %s13, %s739
        %p741 = pneg %p394
        %p742 = pneg %p391
        %p743 = scmp.lt.s32.totalorder %s38, 1
        %s744 = scalar_select %p743, %s38, 1
        %s745 = scalar_lea.vmem %s14, %s744
        %p746 = pneg %p420
        %p747 = pneg %p417
        %p748 = scmp.lt.s32.totalorder %s38, 1
        %s749 = scalar_select %p748, %s38, 1
        %s750 = scalar_lea.vmem %s15, %s749
        %p751 = pneg %p446
        %p752 = pneg %p443
        %p753 = pneg %p472
        %p754 = pneg %p469
        %s755 = smul.u32 2, %s37
        %p756 = scmp.lt.s32.totalorder %s755, 3
        %s757 = scalar_select %p756, %s755, 3
        %s758 = smul.addr %s757, 8
        %s759 = scalar_lea.vmem %s16, %s758
        %s760 = smul.u32 2, %s37
        %p761 = scmp.lt.s32.totalorder %s760, 3
        %s762 = scalar_select %p761, %s760, 3
        %s763 = smul.addr %s762, 8
        %s764 = scalar_lea.vmem %s0, %s763
        %s765 = smul.u32 2, %s37
        %p766 = scmp.lt.s32.totalorder %s37, 1
        %s767 = scalar_select %p766, %s37, 1
        %s768 = scalar_lea.vmem %s1, %s767
        %p769 = scmp.lt.s32.totalorder %s38, 1
        %s770 = scalar_select %p769, %s38, 1
        %s771 = smul.addr %s770, 48
        %s772 = smul.addr %s771, 4
        %s773 = scalar_lea.vmem %s4, %s772
        %p774 = scmp.lt.s32.totalorder %s38, 1
        %s775 = scalar_select %p774, %s38, 1
        %s776 = smul.addr %s775, 3
        %s777 = scalar_lea.vmem %s5, %s776
        %p778 = scmp.lt.s32.totalorder %s38, 1
        %s779 = scalar_select %p778, %s38, 1
        %s780 = scalar_lea.vmem %s7, %s779
        %p781 = scmp.lt.s32.totalorder %s38, 1
        %s782 = scalar_select %p781, %s38, 1
        %s783 = scalar_lea.vmem %s8, %s782
        %p784 = scmp.lt.s32.totalorder %s38, 1
        %s785 = scalar_select %p784, %s38, 1
        %s786 = scalar_lea.vmem %s9, %s785
        %p787 = scmp.lt.s32.totalorder %s38, 1
        %s788 = scalar_select %p787, %s38, 1
        %s789 = smul.addr %s788, 4
        %s790 = scalar_lea.vmem %s11, %s789
        %p791 = scmp.lt.s32.totalorder %s38, 1
        %s792 = scalar_select %p791, %s38, 1
        %s793 = scalar_lea.vmem %s13, %s792
        %p794 = scmp.lt.s32.totalorder %s38, 1
        %s795 = scalar_select %p794, %s38, 1
        %s796 = scalar_lea.vmem %s14, %s795
        %p797 = scmp.lt.s32.totalorder %s38, 1
        %s798 = scalar_select %p797, %s38, 1
        %s799 = scalar_lea.vmem %s15, %s798
        %s800 = smul.u32 2, %s37
        %p801 = scmp.lt.s32.totalorder %s800, 3
        %s802 = scalar_select %p801, %s800, 3
        %s803 = smul.addr %s802, 8
        %s804 = scalar_lea.vmem %s16, %s803
        %s805 = smul.u32 2, %s37
        %p807 = scmp.eq.s32.totalorder %s38, 0
        // Predicated region
        $region97: #{legal_model_forward.2} parent=83 // pred_check
          %p808 = pneg %p807
        $region98: #{legal_model_forward.2} parent=83 // pred_check_branch
          %810 = sbr.rel (%p808) target = $region100
        $region99: #{legal_model_forward.2} parent=83 // pred_region
          %v811 = vld [vmem:[%s764] sm:$0xff]
          %v812 = vld [vmem:[%s764 + $0x8] sm:$0xff]
          %v813 = vld [vmem:[%s2] sm:$0x1]
          %v814 = vld [vmem:[%s3] sm:$0x1]
          %815 = vadd.xlane.f32.xlu0 %v811
          %v816 = vpop.xlane.xlu0 %815
          %817 = vadd.xlane.f32.xlu0 %v812
          %v818 = vpop.xlane.xlu0 %817
          %v819 = vrcp.pop 128.0
          %v820 = vmul.f32 %v816, %v819
          %v821 = vmul.f32 %v818, %v819
          %v822 = vsub.f32 %v811, %v820
          %v823 = vsub.f32 %v812, %v821
          %v824 = vmul.f32 %v822, %v822
          %v825 = vmul.f32 %v823, %v823
          %826 = vadd.xlane.f32.xlu0 %v824
          %v827 = vpop.xlane.xlu0 %826
          %828 = vadd.xlane.f32.xlu0 %v825
          %v829 = vpop.xlane.xlu0 %828
          %v830 = vmul.f32 %v827, %v819
          %v831 = vmul.f32 %v829, %v819
          %v832 = vadd.f32 %v830, 1e-12
          %v833 = vadd.f32 %v831, 1e-12
          %v834 = vrsqrt.pop %v832
          %v835 = vrsqrt.pop %v833
          %v836 = vmul.f32 %v822, %v834
          %v837 = vmul.f32 %v823, %v835
          %v839 = vlaneseq
          %v840 = vshrl.u32 %v839, 7
          %v841 = vsub.s32 0, %v840
          %v842 = vrot.slane %v813, %v841
          %v844 = vmul.f32 %v836, %v842
          %v845 = vmul.f32 %v837, %v842
          %v847 = vlaneseq
          %v848 = vshrl.u32 %v847, 7
          %v849 = vsub.s32 0, %v848
          %v850 = vrot.slane %v814, %v849
          %v852 = vadd.f32 %v844, %v850
          %v853 = vadd.f32 %v845, %v850
          %854 = vst [vmem:[#allocation2] sm:$0xff] %v852
          %855 = vst [vmem:[#allocation2 + $0x8] sm:$0xff] %v853
        $region100: #{legal_model_forward.2} parent=83 // pred_fallthru
          _
        %v856 = vld [vmem:[#allocation2] sm:$0xff]
        %v857 = vld [vmem:[#allocation2 + $0x8] sm:$0xff]
        %v858 = vld [vmem:[%s768] sm:$0x1]
        %v859 = vpack.c.bf16 %v857, %v856
        %v860 = vld [vmem:[%s773] sm:$0xff]
        %v861 = vld [vmem:[%s773 + $0x8] sm:$0xf]
        %v862 = vld [vmem:[%s773 + $0xc] sm:$0xff]
        %v863 = vld [vmem:[%s773 + $0x14] sm:$0xf]
        %v864 = vld [vmem:[%s773 + $0x18] sm:$0xff]
        %v865 = vld [vmem:[%s773 + $0x20] sm:$0xf]
        %v866 = vld [vmem:[%s773 + $0x24] sm:$0xff]
        %v867 = vld [vmem:[%s773 + $0x2c] sm:$0xf]
        %v868 = vld [vmem:[%s773 + $0x30] sm:$0xff]
        %v869 = vld [vmem:[%s773 + $0x38] sm:$0xf]
        %v870 = vld [vmem:[%s773 + $0x3c] sm:$0xff]
        %v871 = vld [vmem:[%s773 + $0x44] sm:$0xf]
        %v872 = vld [vmem:[%s773 + $0x48] sm:$0xff]
        %v873 = vld [vmem:[%s773 + $0x50] sm:$0xf]
        %v874 = vld [vmem:[%s773 + $0x54] sm:$0xff]
        %v875 = vld [vmem:[%s773 + $0x5c] sm:$0xf]
        %v876 = vld [vmem:[%s773 + $0x60] sm:$0xff]
        %v877 = vld [vmem:[%s773 + $0x68] sm:$0xf]
        %v878 = vld [vmem:[%s773 + $0x6c] sm:$0xff]
        %v879 = vld [vmem:[%s773 + $0x74] sm:$0xf]
        %v880 = vld [vmem:[%s773 + $0x78] sm:$0xff]
        %v881 = vld [vmem:[%s773 + $0x80] sm:$0xf]
        %v882 = vld [vmem:[%s773 + $0x84] sm:$0xff]
        %v883 = vld [vmem:[%s773 + $0x8c] sm:$0xf]
        %v884 = vld [vmem:[%s773 + $0x90] sm:$0xff]
        %v885 = vld [vmem:[%s773 + $0x98] sm:$0xf]
        %v886 = vld [vmem:[%s773 + $0x9c] sm:$0xff]
        %v887 = vld [vmem:[%s773 + $0xa4] sm:$0xf]
        %v888 = vld [vmem:[%s773 + $0xa8] sm:$0xff]
        %v889 = vld [vmem:[%s773 + $0xb0] sm:$0xf]
        %v890 = vld [vmem:[%s773 + $0xb4] sm:$0xff]
        %v891 = vld [vmem:[%s773 + $0xbc] sm:$0xf]
        %v892 = vld [vmem:[%s777] sm:$0x7]
        %v894 = vlaneseq
        %v895 = vshrl.u32 %v894, 7
        %v896 = vsub.s32 0, %v895
        %v897 = vrot.slane %v892, %v896
        %v898 = vlaneseq
        %v899 = vshrl.u32 %v898, 7
        %v900 = vsub.s32 1, %v899
        %v901 = vrot.slane %v892, %v900
        %v902 = vlaneseq
        %v903 = vshrl.u32 %v902, 7
        %v904 = vsub.s32 2, %v903
        %v905 = vrot.slane %v892, %v904
        %v941 = vunpack.c.l.b16 %v860
        %v942 = vunpack.c.h.b16 %v860
        %v943 = vunpack.c.l.b16 %v861
        %v944 = vunpack.c.l.b16 %v862
        %v945 = vunpack.c.h.b16 %v862
        %v946 = vunpack.c.l.b16 %v863
        %v947 = vunpack.c.l.b16 %v864
        %v948 = vunpack.c.h.b16 %v864
        %v949 = vunpack.c.l.b16 %v865
        %v950 = vunpack.c.l.b16 %v866
        %v951 = vunpack.c.h.b16 %v866
        %v952 = vunpack.c.l.b16 %v867
        %v953 = vunpack.c.l.b16 %v868
        %v954 = vunpack.c.h.b16 %v868
        %v955 = vunpack.c.l.b16 %v869
        %v956 = vunpack.c.l.b16 %v870
        %v957 = vunpack.c.h.b16 %v870
        %v958 = vunpack.c.l.b16 %v871
        %v959 = vunpack.c.l.b16 %v872
        %v960 = vunpack.c.h.b16 %v872
        %v961 = vunpack.c.l.b16 %v873
        %v962 = vunpack.c.l.b16 %v874
        %v963 = vunpack.c.h.b16 %v874
        %v964 = vunpack.c.l.b16 %v875
        %v965 = vunpack.c.l.b16 %v876
        %v966 = vunpack.c.h.b16 %v876
        %v967 = vunpack.c.l.b16 %v877
        %v968 = vunpack.c.l.b16 %v878
        %v969 = vunpack.c.h.b16 %v878
        %v970 = vunpack.c.l.b16 %v879
        %v971 = vunpack.c.l.b16 %v880
        %v972 = vunpack.c.h.b16 %v880
        %v973 = vunpack.c.l.b16 %v881
        %v974 = vunpack.c.l.b16 %v882
        %v975 = vunpack.c.h.b16 %v882
        %v976 = vunpack.c.l.b16 %v883
        %v977 = vunpack.c.l.b16 %v884
        %v978 = vunpack.c.h.b16 %v884
        %v979 = vunpack.c.l.b16 %v885
        %v980 = vunpack.c.l.b16 %v886
        %v981 = vunpack.c.h.b16 %v886
        %v982 = vunpack.c.l.b16 %v887
        %v983 = vunpack.c.l.b16 %v888
        %v984 = vunpack.c.h.b16 %v888
        %v985 = vunpack.c.l.b16 %v889
        %v986 = vunpack.c.l.b16 %v890
        %v987 = vunpack.c.h.b16 %v890
        %v988 = vunpack.c.l.b16 %v891
        %v989 = vpack.c.b16 %v944, %v941
        %v990 = vpack.c.b16 %v945, %v942
        %v991 = vpack.c.b16 %v946, %v943
        %v992 = vpack.c.b16 %v950, %v947
        %v993 = vpack.c.b16 %v951, %v948
        %v994 = vpack.c.b16 %v952, %v949
        %v995 = vpack.c.b16 %v956, %v953
        %v996 = vpack.c.b16 %v957, %v954
        %v997 = vpack.c.b16 %v958, %v955
        %v998 = vpack.c.b16 %v962, %v959
        %v999 = vpack.c.b16 %v963, %v960
        %v1000 = vpack.c.b16 %v964, %v961
        %v1001 = vpack.c.b16 %v968, %v965
        %v1002 = vpack.c.b16 %v969, %v966
        %v1003 = vpack.c.b16 %v970, %v967
        %v1004 = vpack.c.b16 %v974, %v971
        %v1005 = vpack.c.b16 %v975, %v972
        %v1006 = vpack.c.b16 %v976, %v973
        %v1007 = vpack.c.b16 %v980, %v977
        %v1008 = vpack.c.b16 %v981, %v978
        %v1009 = vpack.c.b16 %v982, %v979
        %v1010 = vpack.c.b16 %v986, %v983
        %v1011 = vpack.c.b16 %v987, %v984
        %v1012 = vpack.c.b16 %v988, %v985
        %1037 = vmatprep.subr.bf16.mxu0 %v1011
        %1038 = vmatpush1.bf16.msra.mxu0 %v1010
        %1039 = vmatprep.subr.bf16.mxu0 %v1008
        %1040 = vmatpush1.bf16.msra.mxu0 %v1007
        %1041 = vmatprep.subr.bf16.mxu0 %v1005
        %1042 = vmatpush1.bf16.msra.mxu0 %v1004
        %1043 = vmatprep.subr.bf16.mxu0 %v1002
        %1044 = vmatpush1.bf16.msra.mxu0 %v1001
        %1045 = vmatprep.subr.bf16.mxu0 %v999
        %1046 = vmatpush1.bf16.msra.mxu0 %v998
        %1047 = vmatprep.subr.bf16.mxu0 %v996
        %1048 = vmatpush1.bf16.msra.mxu0 %v995
        %1049 = vmatprep.subr.bf16.mxu0 %v993
        %1050 = vmatpush1.bf16.msra.mxu0 %v992
        %1051 = vmatprep.subr.bf16.mxu0 %v990
        %1052 = vmatpush1.bf16.msra.mxu0 %v989
        %1053 = vmatprep.subr.bf16.mxu0 0
        %1054 = vmatpush2.bf16.msra.mxu0 0
        %1055 = vmatprep.subr.bf16.mxu0 0
        %1056 = vmatpush2.bf16.msra.mxu0 0
        %1057 = vmatprep.subr.bf16.mxu0 0
        %1058 = vmatpush2.bf16.msra.mxu0 0
        %1059 = vmatprep.subr.bf16.mxu0 0
        %1060 = vmatpush2.bf16.msra.mxu0 0
        %1061 = vmatprep.subr.bf16.mxu0 0
        %1062 = vmatpush2.bf16.msra.mxu0 0
        %1063 = vmatprep.subr.bf16.mxu0 0
        %1064 = vmatpush2.bf16.msra.mxu0 0
        %1065 = vmatprep.subr.bf16.mxu0 0
        %1066 = vmatpush2.bf16.msra.mxu0 0
        %1067 = vmatprep.subr.bf16.mxu0 0
        %1068 = vmatpush2.bf16.msra.mxu0 0
        %1069 = vmatprep.mubr.bf16.mxu0 0
        %1070 = vmatmul.mubr.bf16.gmra.mxu0 %v859
        %v1071 = vpop.f32.mrf.mxu0
        %v1072 = vadd.f32 %v897, %v1071
        %v1073 = vpop.f32.mrf.mxu0
        %v1074 = vadd.f32 %v901, %v1073
        %v1075 = vpop.f32.mrf.mxu0
        %v1076 = vadd.f32 %v897, %v1075
        %v1077 = vpop.f32.mrf.mxu0
        %v1078 = vadd.f32 %v901, %v1077
        %1079 = vdwg.mxu0
        %1080 = vmatprep.subr.bf16.mxu0 0
        %1081 = vmatpush1.bf16.msra.mxu0 %v1012
        %1082 = vmatprep.subr.bf16.mxu0 0
        %1083 = vmatpush1.bf16.msra.mxu0 %v1009
        %1084 = vmatprep.subr.bf16.mxu0 0
        %1085 = vmatpush1.bf16.msra.mxu0 %v1006
        %1086 = vmatprep.subr.bf16.mxu0 0
        %1087 = vmatpush1.bf16.msra.mxu0 %v1003
        %1088 = vmatprep.subr.bf16.mxu0 0
        %1089 = vmatpush1.bf16.msra.mxu0 %v1000
        %1090 = vmatprep.subr.bf16.mxu0 0
        %1091 = vmatpush1.bf16.msra.mxu0 %v997
        %1092 = vmatprep.subr.bf16.mxu0 0
        %1093 = vmatpush1.bf16.msra.mxu0 %v994
        %1094 = vmatprep.subr.bf16.mxu0 0
        %1095 = vmatpush1.bf16.msra.mxu0 %v991
        %1096 = vmatprep.subr.bf16.mxu0 0
        %1097 = vmatpush2.bf16.msra.mxu0 0
        %1098 = vmatprep.subr.bf16.mxu0 0
        %1099 = vmatpush2.bf16.msra.mxu0 0
        %1100 = vmatprep.subr.bf16.mxu0 0
        %1101 = vmatpush2.bf16.msra.mxu0 0
        %1102 = vmatprep.subr.bf16.mxu0 0
        %1103 = vmatpush2.bf16.msra.mxu0 0
        %1104 = vmatprep.subr.bf16.mxu0 0
        %1105 = vmatpush2.bf16.msra.mxu0 0
        %1106 = vmatprep.subr.bf16.mxu0 0
        %1107 = vmatpush2.bf16.msra.mxu0 0
        %1108 = vmatprep.subr.bf16.mxu0 0
        %1109 = vmatpush2.bf16.msra.mxu0 0
        %1110 = vmatprep.subr.bf16.mxu0 0
        %1111 = vmatpush2.bf16.msra.mxu0 0
        %1112 = vmatprep.mubr.bf16.mxu0 0
        %1113 = vmatmul.mubr.bf16.gmra.mxu0 %v859
        %v1114 = vpop.f32.mrf.mxu0
        %v1115 = vadd.f32 %v905, %v1114
        %v1116 = vpop.f32.mrf.mxu0
        %v1117 = vpop.f32.mrf.mxu0
        %v1118 = vadd.f32 %v905, %v1117
        %v1119 = vpop.f32.mrf.mxu0
        %1120 = vdwg.mxu0
        %v1121 = vld [vmem:[%s780] sm:$0x1]
        %v1122 = vpack.c.bf16 %v1076, %v1072
        %v1123 = vpack.c.bf16 %v1078, %v1074
        %v1124 = vpack.c.bf16 %v1118, %v1115
        %vm1125 = vcmask 261120
        %v1127 = vsel %vm1125, %v1122, 0
        %v1130 = vsel %vm1125, %v1123, 0
        %1132 = vmatprep.subr.bf16.mxu0 0
        %1133 = vmatpush1.bf16.xpose.msra.mxu0 0
        %1134 = vmatprep.subr.bf16.mxu0 0
        %1135 = vmatpush1.bf16.xpose.msra.mxu0 0
        %1136 = vmatprep.subr.bf16.mxu0 0
        %1137 = vmatpush1.bf16.xpose.msra.mxu0 0
        %1138 = vmatprep.subr.bf16.mxu0 0
        %1139 = vmatpush1.bf16.xpose.msra.mxu0 0
        %1140 = vmatprep.subr.bf16.mxu0 0
        %1141 = vmatpush1.bf16.xpose.msra.mxu0 0
        %1142 = vmatprep.subr.bf16.mxu0 0
        %1143 = vmatpush1.bf16.xpose.msra.mxu0 0
        %1144 = vmatprep.subr.bf16.mxu0 0
        %1145 = vmatpush1.bf16.xpose.msra.mxu0 0
        %1146 = vmatprep.subr.bf16.mxu0 0
        %1147 = vmatpush1.bf16.xpose.msra.mxu0 %v1130
        %1148 = vmatprep.subr.bf16.mxu0 0
        %1149 = vmatpush2.bf16.xpose.msra.mxu0 0
        %1150 = vmatprep.subr.bf16.mxu0 0
        %1151 = vmatpush2.bf16.xpose.msra.mxu0 0
        %1152 = vmatprep.subr.bf16.mxu0 0
        %1153 = vmatpush2.bf16.xpose.msra.mxu0 0
        %1154 = vmatprep.subr.bf16.mxu0 0
        %1155 = vmatpush2.bf16.xpose.msra.mxu0 0
        %1156 = vmatprep.subr.bf16.mxu0 0
        %1157 = vmatpush2.bf16.xpose.msra.mxu0 0
        %1158 = vmatprep.subr.bf16.mxu0 0
        %1159 = vmatpush2.bf16.xpose.msra.mxu0 0
        %1160 = vmatprep.subr.bf16.mxu0 0
        %1161 = vmatpush2.bf16.xpose.msra.mxu0 0
        %1162 = vmatprep.subr.bf16.mxu0 0
        %1163 = vmatpush2.bf16.xpose.msra.mxu0 0
        %1164 = vmatprep.mubr.bf16.mxu0 0
        %1165 = vmatmul.mubr.bf16.gmra.mxu0 %v1127
        %v1166 = vpop.f32.mrf.mxu0
        %v1167 = vadd.f32 0.0, %v1166
        %v1168 = vpop.f32.mrf.mxu0
        %v1169 = vpop.f32.mrf.mxu0
        %v1170 = vadd.f32 0.0, %v1169
        %v1171 = vpop.f32.mrf.mxu0
        %1172 = vdwg.mxu0
        %v1173 = vmul.f32 %v1167, 0.17677669
        %v1174 = vmul.f32 %v1170, 0.17677669
        %v1176 = vlaneseq
        %v1177 = vshrl.u32 %v1176, 7
        %v1178 = vsub.s32 0, %v1177
        %v1179 = vrot.slane %v858, %v1178
        %v1181 = vadd.f32 %v1173, %v1179
        %v1182 = vadd.f32 %v1174, %v1179
        %vm1183 = vcmask 130048
        %v1184 = vsel %vm1183, %v1181, -inf
        %1185 = vmax.xlane.f32.xlu0 %v1184
        %v1186 = vpop.xlane.xlu0 %1185
        %v1187 = vsel %vm1183, %v1182, -inf
        %1188 = vmax.xlane.f32.xlu0 %v1187
        %v1189 = vpop.xlane.xlu0 %1188
        %v1190 = vsub.f32 %v1181, %v1186
        %v1191 = vsub.f32 %v1182, %v1189
        %v1192 = vmul.f32 %v1190, 1.442695
        %v1193 = vpow.pop %v1192
        %v1194 = vmul.f32 %v1191, 1.442695
        %v1195 = vpow.pop %v1194
        %v1196 = vsel %vm1183, %v1193, 0.0
        %1197 = vadd.xlane.f32.xlu0 %v1196
        %v1198 = vpop.xlane.xlu0 %1197
        %v1199 = vsel %vm1183, %v1195, 0.0
        %1200 = vadd.xlane.f32.xlu0 %v1199
        %v1201 = vpop.xlane.xlu0 %1200
        %v1202 = vrcp.pop %v1198
        %v1203 = vrcp.pop %v1201
        %v1204 = vmul.f32 %v1193, %v1202
        %v1205 = vmul.f32 %v1195, %v1203
        %v1206 = vpack.c.bf16 %v1205, %v1204
        %v1208 = vsel %vm1183, %v1206, 0
        %1210 = vmatprep.subr.bf16.mxu0 0
        %1211 = vmatpush1.bf16.msra.mxu0 0
        %1212 = vmatprep.subr.bf16.mxu0 0
        %1213 = vmatpush1.bf16.msra.mxu0 0
        %1214 = vmatprep.subr.bf16.mxu0 0
        %1215 = vmatpush1.bf16.msra.mxu0 0
        %1216 = vmatprep.subr.bf16.mxu0 0
        %1217 = vmatpush1.bf16.msra.mxu0 0
        %1218 = vmatprep.subr.bf16.mxu0 0
        %1219 = vmatpush1.bf16.msra.mxu0 0
        %1220 = vmatprep.subr.bf16.mxu0 0
        %1221 = vmatpush1.bf16.msra.mxu0 0
        %1222 = vmatprep.subr.bf16.mxu0 0
        %1223 = vmatpush1.bf16.msra.mxu0 0
        %1224 = vmatprep.subr.bf16.mxu0 0
        %1225 = vmatpush1.bf16.msra.mxu0 %v1124
        %1226 = vmatprep.subr.bf16.mxu0 0
        %1227 = vmatpush2.bf16.msra.mxu0 0
        %1228 = vmatprep.subr.bf16.mxu0 0
        %1229 = vmatpush2.bf16.msra.mxu0 0
        %1230 = vmatprep.subr.bf16.mxu0 0
        %1231 = vmatpush2.bf16.msra.mxu0 0
        %1232 = vmatprep.subr.bf16.mxu0 0
        %1233 = vmatpush2.bf16.msra.mxu0 0
        %1234 = vmatprep.subr.bf16.mxu0 0
        %1235 = vmatpush2.bf16.msra.mxu0 0
        %1236 = vmatprep.subr.bf16.mxu0 0
        %1237 = vmatpush2.bf16.msra.mxu0 0
        %1238 = vmatprep.subr.bf16.mxu0 0
        %1239 = vmatpush2.bf16.msra.mxu0 0
        %1240 = vmatprep.subr.bf16.mxu0 0
        %1241 = vmatpush2.bf16.msra.mxu0 0
        %1242 = vmatprep.mubr.bf16.mxu0 0
        %1243 = vmatmul.mubr.bf16.gmra.mxu0 %v1208
        %v1244 = vpop.f32.mrf.mxu0
        %v1245 = vadd.f32 0.0, %v1244
        %v1246 = vpop.f32.mrf.mxu0
        %v1247 = vpop.f32.mrf.mxu0
        %v1248 = vadd.f32 0.0, %v1247
        %v1249 = vpop.f32.mrf.mxu0
        %1250 = vdwg.mxu0
        %v1251 = vpack.c.bf16 %v1248, %v1245
        %v1252 = vld [vmem:[%s644] sm:$0xf]
        %v1253 = vld [vmem:[%s644 + $0x4] sm:$0xf]
        %v1254 = vld [vmem:[%s644 + $0x8] sm:$0xf]
        %v1255 = vld [vmem:[%s644 + $0xc] sm:$0xf]
        %v1260 = vunpack.c.l.b16 %v1252
        %v1261 = vunpack.c.l.b16 %v1253
        %v1262 = vunpack.c.l.b16 %v1254
        %v1263 = vunpack.c.l.b16 %v1255
        %v1264 = vpack.c.b16 %v1261, %v1260
        %v1265 = vpack.c.b16 %v1263, %v1262
        %v1269 = vsel %vm1125, %v1251, 0
        %1271 = vmatprep.subr.bf16.mxu0 0
        %1272 = vmatpush1.bf16.msra.mxu0 0
        %1273 = vmatprep.subr.bf16.mxu0 0
        %1274 = vmatpush1.bf16.msra.mxu0 0
        %1275 = vmatprep.subr.bf16.mxu0 0
        %1276 = vmatpush1.bf16.msra.mxu0 0
        %1277 = vmatprep.subr.bf16.mxu0 0
        %1278 = vmatpush1.bf16.msra.mxu0 0
        %1279 = vmatprep.subr.bf16.mxu0 0
        %1280 = vmatpush1.bf16.msra.mxu0 0
        %1281 = vmatprep.subr.bf16.mxu0 0
        %1282 = vmatpush1.bf16.msra.mxu0 0
        %1283 = vmatprep.subr.bf16.mxu0 0
        %1284 = vmatpush1.bf16.msra.mxu0 %v1265
        %1285 = vmatprep.subr.bf16.mxu0 0
        %1286 = vmatpush1.bf16.msra.mxu0 %v1264
        %1287 = vmatprep.subr.bf16.mxu0 0
        %1288 = vmatpush2.bf16.msra.mxu0 0
        %1289 = vmatprep.subr.bf16.mxu0 0
        %1290 = vmatpush2.bf16.msra.mxu0 0
        %1291 = vmatprep.subr.bf16.mxu0 0
        %1292 = vmatpush2.bf16.msra.mxu0 0
        %1293 = vmatprep.subr.bf16.mxu0 0
        %1294 = vmatpush2.bf16.msra.mxu0 0
        %1295 = vmatprep.subr.bf16.mxu0 0
        %1296 = vmatpush2.bf16.msra.mxu0 0
        %1297 = vmatprep.subr.bf16.mxu0 0
        %1298 = vmatpush2.bf16.msra.mxu0 0
        %1299 = vmatprep.subr.bf16.mxu0 0
        %1300 = vmatpush2.bf16.msra.mxu0 0
        %1301 = vmatprep.subr.bf16.mxu0 0
        %1302 = vmatpush2.bf16.msra.mxu0 0
        %1303 = vmatprep.mubr.bf16.mxu0 0
        %1304 = vmatmul.mubr.bf16.gmra.mxu0 %v1269
        %v1305 = vpop.f32.mrf.mxu0
        %v1306 = vadd.f32 0.0, %v1305
        %v1307 = vpop.f32.mrf.mxu0
        %v1308 = vpop.f32.mrf.mxu0
        %v1309 = vadd.f32 0.0, %v1308
        %v1310 = vpop.f32.mrf.mxu0
        %1311 = vdwg.mxu0
        %v1313 = vlaneseq
        %v1314 = vshrl.u32 %v1313, 7
        %v1315 = vsub.s32 0, %v1314
        %v1316 = vrot.slane %v1121, %v1315
        %v1318 = vadd.f32 %v1316, %v1306
        %v1319 = vadd.f32 %v1316, %v1309
        %1321 = vrot.lane.b32.xlu0 %v1122, 96
        %v1322 = vpop.permute.xlu0 %1321
        %1324 = vrot.lane.b32.xlu0 %v1123, 96
        %v1325 = vpop.permute.xlu0 %1324
        %v1327 = vsel %vm1125, %v1322, 0
        %v1330 = vsel %vm1125, %v1325, 0
        %1332 = vmatprep.subr.bf16.mxu0 0
        %1333 = vmatpush1.bf16.xpose.msra.mxu0 0
        %1334 = vmatprep.subr.bf16.mxu0 0
        %1335 = vmatpush1.bf16.xpose.msra.mxu0 0
        %1336 = vmatprep.subr.bf16.mxu0 0
        %1337 = vmatpush1.bf16.xpose.msra.mxu0 0
        %1338 = vmatprep.subr.bf16.mxu0 0
        %1339 = vmatpush1.bf16.xpose.msra.mxu0 0
        %1340 = vmatprep.subr.bf16.mxu0 0
        %1341 = vmatpush1.bf16.xpose.msra.mxu0 0
        %1342 = vmatprep.subr.bf16.mxu0 0
        %1343 = vmatpush1.bf16.xpose.msra.mxu0 0
        %1344 = vmatprep.subr.bf16.mxu0 0
        %1345 = vmatpush1.bf16.xpose.msra.mxu0 0
        %1346 = vmatprep.subr.bf16.mxu0 0
        %1347 = vmatpush1.bf16.xpose.msra.mxu0 %v1330
        %1348 = vmatprep.subr.bf16.mxu0 0
        %1349 = vmatpush2.bf16.xpose.msra.mxu0 0
        %1350 = vmatprep.subr.bf16.mxu0 0
        %1351 = vmatpush2.bf16.xpose.msra.mxu0 0
        %1352 = vmatprep.subr.bf16.mxu0 0
        %1353 = vmatpush2.bf16.xpose.msra.mxu0 0
        %1354 = vmatprep.subr.bf16.mxu0 0
        %1355 = vmatpush2.bf16.xpose.msra.mxu0 0
        %1356 = vmatprep.subr.bf16.mxu0 0
        %1357 = vmatpush2.bf16.xpose.msra.mxu0 0
        %1358 = vmatprep.subr.bf16.mxu0 0
        %1359 = vmatpush2.bf16.xpose.msra.mxu0 0
        %1360 = vmatprep.subr.bf16.mxu0 0
        %1361 = vmatpush2.bf16.xpose.msra.mxu0 0
        %1362 = vmatprep.subr.bf16.mxu0 0
        %1363 = vmatpush2.bf16.xpose.msra.mxu0 0
        %1364 = vmatprep.mubr.bf16.mxu0 0
        %1365 = vmatmul.mubr.bf16.gmra.mxu0 %v1327
        %v1366 = vpop.f32.mrf.mxu0
        %v1367 = vadd.f32 0.0, %v1366
        %v1368 = vpop.f32.mrf.mxu0
        %v1369 = vpop.f32.mrf.mxu0
        %v1370 = vadd.f32 0.0, %v1369
        %v1371 = vpop.f32.mrf.mxu0
        %1372 = vdwg.mxu0
        %v1373 = vmul.f32 %v1367, 0.17677669
        %v1374 = vmul.f32 %v1370, 0.17677669
        %v1375 = vadd.f32 %v1373, %v1179
        %v1376 = vadd.f32 %v1374, %v1179
        %v1377 = vsel %vm1183, %v1375, -inf
        %1378 = vmax.xlane.f32.xlu0 %v1377
        %v1379 = vpop.xlane.xlu0 %1378
        %v1380 = vsel %vm1183, %v1376, -inf
        %1381 = vmax.xlane.f32.xlu0 %v1380
        %v1382 = vpop.xlane.xlu0 %1381
        %v1383 = vsub.f32 %v1375, %v1379
        %v1384 = vsub.f32 %v1376, %v1382
        %v1385 = vmul.f32 %v1383, 1.442695
        %v1386 = vpow.pop %v1385
        %v1387 = vmul.f32 %v1384, 1.442695
        %v1388 = vpow.pop %v1387
        %v1389 = vsel %vm1183, %v1386, 0.0
        %1390 = vadd.xlane.f32.xlu0 %v1389
        %v1391 = vpop.xlane.xlu0 %1390
        %v1392 = vsel %vm1183, %v1388, 0.0
        %1393 = vadd.xlane.f32.xlu0 %v1392
        %v1394 = vpop.xlane.xlu0 %1393
        %v1395 = vrcp.pop %v1391
        %v1396 = vrcp.pop %v1394
        %v1397 = vmul.f32 %v1386, %v1395
        %v1398 = vmul.f32 %v1388, %v1396
        %v1399 = vpack.c.bf16 %v1398, %v1397
        %1401 = vrot.lane.b32.xlu0 %v1124, 96
        %v1402 = vpop.permute.xlu0 %1401
        %v1405 = vsel %vm1183, %v1399, 0
        %1407 = vmatprep.subr.bf16.mxu0 0
        %1408 = vmatpush1.bf16.msra.mxu0 0
        %1409 = vmatprep.subr.bf16.mxu0 0
        %1410 = vmatpush1.bf16.msra.mxu0 0
        %1411 = vmatprep.subr.bf16.mxu0 0
        %1412 = vmatpush1.bf16.msra.mxu0 0
        %1413 = vmatprep.subr.bf16.mxu0 0
        %1414 = vmatpush1.bf16.msra.mxu0 0
        %1415 = vmatprep.subr.bf16.mxu0 0
        %1416 = vmatpush1.bf16.msra.mxu0 0
        %1417 = vmatprep.subr.bf16.mxu0 0
        %1418 = vmatpush1.bf16.msra.mxu0 0
        %1419 = vmatprep.subr.bf16.mxu0 0
        %1420 = vmatpush1.bf16.msra.mxu0 0
        %1421 = vmatprep.subr.bf16.mxu0 0
        %1422 = vmatpush1.bf16.msra.mxu0 %v1402
        %1423 = vmatprep.subr.bf16.mxu0 0
        %1424 = vmatpush2.bf16.msra.mxu0 0
        %1425 = vmatprep.subr.bf16.mxu0 0
        %1426 = vmatpush2.bf16.msra.mxu0 0
        %1427 = vmatprep.subr.bf16.mxu0 0
        %1428 = vmatpush2.bf16.msra.mxu0 0
        %1429 = vmatprep.subr.bf16.mxu0 0
        %1430 = vmatpush2.bf16.msra.mxu0 0
        %1431 = vmatprep.subr.bf16.mxu0 0
        %1432 = vmatpush2.bf16.msra.mxu0 0
        %1433 = vmatprep.subr.bf16.mxu0 0
        %1434 = vmatpush2.bf16.msra.mxu0 0
        %1435 = vmatprep.subr.bf16.mxu0 0
        %1436 = vmatpush2.bf16.msra.mxu0 0
        %1437 = vmatprep.subr.bf16.mxu0 0
        %1438 = vmatpush2.bf16.msra.mxu0 0
        %1439 = vmatprep.mubr.bf16.mxu0 0
        %1440 = vmatmul.mubr.bf16.gmra.mxu0 %v1405
        %v1441 = vpop.f32.mrf.mxu0
        %v1442 = vadd.f32 0.0, %v1441
        %v1443 = vpop.f32.mrf.mxu0
        %v1444 = vpop.f32.mrf.mxu0
        %v1445 = vadd.f32 0.0, %v1444
        %v1446 = vpop.f32.mrf.mxu0
        %1447 = vdwg.mxu0
        %v1448 = vpack.c.bf16 %v1445, %v1442
        %v1449 = vld [vmem:[%s644 + $0x10] sm:$0xf]
        %v1450 = vld [vmem:[%s644 + $0x14] sm:$0xf]
        %v1451 = vld [vmem:[%s644 + $0x18] sm:$0xf]
        %v1452 = vld [vmem:[%s644 + $0x1c] sm:$0xf]
        %v1457 = vunpack.c.l.b16 %v1449
        %v1458 = vunpack.c.l.b16 %v1450
        %v1459 = vunpack.c.l.b16 %v1451
        %v1460 = vunpack.c.l.b16 %v1452
        %v1461 = vpack.c.b16 %v1458, %v1457
        %v1462 = vpack.c.b16 %v1460, %v1459
        %v1466 = vsel %vm1125, %v1448, 0
        %1468 = vmatprep.subr.bf16.mxu0 0
        %1469 = vmatpush1.bf16.msra.mxu0 0
        %1470 = vmatprep.subr.bf16.mxu0 0
        %1471 = vmatpush1.bf16.msra.mxu0 0
        %1472 = vmatprep.subr.bf16.mxu0 0
        %1473 = vmatpush1.bf16.msra.mxu0 0
        %1474 = vmatprep.subr.bf16.mxu0 0
        %1475 = vmatpush1.bf16.msra.mxu0 0
        %1476 = vmatprep.subr.bf16.mxu0 0
        %1477 = vmatpush1.bf16.msra.mxu0 0
        %1478 = vmatprep.subr.bf16.mxu0 0
        %1479 = vmatpush1.bf16.msra.mxu0 0
        %1480 = vmatprep.subr.bf16.mxu0 0
        %1481 = vmatpush1.bf16.msra.mxu0 %v1462
        %1482 = vmatprep.subr.bf16.mxu0 0
        %1483 = vmatpush1.bf16.msra.mxu0 %v1461
        %1484 = vmatprep.subr.bf16.mxu0 0
        %1485 = vmatpush2.bf16.msra.mxu0 0
        %1486 = vmatprep.subr.bf16.mxu0 0
        %1487 = vmatpush2.bf16.msra.mxu0 0
        %1488 = vmatprep.subr.bf16.mxu0 0
        %1489 = vmatpush2.bf16.msra.mxu0 0
        %1490 = vmatprep.subr.bf16.mxu0 0
        %1491 = vmatpush2.bf16.msra.mxu0 0
        %1492 = vmatprep.subr.bf16.mxu0 0
        %1493 = vmatpush2.bf16.msra.mxu0 0
        %1494 = vmatprep.subr.bf16.mxu0 0
        %1495 = vmatpush2.bf16.msra.mxu0 0
        %1496 = vmatprep.subr.bf16.mxu0 0
        %1497 = vmatpush2.bf16.msra.mxu0 0
        %1498 = vmatprep.subr.bf16.mxu0 0
        %1499 = vmatpush2.bf16.msra.mxu0 0
        %1500 = vmatprep.mubr.bf16.mxu0 0
        %1501 = vmatmul.mubr.bf16.gmra.mxu0 %v1466
        %v1502 = vpop.f32.mrf.mxu0
        %v1503 = vadd.f32 0.0, %v1502
        %v1504 = vpop.f32.mrf.mxu0
        %v1505 = vpop.f32.mrf.mxu0
        %v1506 = vadd.f32 0.0, %v1505
        %v1507 = vpop.f32.mrf.mxu0
        %1508 = vdwg.mxu0
        %v1509 = vadd.f32 %v1318, %v1503
        %v1510 = vadd.f32 %v1319, %v1506
        %1511 = vrot.lane.b32.xlu0 %v1122, 64
        %v1512 = vpop.permute.xlu0 %1511
        %1513 = vrot.lane.b32.xlu0 %v1123, 64
        %v1514 = vpop.permute.xlu0 %1513
        %v1516 = vsel %vm1125, %v1512, 0
        %v1519 = vsel %vm1125, %v1514, 0
        %1521 = vmatprep.subr.bf16.mxu0 0
        %1522 = vmatpush1.bf16.xpose.msra.mxu0 0
        %1523 = vmatprep.subr.bf16.mxu0 0
        %1524 = vmatpush1.bf16.xpose.msra.mxu0 0
        %1525 = vmatprep.subr.bf16.mxu0 0
        %1526 = vmatpush1.bf16.xpose.msra.mxu0 0
        %1527 = vmatprep.subr.bf16.mxu0 0
        %1528 = vmatpush1.bf16.xpose.msra.mxu0 0
        %1529 = vmatprep.subr.bf16.mxu0 0
        %1530 = vmatpush1.bf16.xpose.msra.mxu0 0
        %1531 = vmatprep.subr.bf16.mxu0 0
        %1532 = vmatpush1.bf16.xpose.msra.mxu0 0
        %1533 = vmatprep.subr.bf16.mxu0 0
        %1534 = vmatpush1.bf16.xpose.msra.mxu0 0
        %1535 = vmatprep.subr.bf16.mxu0 0
        %1536 = vmatpush1.bf16.xpose.msra.mxu0 %v1519
        %1537 = vmatprep.subr.bf16.mxu0 0
        %1538 = vmatpush2.bf16.xpose.msra.mxu0 0
        %1539 = vmatprep.subr.bf16.mxu0 0
        %1540 = vmatpush2.bf16.xpose.msra.mxu0 0
        %1541 = vmatprep.subr.bf16.mxu0 0
        %1542 = vmatpush2.bf16.xpose.msra.mxu0 0
        %1543 = vmatprep.subr.bf16.mxu0 0
        %1544 = vmatpush2.bf16.xpose.msra.mxu0 0
        %1545 = vmatprep.subr.bf16.mxu0 0
        %1546 = vmatpush2.bf16.xpose.msra.mxu0 0
        %1547 = vmatprep.subr.bf16.mxu0 0
        %1548 = vmatpush2.bf16.xpose.msra.mxu0 0
        %1549 = vmatprep.subr.bf16.mxu0 0
        %1550 = vmatpush2.bf16.xpose.msra.mxu0 0
        %1551 = vmatprep.subr.bf16.mxu0 0
        %1552 = vmatpush2.bf16.xpose.msra.mxu0 0
        %1553 = vmatprep.mubr.bf16.mxu0 0
        %1554 = vmatmul.mubr.bf16.gmra.mxu0 %v1516
        %v1555 = vpop.f32.mrf.mxu0
        %v1556 = vadd.f32 0.0, %v1555
        %v1557 = vpop.f32.mrf.mxu0
        %v1558 = vpop.f32.mrf.mxu0
        %v1559 = vadd.f32 0.0, %v1558
        %v1560 = vpop.f32.mrf.mxu0
        %1561 = vdwg.mxu0
        %v1562 = vmul.f32 %v1556, 0.17677669
        %v1563 = vmul.f32 %v1559, 0.17677669
        %v1564 = vadd.f32 %v1562, %v1179
        %v1565 = vadd.f32 %v1563, %v1179
        %v1566 = vsel %vm1183, %v1564, -inf
        %1567 = vmax.xlane.f32.xlu0 %v1566
        %v1568 = vpop.xlane.xlu0 %1567
        %v1569 = vsel %vm1183, %v1565, -inf
        %1570 = vmax.xlane.f32.xlu0 %v1569
        %v1571 = vpop.xlane.xlu0 %1570
        %v1572 = vsub.f32 %v1564, %v1568
        %v1573 = vsub.f32 %v1565, %v1571
        %v1574 = vmul.f32 %v1572, 1.442695
        %v1575 = vpow.pop %v1574
        %v1576 = vmul.f32 %v1573, 1.442695
        %v1577 = vpow.pop %v1576
        %v1578 = vsel %vm1183, %v1575, 0.0
        %1579 = vadd.xlane.f32.xlu0 %v1578
        %v1580 = vpop.xlane.xlu0 %1579
        %v1581 = vsel %vm1183, %v1577, 0.0
        %1582 = vadd.xlane.f32.xlu0 %v1581
        %v1583 = vpop.xlane.xlu0 %1582
        %v1584 = vrcp.pop %v1580
        %v1585 = vrcp.pop %v1583
        %v1586 = vmul.f32 %v1575, %v1584
        %v1587 = vmul.f32 %v1577, %v1585
        %v1588 = vpack.c.bf16 %v1587, %v1586
        %1589 = vrot.lane.b32.xlu0 %v1124, 64
        %v1590 = vpop.permute.xlu0 %1589
        %v1593 = vsel %vm1183, %v1588, 0
        %1595 = vmatprep.subr.bf16.mxu0 0
        %1596 = vmatpush1.bf16.msra.mxu0 0
        %1597 = vmatprep.subr.bf16.mxu0 0
        %1598 = vmatpush1.bf16.msra.mxu0 0
        %1599 = vmatprep.subr.bf16.mxu0 0
        %1600 = vmatpush1.bf16.msra.mxu0 0
        %1601 = vmatprep.subr.bf16.mxu0 0
        %1602 = vmatpush1.bf16.msra.mxu0 0
        %1603 = vmatprep.subr.bf16.mxu0 0
        %1604 = vmatpush1.bf16.msra.mxu0 0
        %1605 = vmatprep.subr.bf16.mxu0 0
        %1606 = vmatpush1.bf16.msra.mxu0 0
        %1607 = vmatprep.subr.bf16.mxu0 0
        %1608 = vmatpush1.bf16.msra.mxu0 0
        %1609 = vmatprep.subr.bf16.mxu0 0
        %1610 = vmatpush1.bf16.msra.mxu0 %v1590
        %1611 = vmatprep.subr.bf16.mxu0 0
        %1612 = vmatpush2.bf16.msra.mxu0 0
        %1613 = vmatprep.subr.bf16.mxu0 0
        %1614 = vmatpush2.bf16.msra.mxu0 0
        %1615 = vmatprep.subr.bf16.mxu0 0
        %1616 = vmatpush2.bf16.msra.mxu0 0
        %1617 = vmatprep.subr.bf16.mxu0 0
        %1618 = vmatpush2.bf16.msra.mxu0 0
        %1619 = vmatprep.subr.bf16.mxu0 0
        %1620 = vmatpush2.bf16.msra.mxu0 0
        %1621 = vmatprep.subr.bf16.mxu0 0
        %1622 = vmatpush2.bf16.msra.mxu0 0
        %1623 = vmatprep.subr.bf16.mxu0 0
        %1624 = vmatpush2.bf16.msra.mxu0 0
        %1625 = vmatprep.subr.bf16.mxu0 0
        %1626 = vmatpush2.bf16.msra.mxu0 0
        %1627 = vmatprep.mubr.bf16.mxu0 0
        %1628 = vmatmul.mubr.bf16.gmra.mxu0 %v1593
        %v1629 = vpop.f32.mrf.mxu0
        %v1630 = vadd.f32 0.0, %v1629
        %v1631 = vpop.f32.mrf.mxu0
        %v1632 = vpop.f32.mrf.mxu0
        %v1633 = vadd.f32 0.0, %v1632
        %v1634 = vpop.f32.mrf.mxu0
        %1635 = vdwg.mxu0
        %v1636 = vpack.c.bf16 %v1633, %v1630
        %v1637 = vld [vmem:[%s644 + $0x20] sm:$0xf]
        %v1638 = vld [vmem:[%s644 + $0x24] sm:$0xf]
        %v1639 = vld [vmem:[%s644 + $0x28] sm:$0xf]
        %v1640 = vld [vmem:[%s644 + $0x2c] sm:$0xf]
        %v1645 = vunpack.c.l.b16 %v1637
        %v1646 = vunpack.c.l.b16 %v1638
        %v1647 = vunpack.c.l.b16 %v1639
        %v1648 = vunpack.c.l.b16 %v1640
        %v1649 = vpack.c.b16 %v1646, %v1645
        %v1650 = vpack.c.b16 %v1648, %v1647
        %v1654 = vsel %vm1125, %v1636, 0
        %1656 = vmatprep.subr.bf16.mxu0 0
        %1657 = vmatpush1.bf16.msra.mxu0 0
        %1658 = vmatprep.subr.bf16.mxu0 0
        %1659 = vmatpush1.bf16.msra.mxu0 0
        %1660 = vmatprep.subr.bf16.mxu0 0
        %1661 = vmatpush1.bf16.msra.mxu0 0
        %1662 = vmatprep.subr.bf16.mxu0 0
        %1663 = vmatpush1.bf16.msra.mxu0 0
        %1664 = vmatprep.subr.bf16.mxu0 0
        %1665 = vmatpush1.bf16.msra.mxu0 0
        %1666 = vmatprep.subr.bf16.mxu0 0
        %1667 = vmatpush1.bf16.msra.mxu0 0
        %1668 = vmatprep.subr.bf16.mxu0 0
        %1669 = vmatpush1.bf16.msra.mxu0 %v1650
        %1670 = vmatprep.subr.bf16.mxu0 0
        %1671 = vmatpush1.bf16.msra.mxu0 %v1649
        %1672 = vmatprep.subr.bf16.mxu0 0
        %1673 = vmatpush2.bf16.msra.mxu0 0
        %1674 = vmatprep.subr.bf16.mxu0 0
        %1675 = vmatpush2.bf16.msra.mxu0 0
        %1676 = vmatprep.subr.bf16.mxu0 0
        %1677 = vmatpush2.bf16.msra.mxu0 0
        %1678 = vmatprep.subr.bf16.mxu0 0
        %1679 = vmatpush2.bf16.msra.mxu0 0
        %1680 = vmatprep.subr.bf16.mxu0 0
        %1681 = vmatpush2.bf16.msra.mxu0 0
        %1682 = vmatprep.subr.bf16.mxu0 0
        %1683 = vmatpush2.bf16.msra.mxu0 0
        %1684 = vmatprep.subr.bf16.mxu0 0
        %1685 = vmatpush2.bf16.msra.mxu0 0
        %1686 = vmatprep.subr.bf16.mxu0 0
        %1687 = vmatpush2.bf16.msra.mxu0 0
        %1688 = vmatprep.mubr.bf16.mxu0 0
        %1689 = vmatmul.mubr.bf16.gmra.mxu0 %v1654
        %v1690 = vpop.f32.mrf.mxu0
        %v1691 = vadd.f32 0.0, %v1690
        %v1692 = vpop.f32.mrf.mxu0
        %v1693 = vpop.f32.mrf.mxu0
        %v1694 = vadd.f32 0.0, %v1693
        %v1695 = vpop.f32.mrf.mxu0
        %1696 = vdwg.mxu0
        %v1697 = vadd.f32 %v1509, %v1691
        %v1698 = vadd.f32 %v1510, %v1694
        %1699 = vrot.lane.b32.xlu0 %v1122, 32
        %v1700 = vpop.permute.xlu0 %1699
        %1701 = vrot.lane.b32.xlu0 %v1123, 32
        %v1702 = vpop.permute.xlu0 %1701
        %v1704 = vsel %vm1125, %v1700, 0
        %v1707 = vsel %vm1125, %v1702, 0
        %1709 = vmatprep.subr.bf16.mxu0 0
        %1710 = vmatpush1.bf16.xpose.msra.mxu0 0
        %1711 = vmatprep.subr.bf16.mxu0 0
        %1712 = vmatpush1.bf16.xpose.msra.mxu0 0
        %1713 = vmatprep.subr.bf16.mxu0 0
        %1714 = vmatpush1.bf16.xpose.msra.mxu0 0
        %1715 = vmatprep.subr.bf16.mxu0 0
        %1716 = vmatpush1.bf16.xpose.msra.mxu0 0
        %1717 = vmatprep.subr.bf16.mxu0 0
        %1718 = vmatpush1.bf16.xpose.msra.mxu0 0
        %1719 = vmatprep.subr.bf16.mxu0 0
        %1720 = vmatpush1.bf16.xpose.msra.mxu0 0
        %1721 = vmatprep.subr.bf16.mxu0 0
        %1722 = vmatpush1.bf16.xpose.msra.mxu0 0
        %1723 = vmatprep.subr.bf16.mxu0 0
        %1724 = vmatpush1.bf16.xpose.msra.mxu0 %v1707
        %1725 = vmatprep.subr.bf16.mxu0 0
        %1726 = vmatpush2.bf16.xpose.msra.mxu0 0
        %1727 = vmatprep.subr.bf16.mxu0 0
        %1728 = vmatpush2.bf16.xpose.msra.mxu0 0
        %1729 = vmatprep.subr.bf16.mxu0 0
        %1730 = vmatpush2.bf16.xpose.msra.mxu0 0
        %1731 = vmatprep.subr.bf16.mxu0 0
        %1732 = vmatpush2.bf16.xpose.msra.mxu0 0
        %1733 = vmatprep.subr.bf16.mxu0 0
        %1734 = vmatpush2.bf16.xpose.msra.mxu0 0
        %1735 = vmatprep.subr.bf16.mxu0 0
        %1736 = vmatpush2.bf16.xpose.msra.mxu0 0
        %1737 = vmatprep.subr.bf16.mxu0 0
        %1738 = vmatpush2.bf16.xpose.msra.mxu0 0
        %1739 = vmatprep.subr.bf16.mxu0 0
        %1740 = vmatpush2.bf16.xpose.msra.mxu0 0
        %1741 = vmatprep.mubr.bf16.mxu0 0
        %1742 = vmatmul.mubr.bf16.gmra.mxu0 %v1704
        %v1743 = vpop.f32.mrf.mxu0
        %v1744 = vadd.f32 0.0, %v1743
        %v1745 = vpop.f32.mrf.mxu0
        %v1746 = vpop.f32.mrf.mxu0
        %v1747 = vadd.f32 0.0, %v1746
        %v1748 = vpop.f32.mrf.mxu0
        %1749 = vdwg.mxu0
        %v1750 = vmul.f32 %v1744, 0.17677669
        %v1751 = vmul.f32 %v1747, 0.17677669
        %v1752 = vadd.f32 %v1750, %v1179
        %v1753 = vadd.f32 %v1751, %v1179
        %v1754 = vsel %vm1183, %v1752, -inf
        %1755 = vmax.xlane.f32.xlu0 %v1754
        %v1756 = vpop.xlane.xlu0 %1755
        %v1757 = vsel %vm1183, %v1753, -inf
        %1758 = vmax.xlane.f32.xlu0 %v1757
        %v1759 = vpop.xlane.xlu0 %1758
        %v1760 = vsub.f32 %v1752, %v1756
        %v1761 = vsub.f32 %v1753, %v1759
        %v1762 = vmul.f32 %v1760, 1.442695
        %v1763 = vpow.pop %v1762
        %v1764 = vmul.f32 %v1761, 1.442695
        %v1765 = vpow.pop %v1764
        %v1766 = vsel %vm1183, %v1763, 0.0
        %1767 = vadd.xlane.f32.xlu0 %v1766
        %v1768 = vpop.xlane.xlu0 %1767
        %v1769 = vsel %vm1183, %v1765, 0.0
        %1770 = vadd.xlane.f32.xlu0 %v1769
        %v1771 = vpop.xlane.xlu0 %1770
        %v1772 = vrcp.pop %v1768
        %v1773 = vrcp.pop %v1771
        %v1774 = vmul.f32 %v1763, %v1772
        %v1775 = vmul.f32 %v1765, %v1773
        %v1776 = vpack.c.bf16 %v1775, %v1774
        %1777 = vrot.lane.b32.xlu0 %v1124, 32
        %v1778 = vpop.permute.xlu0 %1777
        %v1781 = vsel %vm1183, %v1776, 0
        %1783 = vmatprep.subr.bf16.mxu0 0
        %1784 = vmatpush1.bf16.msra.mxu0 0
        %1785 = vmatprep.subr.bf16.mxu0 0
        %1786 = vmatpush1.bf16.msra.mxu0 0
        %1787 = vmatprep.subr.bf16.mxu0 0
        %1788 = vmatpush1.bf16.msra.mxu0 0
        %1789 = vmatprep.subr.bf16.mxu0 0
        %1790 = vmatpush1.bf16.msra.mxu0 0
        %1791 = vmatprep.subr.bf16.mxu0 0
        %1792 = vmatpush1.bf16.msra.mxu0 0
        %1793 = vmatprep.subr.bf16.mxu0 0
        %1794 = vmatpush1.bf16.msra.mxu0 0
        %1795 = vmatprep.subr.bf16.mxu0 0
        %1796 = vmatpush1.bf16.msra.mxu0 0
        %1797 = vmatprep.subr.bf16.mxu0 0
        %1798 = vmatpush1.bf16.msra.mxu0 %v1778
        %1799 = vmatprep.subr.bf16.mxu0 0
        %1800 = vmatpush2.bf16.msra.mxu0 0
        %1801 = vmatprep.subr.bf16.mxu0 0
        %1802 = vmatpush2.bf16.msra.mxu0 0
        %1803 = vmatprep.subr.bf16.mxu0 0
        %1804 = vmatpush2.bf16.msra.mxu0 0
        %1805 = vmatprep.subr.bf16.mxu0 0
        %1806 = vmatpush2.bf16.msra.mxu0 0
        %1807 = vmatprep.subr.bf16.mxu0 0
        %1808 = vmatpush2.bf16.msra.mxu0 0
        %1809 = vmatprep.subr.bf16.mxu0 0
        %1810 = vmatpush2.bf16.msra.mxu0 0
        %1811 = vmatprep.subr.bf16.mxu0 0
        %1812 = vmatpush2.bf16.msra.mxu0 0
        %1813 = vmatprep.subr.bf16.mxu0 0
        %1814 = vmatpush2.bf16.msra.mxu0 0
        %1815 = vmatprep.mubr.bf16.mxu0 0
        %1816 = vmatmul.mubr.bf16.gmra.mxu0 %v1781
        %v1817 = vpop.f32.mrf.mxu0
        %v1818 = vadd.f32 0.0, %v1817
        %v1819 = vpop.f32.mrf.mxu0
        %v1820 = vpop.f32.mrf.mxu0
        %v1821 = vadd.f32 0.0, %v1820
        %v1822 = vpop.f32.mrf.mxu0
        %1823 = vdwg.mxu0
        %v1824 = vpack.c.bf16 %v1821, %v1818
        %v1825 = vld [vmem:[%s644 + $0x30] sm:$0xf]
        %v1826 = vld [vmem:[%s644 + $0x34] sm:$0xf]
        %v1827 = vld [vmem:[%s644 + $0x38] sm:$0xf]
        %v1828 = vld [vmem:[%s644 + $0x3c] sm:$0xf]
        %v1833 = vunpack.c.l.b16 %v1825
        %v1834 = vunpack.c.l.b16 %v1826
        %v1835 = vunpack.c.l.b16 %v1827
        %v1836 = vunpack.c.l.b16 %v1828
        %v1837 = vpack.c.b16 %v1834, %v1833
        %v1838 = vpack.c.b16 %v1836, %v1835
        %v1842 = vsel %vm1125, %v1824, 0
        %1844 = vmatprep.subr.bf16.mxu0 0
        %1845 = vmatpush1.bf16.msra.mxu0 0
        %1846 = vmatprep.subr.bf16.mxu0 0
        %1847 = vmatpush1.bf16.msra.mxu0 0
        %1848 = vmatprep.subr.bf16.mxu0 0
        %1849 = vmatpush1.bf16.msra.mxu0 0
        %1850 = vmatprep.subr.bf16.mxu0 0
        %1851 = vmatpush1.bf16.msra.mxu0 0
        %1852 = vmatprep.subr.bf16.mxu0 0
        %1853 = vmatpush1.bf16.msra.mxu0 0
        %1854 = vmatprep.subr.bf16.mxu0 0
        %1855 = vmatpush1.bf16.msra.mxu0 0
        %1856 = vmatprep.subr.bf16.mxu0 0
        %1857 = vmatpush1.bf16.msra.mxu0 %v1838
        %1858 = vmatprep.subr.bf16.mxu0 0
        %1859 = vmatpush1.bf16.msra.mxu0 %v1837
        %1860 = vmatprep.subr.bf16.mxu0 0
        %1861 = vmatpush2.bf16.msra.mxu0 0
        %1862 = vmatprep.subr.bf16.mxu0 0
        %1863 = vmatpush2.bf16.msra.mxu0 0
        %1864 = vmatprep.subr.bf16.mxu0 0
        %1865 = vmatpush2.bf16.msra.mxu0 0
        %1866 = vmatprep.subr.bf16.mxu0 0
        %1867 = vmatpush2.bf16.msra.mxu0 0
        %1868 = vmatprep.subr.bf16.mxu0 0
        %1869 = vmatpush2.bf16.msra.mxu0 0
        %1870 = vmatprep.subr.bf16.mxu0 0
        %1871 = vmatpush2.bf16.msra.mxu0 0
        %1872 = vmatprep.subr.bf16.mxu0 0
        %1873 = vmatpush2.bf16.msra.mxu0 0
        %1874 = vmatprep.subr.bf16.mxu0 0
        %1875 = vmatpush2.bf16.msra.mxu0 0
        %1876 = vmatprep.mubr.bf16.mxu0 0
        %1877 = vmatmul.mubr.bf16.gmra.mxu0 %v1842
        %v1878 = vpop.f32.mrf.mxu0
        %v1879 = vadd.f32 0.0, %v1878
        %v1880 = vpop.f32.mrf.mxu0
        %v1881 = vpop.f32.mrf.mxu0
        %v1882 = vadd.f32 0.0, %v1881
        %v1883 = vpop.f32.mrf.mxu0
        %1884 = vdwg.mxu0
        %v1885 = vadd.f32 %v1697, %v1879
        %v1886 = vadd.f32 %v1698, %v1882
        %v1887 = vadd.f32 %v1885, %v856
        %v1888 = vadd.f32 %v1886, %v857
        %v1889 = vld [vmem:[%s783] sm:$0x1]
        %v1890 = vld [vmem:[%s786] sm:$0x1]
        %1891 = vadd.xlane.f32.xlu0 %v1887
        %v1892 = vpop.xlane.xlu0 %1891
        %1893 = vadd.xlane.f32.xlu0 %v1888
        %v1894 = vpop.xlane.xlu0 %1893
        %v1895 = vrcp.pop 128.0
        %v1896 = vmul.f32 %v1892, %v1895
        %v1897 = vmul.f32 %v1894, %v1895
        %v1898 = vsub.f32 %v1887, %v1896
        %v1899 = vsub.f32 %v1888, %v1897
        %v1900 = vmul.f32 %v1898, %v1898
        %v1901 = vmul.f32 %v1899, %v1899
        %1902 = vadd.xlane.f32.xlu0 %v1900
        %v1903 = vpop.xlane.xlu0 %1902
        %1904 = vadd.xlane.f32.xlu0 %v1901
        %v1905 = vpop.xlane.xlu0 %1904
        %v1906 = vmul.f32 %v1903, %v1895
        %v1907 = vmul.f32 %v1905, %v1895
        %v1908 = vadd.f32 %v1906, 1e-12
        %v1909 = vadd.f32 %v1907, 1e-12
        %v1910 = vrsqrt.pop %v1908
        %v1911 = vrsqrt.pop %v1909
        %v1912 = vmul.f32 %v1898, %v1910
        %v1913 = vmul.f32 %v1899, %v1911
        %v1915 = vlaneseq
        %v1916 = vshrl.u32 %v1915, 7
        %v1917 = vsub.s32 0, %v1916
        %v1918 = vrot.slane %v1889, %v1917
        %v1920 = vmul.f32 %v1912, %v1918
        %v1921 = vmul.f32 %v1913, %v1918
        %v1923 = vlaneseq
        %v1924 = vshrl.u32 %v1923, 7
        %v1925 = vsub.s32 0, %v1924
        %v1926 = vrot.slane %v1890, %v1925
        %v1928 = vadd.f32 %v1920, %v1926
        %v1929 = vadd.f32 %v1921, %v1926
        %v1930 = vpack.c.bf16 %v1929, %v1928
        %v1931 = vld [vmem:[%s653] sm:$0xff]
        %v1932 = vld [vmem:[%s653 + $0x8] sm:$0xff]
        %v1933 = vld [vmem:[%s653 + $0x10] sm:$0xff]
        %v1934 = vld [vmem:[%s653 + $0x18] sm:$0xff]
        %v1935 = vld [vmem:[%s653 + $0x20] sm:$0xff]
        %v1936 = vld [vmem:[%s653 + $0x28] sm:$0xff]
        %v1937 = vld [vmem:[%s653 + $0x30] sm:$0xff]
        %v1938 = vld [vmem:[%s653 + $0x38] sm:$0xff]
        %v1939 = vld [vmem:[%s653 + $0x40] sm:$0xff]
        %v1940 = vld [vmem:[%s653 + $0x48] sm:$0xff]
        %v1941 = vld [vmem:[%s653 + $0x50] sm:$0xff]
        %v1942 = vld [vmem:[%s653 + $0x58] sm:$0xff]
        %v1943 = vld [vmem:[%s653 + $0x60] sm:$0xff]
        %v1944 = vld [vmem:[%s653 + $0x68] sm:$0xff]
        %v1945 = vld [vmem:[%s653 + $0x70] sm:$0xff]
        %v1946 = vld [vmem:[%s653 + $0x78] sm:$0xff]
        %v1947 = vld [vmem:[%s653 + $0x80] sm:$0xff]
        %v1948 = vld [vmem:[%s653 + $0x88] sm:$0xff]
        %v1949 = vld [vmem:[%s653 + $0x90] sm:$0xff]
        %v1950 = vld [vmem:[%s653 + $0x98] sm:$0xff]
        %v1951 = vld [vmem:[%s653 + $0xa0] sm:$0xff]
        %v1952 = vld [vmem:[%s653 + $0xa8] sm:$0xff]
        %v1953 = vld [vmem:[%s653 + $0xb0] sm:$0xff]
        %v1954 = vld [vmem:[%s653 + $0xb8] sm:$0xff]
        %v1955 = vld [vmem:[%s653 + $0xc0] sm:$0xff]
        %v1956 = vld [vmem:[%s653 + $0xc8] sm:$0xff]
        %v1957 = vld [vmem:[%s653 + $0xd0] sm:$0xff]
        %v1958 = vld [vmem:[%s653 + $0xd8] sm:$0xff]
        %v1959 = vld [vmem:[%s653 + $0xe0] sm:$0xff]
        %v1960 = vld [vmem:[%s653 + $0xe8] sm:$0xff]
        %v1961 = vld [vmem:[%s653 + $0xf0] sm:$0xff]
        %v1962 = vld [vmem:[%s653 + $0xf8] sm:$0xff]
        %v1963 = vld [vmem:[%s790] sm:$0xf]
        %v1965 = vlaneseq
        %v1966 = vshrl.u32 %v1965, 7
        %v1967 = vsub.s32 0, %v1966
        %v1968 = vrot.slane %v1963, %v1967
        %v1969 = vlaneseq
        %v1970 = vshrl.u32 %v1969, 7
        %v1971 = vsub.s32 1, %v1970
        %v1972 = vrot.slane %v1963, %v1971
        %v1973 = vlaneseq
        %v1974 = vshrl.u32 %v1973, 7
        %v1975 = vsub.s32 2, %v1974
        %v1976 = vrot.slane %v1963, %v1975
        %v1977 = vlaneseq
        %v1978 = vshrl.u32 %v1977, 7
        %v1979 = vsub.s32 3, %v1978
        %v1980 = vrot.slane %v1963, %v1979
        %v2017 = vunpack.c.l.b16 %v1931
        %v2018 = vunpack.c.h.b16 %v1931
        %v2019 = vunpack.c.l.b16 %v1932
        %v2020 = vunpack.c.h.b16 %v1932
        %v2021 = vunpack.c.l.b16 %v1933
        %v2022 = vunpack.c.h.b16 %v1933
        %v2023 = vunpack.c.l.b16 %v1934
        %v2024 = vunpack.c.h.b16 %v1934
        %v2025 = vunpack.c.l.b16 %v1935
        %v2026 = vunpack.c.h.b16 %v1935
        %v2027 = vunpack.c.l.b16 %v1936
        %v2028 = vunpack.c.h.b16 %v1936
        %v2029 = vunpack.c.l.b16 %v1937
        %v2030 = vunpack.c.h.b16 %v1937
        %v2031 = vunpack.c.l.b16 %v1938
        %v2032 = vunpack.c.h.b16 %v1938
        %v2033 = vunpack.c.l.b16 %v1939
        %v2034 = vunpack.c.h.b16 %v1939
        %v2035 = vunpack.c.l.b16 %v1940
        %v2036 = vunpack.c.h.b16 %v1940
        %v2037 = vunpack.c.l.b16 %v1941
        %v2038 = vunpack.c.h.b16 %v1941
        %v2039 = vunpack.c.l.b16 %v1942
        %v2040 = vunpack.c.h.b16 %v1942
        %v2041 = vunpack.c.l.b16 %v1943
        %v2042 = vunpack.c.h.b16 %v1943
        %v2043 = vunpack.c.l.b16 %v1944
        %v2044 = vunpack.c.h.b16 %v1944
        %v2045 = vunpack.c.l.b16 %v1945
        %v2046 = vunpack.c.h.b16 %v1945
        %v2047 = vunpack.c.l.b16 %v1946
        %v2048 = vunpack.c.h.b16 %v1946
        %v2049 = vunpack.c.l.b16 %v1947
        %v2050 = vunpack.c.h.b16 %v1947
        %v2051 = vunpack.c.l.b16 %v1948
        %v2052 = vunpack.c.h.b16 %v1948
        %v2053 = vunpack.c.l.b16 %v1949
        %v2054 = vunpack.c.h.b16 %v1949
        %v2055 = vunpack.c.l.b16 %v1950
        %v2056 = vunpack.c.h.b16 %v1950
        %v2057 = vunpack.c.l.b16 %v1951
        %v2058 = vunpack.c.h.b16 %v1951
        %v2059 = vunpack.c.l.b16 %v1952
        %v2060 = vunpack.c.h.b16 %v1952
        %v2061 = vunpack.c.l.b16 %v1953
        %v2062 = vunpack.c.h.b16 %v1953
        %v2063 = vunpack.c.l.b16 %v1954
        %v2064 = vunpack.c.h.b16 %v1954
        %v2065 = vunpack.c.l.b16 %v1955
        %v2066 = vunpack.c.h.b16 %v1955
        %v2067 = vunpack.c.l.b16 %v1956
        %v2068 = vunpack.c.h.b16 %v1956
        %v2069 = vunpack.c.l.b16 %v1957
        %v2070 = vunpack.c.h.b16 %v1957
        %v2071 = vunpack.c.l.b16 %v1958
        %v2072 = vunpack.c.h.b16 %v1958
        %v2073 = vunpack.c.l.b16 %v1959
        %v2074 = vunpack.c.h.b16 %v1959
        %v2075 = vunpack.c.l.b16 %v1960
        %v2076 = vunpack.c.h.b16 %v1960
        %v2077 = vunpack.c.l.b16 %v1961
        %v2078 = vunpack.c.h.b16 %v1961
        %v2079 = vunpack.c.l.b16 %v1962
        %v2080 = vunpack.c.h.b16 %v1962
        %v2081 = vpack.c.b16 %v2021, %v2017
        %v2082 = vpack.c.b16 %v2022, %v2018
        %v2083 = vpack.c.b16 %v2023, %v2019
        %v2084 = vpack.c.b16 %v2024, %v2020
        %v2085 = vpack.c.b16 %v2029, %v2025
        %v2086 = vpack.c.b16 %v2030, %v2026
        %v2087 = vpack.c.b16 %v2031, %v2027
        %v2088 = vpack.c.b16 %v2032, %v2028
        %v2089 = vpack.c.b16 %v2037, %v2033
        %v2090 = vpack.c.b16 %v2038, %v2034
        %v2091 = vpack.c.b16 %v2039, %v2035
        %v2092 = vpack.c.b16 %v2040, %v2036
        %v2093 = vpack.c.b16 %v2045, %v2041
        %v2094 = vpack.c.b16 %v2046, %v2042
        %v2095 = vpack.c.b16 %v2047, %v2043
        %v2096 = vpack.c.b16 %v2048, %v2044
        %v2097 = vpack.c.b16 %v2053, %v2049
        %v2098 = vpack.c.b16 %v2054, %v2050
        %v2099 = vpack.c.b16 %v2055, %v2051
        %v2100 = vpack.c.b16 %v2056, %v2052
        %v2101 = vpack.c.b16 %v2061, %v2057
        %v2102 = vpack.c.b16 %v2062, %v2058
        %v2103 = vpack.c.b16 %v2063, %v2059
        %v2104 = vpack.c.b16 %v2064, %v2060
        %v2105 = vpack.c.b16 %v2069, %v2065
        %v2106 = vpack.c.b16 %v2070, %v2066
        %v2107 = vpack.c.b16 %v2071, %v2067
        %v2108 = vpack.c.b16 %v2072, %v2068
        %v2109 = vpack.c.b16 %v2077, %v2073
        %v2110 = vpack.c.b16 %v2078, %v2074
        %v2111 = vpack.c.b16 %v2079, %v2075
        %v2112 = vpack.c.b16 %v2080, %v2076
        %2145 = vmatprep.subr.bf16.mxu0 %v2110
        %2146 = vmatpush1.bf16.msra.mxu0 %v2109
        %2147 = vmatprep.subr.bf16.mxu0 %v2106
        %2148 = vmatpush1.bf16.msra.mxu0 %v2105
        %2149 = vmatprep.subr.bf16.mxu0 %v2102
        %2150 = vmatpush1.bf16.msra.mxu0 %v2101
        %2151 = vmatprep.subr.bf16.mxu0 %v2098
        %2152 = vmatpush1.bf16.msra.mxu0 %v2097
        %2153 = vmatprep.subr.bf16.mxu0 %v2094
        %2154 = vmatpush1.bf16.msra.mxu0 %v2093
        %2155 = vmatprep.subr.bf16.mxu0 %v2090
        %2156 = vmatpush1.bf16.msra.mxu0 %v2089
        %2157 = vmatprep.subr.bf16.mxu0 %v2086
        %2158 = vmatpush1.bf16.msra.mxu0 %v2085
        %2159 = vmatprep.subr.bf16.mxu0 %v2082
        %2160 = vmatpush1.bf16.msra.mxu0 %v2081
        %2161 = vmatprep.subr.bf16.mxu0 0
        %2162 = vmatpush2.bf16.msra.mxu0 0
        %2163 = vmatprep.subr.bf16.mxu0 0
        %2164 = vmatpush2.bf16.msra.mxu0 0
        %2165 = vmatprep.subr.bf16.mxu0 0
        %2166 = vmatpush2.bf16.msra.mxu0 0
        %2167 = vmatprep.subr.bf16.mxu0 0
        %2168 = vmatpush2.bf16.msra.mxu0 0
        %2169 = vmatprep.subr.bf16.mxu0 0
        %2170 = vmatpush2.bf16.msra.mxu0 0
        %2171 = vmatprep.subr.bf16.mxu0 0
        %2172 = vmatpush2.bf16.msra.mxu0 0
        %2173 = vmatprep.subr.bf16.mxu0 0
        %2174 = vmatpush2.bf16.msra.mxu0 0
        %2175 = vmatprep.subr.bf16.mxu0 0
        %2176 = vmatpush2.bf16.msra.mxu0 0
        %2177 = vmatprep.mubr.bf16.mxu0 0
        %2178 = vmatmul.mubr.bf16.gmra.mxu0 %v1930
        %v2179 = vpop.f32.mrf.mxu0
        %v2180 = vadd.f32 %v1968, %v2179
        %v2181 = vpop.f32.mrf.mxu0
        %v2182 = vadd.f32 %v1972, %v2181
        %v2183 = vpop.f32.mrf.mxu0
        %v2184 = vadd.f32 %v1968, %v2183
        %v2185 = vpop.f32.mrf.mxu0
        %v2186 = vadd.f32 %v1972, %v2185
        %2187 = vdwg.mxu0
        %2188 = vmatprep.subr.bf16.mxu0 %v2112
        %2189 = vmatpush1.bf16.msra.mxu0 %v2111
        %2190 = vmatprep.subr.bf16.mxu0 %v2108
        %2191 = vmatpush1.bf16.msra.mxu0 %v2107
        %2192 = vmatprep.subr.bf16.mxu0 %v2104
        %2193 = vmatpush1.bf16.msra.mxu0 %v2103
        %2194 = vmatprep.subr.bf16.mxu0 %v2100
        %2195 = vmatpush1.bf16.msra.mxu0 %v2099
        %2196 = vmatprep.subr.bf16.mxu0 %v2096
        %2197 = vmatpush1.bf16.msra.mxu0 %v2095
        %2198 = vmatprep.subr.bf16.mxu0 %v2092
        %2199 = vmatpush1.bf16.msra.mxu0 %v2091
        %2200 = vmatprep.subr.bf16.mxu0 %v2088
        %2201 = vmatpush1.bf16.msra.mxu0 %v2087
        %2202 = vmatprep.subr.bf16.mxu0 %v2084
        %2203 = vmatpush1.bf16.msra.mxu0 %v2083
        %2204 = vmatprep.subr.bf16.mxu0 0
        %2205 = vmatpush2.bf16.msra.mxu0 0
        %2206 = vmatprep.subr.bf16.mxu0 0
        %2207 = vmatpush2.bf16.msra.mxu0 0
        %2208 = vmatprep.subr.bf16.mxu0 0
        %2209 = vmatpush2.bf16.msra.mxu0 0
        %2210 = vmatprep.subr.bf16.mxu0 0
        %2211 = vmatpush2.bf16.msra.mxu0 0
        %2212 = vmatprep.subr.bf16.mxu0 0
        %2213 = vmatpush2.bf16.msra.mxu0 0
        %2214 = vmatprep.subr.bf16.mxu0 0
        %2215 = vmatpush2.bf16.msra.mxu0 0
        %2216 = vmatprep.subr.bf16.mxu0 0
        %2217 = vmatpush2.bf16.msra.mxu0 0
        %2218 = vmatprep.subr.bf16.mxu0 0
        %2219 = vmatpush2.bf16.msra.mxu0 0
        %2220 = vmatprep.mubr.bf16.mxu0 0
        %2221 = vmatmul.mubr.bf16.gmra.mxu0 %v1930
        %v2222 = vpop.f32.mrf.mxu0
        %v2223 = vadd.f32 %v1976, %v2222
        %v2224 = vpop.f32.mrf.mxu0
        %v2225 = vadd.f32 %v1980, %v2224
        %v2226 = vpop.f32.mrf.mxu0
        %v2227 = vadd.f32 %v1976, %v2226
        %v2228 = vpop.f32.mrf.mxu0
        %v2229 = vadd.f32 %v1980, %v2228
        %2230 = vdwg.mxu0
        %v2231 = vmul.f32 %v2180, 0.5
        %v2232 = vmul.f32 %v2182, 0.5
        %v2233 = vmul.f32 %v2223, 0.5
        %v2234 = vmul.f32 %v2225, 0.5
        %v2235 = vmul.f32 %v2184, 0.5
        %v2236 = vmul.f32 %v2186, 0.5
        %v2237 = vmul.f32 %v2227, 0.5
        %v2238 = vmul.f32 %v2229, 0.5
        %v2239 = vmul.f32 %v2180, 0.044715
        %v2240 = vmul.f32 %v2182, 0.044715
        %v2241 = vmul.f32 %v2223, 0.044715
        %v2242 = vmul.f32 %v2225, 0.044715
        %v2243 = vmul.f32 %v2184, 0.044715
        %v2244 = vmul.f32 %v2186, 0.044715
        %v2245 = vmul.f32 %v2227, 0.044715
        %v2246 = vmul.f32 %v2229, 0.044715
        %v2247 = vmul.f32 %v2239, %v2180
        %v2248 = vmul.f32 %v2240, %v2182
        %v2249 = vmul.f32 %v2241, %v2223
        %v2250 = vmul.f32 %v2242, %v2225
        %v2251 = vmul.f32 %v2243, %v2184
        %v2252 = vmul.f32 %v2244, %v2186
        %v2253 = vmul.f32 %v2245, %v2227
        %v2254 = vmul.f32 %v2246, %v2229
        %v2255 = vmul.f32 %v2247, %v2180
        %v2256 = vmul.f32 %v2248, %v2182
        %v2257 = vmul.f32 %v2249, %v2223
        %v2258 = vmul.f32 %v2250, %v2225
        %v2259 = vmul.f32 %v2251, %v2184
        %v2260 = vmul.f32 %v2252, %v2186
        %v2261 = vmul.f32 %v2253, %v2227
        %v2262 = vmul.f32 %v2254, %v2229
        %v2263 = vadd.f32 %v2180, %v2255
        %v2264 = vadd.f32 %v2182, %v2256
        %v2265 = vadd.f32 %v2223, %v2257
        %v2266 = vadd.f32 %v2225, %v2258
        %v2267 = vadd.f32 %v2184, %v2259
        %v2268 = vadd.f32 %v2186, %v2260
        %v2269 = vadd.f32 %v2227, %v2261
        %v2270 = vadd.f32 %v2229, %v2262
        %v2271 = vmul.f32 %v2263, 0.7978846
        %v2272 = vmul.f32 %v2264, 0.7978846
        %v2273 = vmul.f32 %v2265, 0.7978846
        %v2274 = vmul.f32 %v2266, 0.7978846
        %v2275 = vmul.f32 %v2267, 0.7978846
        %v2276 = vmul.f32 %v2268, 0.7978846
        %v2277 = vmul.f32 %v2269, 0.7978846
        %v2278 = vmul.f32 %v2270, 0.7978846
        %v2279 = vtanh.pop %v2271
        %v2280 = vtanh.pop %v2272
        %v2281 = vtanh.pop %v2273
        %v2282 = vtanh.pop %v2274
        %v2283 = vtanh.pop %v2275
        %v2284 = vtanh.pop %v2276
        %v2285 = vtanh.pop %v2277
        %v2286 = vtanh.pop %v2278
        %v2287 = vadd.f32 %v2279, 1.0
        %v2288 = vadd.f32 %v2280, 1.0
        %v2289 = vadd.f32 %v2281, 1.0
        %v2290 = vadd.f32 %v2282, 1.0
        %v2291 = vadd.f32 %v2283, 1.0
        %v2292 = vadd.f32 %v2284, 1.0
        %v2293 = vadd.f32 %v2285, 1.0
        %v2294 = vadd.f32 %v2286, 1.0
        %v2295 = vmul.f32 %v2231, %v2287
        %v2296 = vmul.f32 %v2232, %v2288
        %v2297 = vmul.f32 %v2233, %v2289
        %v2298 = vmul.f32 %v2234, %v2290
        %v2299 = vmul.f32 %v2235, %v2291
        %v2300 = vmul.f32 %v2236, %v2292
        %v2301 = vmul.f32 %v2237, %v2293
        %v2302 = vmul.f32 %v2238, %v2294
        %v2303 = vpack.c.bf16 %v2299, %v2295
        %v2304 = vpack.c.bf16 %v2300, %v2296
        %v2305 = vpack.c.bf16 %v2301, %v2297
        %v2306 = vpack.c.bf16 %v2302, %v2298
        %v2307 = vld [vmem:[%s662] sm:$0xf]
        %v2308 = vld [vmem:[%s662 + $0x4] sm:$0xf]
        %v2309 = vld [vmem:[%s662 + $0x8] sm:$0xf]
        %v2310 = vld [vmem:[%s662 + $0xc] sm:$0xf]
        %v2311 = vld [vmem:[%s662 + $0x10] sm:$0xf]
        %v2312 = vld [vmem:[%s662 + $0x14] sm:$0xf]
        %v2313 = vld [vmem:[%s662 + $0x18] sm:$0xf]
        %v2314 = vld [vmem:[%s662 + $0x1c] sm:$0xf]
        %v2315 = vld [vmem:[%s662 + $0x20] sm:$0xf]
        %v2316 = vld [vmem:[%s662 + $0x24] sm:$0xf]
        %v2317 = vld [vmem:[%s662 + $0x28] sm:$0xf]
        %v2318 = vld [vmem:[%s662 + $0x2c] sm:$0xf]
        %v2319 = vld [vmem:[%s662 + $0x30] sm:$0xf]
        %v2320 = vld [vmem:[%s662 + $0x34] sm:$0xf]
        %v2321 = vld [vmem:[%s662 + $0x38] sm:$0xf]
        %v2322 = vld [vmem:[%s662 + $0x3c] sm:$0xf]
        %v2323 = vld [vmem:[%s662 + $0x40] sm:$0xf]
        %v2324 = vld [vmem:[%s662 + $0x44] sm:$0xf]
        %v2325 = vld [vmem:[%s662 + $0x48] sm:$0xf]
        %v2326 = vld [vmem:[%s662 + $0x4c] sm:$0xf]
        %v2327 = vld [vmem:[%s662 + $0x50] sm:$0xf]
        %v2328 = vld [vmem:[%s662 + $0x54] sm:$0xf]
        %v2329 = vld [vmem:[%s662 + $0x58] sm:$0xf]
        %v2330 = vld [vmem:[%s662 + $0x5c] sm:$0xf]
        %v2331 = vld [vmem:[%s662 + $0x60] sm:$0xf]
        %v2332 = vld [vmem:[%s662 + $0x64] sm:$0xf]
        %v2333 = vld [vmem:[%s662 + $0x68] sm:$0xf]
        %v2334 = vld [vmem:[%s662 + $0x6c] sm:$0xf]
        %v2335 = vld [vmem:[%s662 + $0x70] sm:$0xf]
        %v2336 = vld [vmem:[%s662 + $0x74] sm:$0xf]
        %v2337 = vld [vmem:[%s662 + $0x78] sm:$0xf]
        %v2338 = vld [vmem:[%s662 + $0x7c] sm:$0xf]
        %v2339 = vld [vmem:[%s662 + $0x80] sm:$0xf]
        %v2340 = vld [vmem:[%s662 + $0x84] sm:$0xf]
        %v2341 = vld [vmem:[%s662 + $0x88] sm:$0xf]
        %v2342 = vld [vmem:[%s662 + $0x8c] sm:$0xf]
        %v2343 = vld [vmem:[%s662 + $0x90] sm:$0xf]
        %v2344 = vld [vmem:[%s662 + $0x94] sm:$0xf]
        %v2345 = vld [vmem:[%s662 + $0x98] sm:$0xf]
        %v2346 = vld [vmem:[%s662 + $0x9c] sm:$0xf]
        %v2347 = vld [vmem:[%s662 + $0xa0] sm:$0xf]
        %v2348 = vld [vmem:[%s662 + $0xa4] sm:$0xf]
        %v2349 = vld [vmem:[%s662 + $0xa8] sm:$0xf]
        %v2350 = vld [vmem:[%s662 + $0xac] sm:$0xf]
        %v2351 = vld [vmem:[%s662 + $0xb0] sm:$0xf]
        %v2352 = vld [vmem:[%s662 + $0xb4] sm:$0xf]
        %v2353 = vld [vmem:[%s662 + $0xb8] sm:$0xf]
        %v2354 = vld [vmem:[%s662 + $0xbc] sm:$0xf]
        %v2355 = vld [vmem:[%s662 + $0xc0] sm:$0xf]
        %v2356 = vld [vmem:[%s662 + $0xc4] sm:$0xf]
        %v2357 = vld [vmem:[%s662 + $0xc8] sm:$0xf]
        %v2358 = vld [vmem:[%s662 + $0xcc] sm:$0xf]
        %v2359 = vld [vmem:[%s662 + $0xd0] sm:$0xf]
        %v2360 = vld [vmem:[%s662 + $0xd4] sm:$0xf]
        %v2361 = vld [vmem:[%s662 + $0xd8] sm:$0xf]
        %v2362 = vld [vmem:[%s662 + $0xdc] sm:$0xf]
        %v2363 = vld [vmem:[%s662 + $0xe0] sm:$0xf]
        %v2364 = vld [vmem:[%s662 + $0xe4] sm:$0xf]
        %v2365 = vld [vmem:[%s662 + $0xe8] sm:$0xf]
        %v2366 = vld [vmem:[%s662 + $0xec] sm:$0xf]
        %v2367 = vld [vmem:[%s662 + $0xf0] sm:$0xf]
        %v2368 = vld [vmem:[%s662 + $0xf4] sm:$0xf]
        %v2369 = vld [vmem:[%s662 + $0xf8] sm:$0xf]
        %v2370 = vld [vmem:[%s662 + $0xfc] sm:$0xf]
        %v2371 = vld [vmem:[%s793] sm:$0x1]
        %v2373 = vlaneseq
        %v2374 = vshrl.u32 %v2373, 7
        %v2375 = vsub.s32 0, %v2374
        %v2376 = vrot.slane %v2371, %v2375
        %v2442 = vunpack.c.l.b16 %v2307
        %v2443 = vunpack.c.l.b16 %v2308
        %v2444 = vunpack.c.l.b16 %v2309
        %v2445 = vunpack.c.l.b16 %v2310
        %v2446 = vunpack.c.l.b16 %v2311
        %v2447 = vunpack.c.l.b16 %v2312
        %v2448 = vunpack.c.l.b16 %v2313
        %v2449 = vunpack.c.l.b16 %v2314
        %v2450 = vunpack.c.l.b16 %v2315
        %v2451 = vunpack.c.l.b16 %v2316
        %v2452 = vunpack.c.l.b16 %v2317
        %v2453 = vunpack.c.l.b16 %v2318
        %v2454 = vunpack.c.l.b16 %v2319
        %v2455 = vunpack.c.l.b16 %v2320
        %v2456 = vunpack.c.l.b16 %v2321
        %v2457 = vunpack.c.l.b16 %v2322
        %v2458 = vunpack.c.l.b16 %v2323
        %v2459 = vunpack.c.l.b16 %v2324
        %v2460 = vunpack.c.l.b16 %v2325
        %v2461 = vunpack.c.l.b16 %v2326
        %v2462 = vunpack.c.l.b16 %v2327
        %v2463 = vunpack.c.l.b16 %v2328
        %v2464 = vunpack.c.l.b16 %v2329
        %v2465 = vunpack.c.l.b16 %v2330
        %v2466 = vunpack.c.l.b16 %v2331
        %v2467 = vunpack.c.l.b16 %v2332
        %v2468 = vunpack.c.l.b16 %v2333
        %v2469 = vunpack.c.l.b16 %v2334
        %v2470 = vunpack.c.l.b16 %v2335
        %v2471 = vunpack.c.l.b16 %v2336
        %v2472 = vunpack.c.l.b16 %v2337
        %v2473 = vunpack.c.l.b16 %v2338
        %v2474 = vunpack.c.l.b16 %v2339
        %v2475 = vunpack.c.l.b16 %v2340
        %v2476 = vunpack.c.l.b16 %v2341
        %v2477 = vunpack.c.l.b16 %v2342
        %v2478 = vunpack.c.l.b16 %v2343
        %v2479 = vunpack.c.l.b16 %v2344
        %v2480 = vunpack.c.l.b16 %v2345
        %v2481 = vunpack.c.l.b16 %v2346
        %v2482 = vunpack.c.l.b16 %v2347
        %v2483 = vunpack.c.l.b16 %v2348
        %v2484 = vunpack.c.l.b16 %v2349
        %v2485 = vunpack.c.l.b16 %v2350
        %v2486 = vunpack.c.l.b16 %v2351
        %v2487 = vunpack.c.l.b16 %v2352
        %v2488 = vunpack.c.l.b16 %v2353
        %v2489 = vunpack.c.l.b16 %v2354
        %v2490 = vunpack.c.l.b16 %v2355
        %v2491 = vunpack.c.l.b16 %v2356
        %v2492 = vunpack.c.l.b16 %v2357
        %v2493 = vunpack.c.l.b16 %v2358
        %v2494 = vunpack.c.l.b16 %v2359
        %v2495 = vunpack.c.l.b16 %v2360
        %v2496 = vunpack.c.l.b16 %v2361
        %v2497 = vunpack.c.l.b16 %v2362
        %v2498 = vunpack.c.l.b16 %v2363
        %v2499 = vunpack.c.l.b16 %v2364
        %v2500 = vunpack.c.l.b16 %v2365
        %v2501 = vunpack.c.l.b16 %v2366
        %v2502 = vunpack.c.l.b16 %v2367
        %v2503 = vunpack.c.l.b16 %v2368
        %v2504 = vunpack.c.l.b16 %v2369
        %v2505 = vunpack.c.l.b16 %v2370
        %v2506 = vpack.c.b16 %v2443, %v2442
        %v2507 = vpack.c.b16 %v2445, %v2444
        %v2508 = vpack.c.b16 %v2447, %v2446
        %v2509 = vpack.c.b16 %v2449, %v2448
        %v2510 = vpack.c.b16 %v2451, %v2450
        %v2511 = vpack.c.b16 %v2453, %v2452
        %v2512 = vpack.c.b16 %v2455, %v2454
        %v2513 = vpack.c.b16 %v2457, %v2456
        %v2514 = vpack.c.b16 %v2459, %v2458
        %v2515 = vpack.c.b16 %v2461, %v2460
        %v2516 = vpack.c.b16 %v2463, %v2462
        %v2517 = vpack.c.b16 %v2465, %v2464
        %v2518 = vpack.c.b16 %v2467, %v2466
        %v2519 = vpack.c.b16 %v2469, %v2468
        %v2520 = vpack.c.b16 %v2471, %v2470
        %v2521 = vpack.c.b16 %v2473, %v2472
        %v2522 = vpack.c.b16 %v2475, %v2474
        %v2523 = vpack.c.b16 %v2477, %v2476
        %v2524 = vpack.c.b16 %v2479, %v2478
        %v2525 = vpack.c.b16 %v2481, %v2480
        %v2526 = vpack.c.b16 %v2483, %v2482
        %v2527 = vpack.c.b16 %v2485, %v2484
        %v2528 = vpack.c.b16 %v2487, %v2486
        %v2529 = vpack.c.b16 %v2489, %v2488
        %v2530 = vpack.c.b16 %v2491, %v2490
        %v2531 = vpack.c.b16 %v2493, %v2492
        %v2532 = vpack.c.b16 %v2495, %v2494
        %v2533 = vpack.c.b16 %v2497, %v2496
        %v2534 = vpack.c.b16 %v2499, %v2498
        %v2535 = vpack.c.b16 %v2501, %v2500
        %v2536 = vpack.c.b16 %v2503, %v2502
        %v2537 = vpack.c.b16 %v2505, %v2504
        %2570 = vmatprep.subr.bf16.mxu0 0
        %2571 = vmatpush1.bf16.msra.mxu0 %v2513
        %2572 = vmatprep.subr.bf16.mxu0 0
        %2573 = vmatpush1.bf16.msra.mxu0 %v2512
        %2574 = vmatprep.subr.bf16.mxu0 0
        %2575 = vmatpush1.bf16.msra.mxu0 %v2511
        %2576 = vmatprep.subr.bf16.mxu0 0
        %2577 = vmatpush1.bf16.msra.mxu0 %v2510
        %2578 = vmatprep.subr.bf16.mxu0 0
        %2579 = vmatpush1.bf16.msra.mxu0 %v2509
        %2580 = vmatprep.subr.bf16.mxu0 0
        %2581 = vmatpush1.bf16.msra.mxu0 %v2508
        %2582 = vmatprep.subr.bf16.mxu0 0
        %2583 = vmatpush1.bf16.msra.mxu0 %v2507
        %2584 = vmatprep.subr.bf16.mxu0 0
        %2585 = vmatpush1.bf16.msra.mxu0 %v2506
        %2586 = vmatprep.subr.bf16.mxu0 0
        %2587 = vmatpush2.bf16.msra.mxu0 %v2521
        %2588 = vmatprep.subr.bf16.mxu0 0
        %2589 = vmatpush2.bf16.msra.mxu0 %v2520
        %2590 = vmatprep.subr.bf16.mxu0 0
        %2591 = vmatpush2.bf16.msra.mxu0 %v2519
        %2592 = vmatprep.subr.bf16.mxu0 0
        %2593 = vmatpush2.bf16.msra.mxu0 %v2518
        %2594 = vmatprep.subr.bf16.mxu0 0
        %2595 = vmatpush2.bf16.msra.mxu0 %v2517
        %2596 = vmatprep.subr.bf16.mxu0 0
        %2597 = vmatpush2.bf16.msra.mxu0 %v2516
        %2598 = vmatprep.subr.bf16.mxu0 0
        %2599 = vmatpush2.bf16.msra.mxu0 %v2515
        %2600 = vmatprep.subr.bf16.mxu0 0
        %2601 = vmatpush2.bf16.msra.mxu0 %v2514
        %2602 = vmatprep.mubr.bf16.mxu0 %v2304
        %2603 = vmatmul.mubr.bf16.gmra.mxu0 %v2303
        %v2604 = vpop.f32.mrf.mxu0
        %v2605 = vadd.f32 %v2376, %v2604
        %v2606 = vpop.f32.mrf.mxu0
        %v2607 = vpop.f32.mrf.mxu0
        %v2608 = vadd.f32 %v2376, %v2607
        %v2609 = vpop.f32.mrf.mxu0
        %2610 = vdwg.mxu0
        %2611 = vmatprep.subr.bf16.mxu0 0
        %2612 = vmatpush1.bf16.msra.mxu0 %v2529
        %2613 = vmatprep.subr.bf16.mxu0 0
        %2614 = vmatpush1.bf16.msra.mxu0 %v2528
        %2615 = vmatprep.subr.bf16.mxu0 0
        %2616 = vmatpush1.bf16.msra.mxu0 %v2527
        %2617 = vmatprep.subr.bf16.mxu0 0
        %2618 = vmatpush1.bf16.msra.mxu0 %v2526
        %2619 = vmatprep.subr.bf16.mxu0 0
        %2620 = vmatpush1.bf16.msra.mxu0 %v2525
        %2621 = vmatprep.subr.bf16.mxu0 0
        %2622 = vmatpush1.bf16.msra.mxu0 %v2524
        %2623 = vmatprep.subr.bf16.mxu0 0
        %2624 = vmatpush1.bf16.msra.mxu0 %v2523
        %2625 = vmatprep.subr.bf16.mxu0 0
        %2626 = vmatpush1.bf16.msra.mxu0 %v2522
        %2627 = vmatprep.subr.bf16.mxu0 0
        %2628 = vmatpush2.bf16.msra.mxu0 %v2537
        %2629 = vmatprep.subr.bf16.mxu0 0
        %2630 = vmatpush2.bf16.msra.mxu0 %v2536
        %2631 = vmatprep.subr.bf16.mxu0 0
        %2632 = vmatpush2.bf16.msra.mxu0 %v2535
        %2633 = vmatprep.subr.bf16.mxu0 0
        %2634 = vmatpush2.bf16.msra.mxu0 %v2534
        %2635 = vmatprep.subr.bf16.mxu0 0
        %2636 = vmatpush2.bf16.msra.mxu0 %v2533
        %2637 = vmatprep.subr.bf16.mxu0 0
        %2638 = vmatpush2.bf16.msra.mxu0 %v2532
        %2639 = vmatprep.subr.bf16.mxu0 0
        %2640 = vmatpush2.bf16.msra.mxu0 %v2531
        %2641 = vmatprep.subr.bf16.mxu0 0
        %2642 = vmatpush2.bf16.msra.mxu0 %v2530
        %2643 = vmatprep.mubr.bf16.mxu0 %v2306
        %2644 = vmatmul.mubr.bf16.gmra.mxu0 %v2305
        %v2645 = vpop.f32.mrf.mxu0
        %v2646 = vadd.f32 %v2605, %v2645
        %v2647 = vpop.f32.mrf.mxu0
        %v2648 = vpop.f32.mrf.mxu0
        %v2649 = vadd.f32 %v2608, %v2648
        %v2650 = vpop.f32.mrf.mxu0
        %2651 = vdwg.mxu0
        %v2652 = vadd.f32 %v2646, %v1928
        %v2653 = vadd.f32 %v2649, %v1929
        %v2654 = vld [vmem:[%s796] sm:$0x1]
        %v2655 = vld [vmem:[%s799] sm:$0x1]
        %2656 = vadd.xlane.f32.xlu0 %v2652
        %v2657 = vpop.xlane.xlu0 %2656
        %2658 = vadd.xlane.f32.xlu0 %v2653
        %v2659 = vpop.xlane.xlu0 %2658
        %v2660 = vmul.f32 %v2657, %v1895
        %v2661 = vmul.f32 %v2659, %v1895
        %v2662 = vsub.f32 %v2652, %v2660
        %v2663 = vsub.f32 %v2653, %v2661
        %v2664 = vmul.f32 %v2662, %v2662
        %v2665 = vmul.f32 %v2663, %v2663
        %2666 = vadd.xlane.f32.xlu0 %v2664
        %v2667 = vpop.xlane.xlu0 %2666
        %2668 = vadd.xlane.f32.xlu0 %v2665
        %v2669 = vpop.xlane.xlu0 %2668
        %v2670 = vmul.f32 %v2667, %v1895
        %v2671 = vmul.f32 %v2669, %v1895
        %v2672 = vadd.f32 %v2670, 1e-12
        %v2673 = vadd.f32 %v2671, 1e-12
        %v2674 = vrsqrt.pop %v2672
        %v2675 = vrsqrt.pop %v2673
        %v2676 = vmul.f32 %v2662, %v2674
        %v2677 = vmul.f32 %v2663, %v2675
        %v2679 = vlaneseq
        %v2680 = vshrl.u32 %v2679, 7
        %v2681 = vsub.s32 0, %v2680
        %v2682 = vrot.slane %v2654, %v2681
        %v2684 = vmul.f32 %v2676, %v2682
        %v2685 = vmul.f32 %v2677, %v2682
        %v2687 = vlaneseq
        %v2688 = vshrl.u32 %v2687, 7
        %v2689 = vsub.s32 0, %v2688
        %v2690 = vrot.slane %v2655, %v2689
        %v2692 = vadd.f32 %v2684, %v2690
        %v2693 = vadd.f32 %v2685, %v2690
        %2694 = vst [vmem:[#allocation2] sm:$0xff] %v2692
        %2695 = vst [vmem:[#allocation2 + $0x8] sm:$0xff] %v2693
        %2696 = vst [vmem:[%s804] sm:$0xff] %v2692
        %2697 = vst [vmem:[%s804 + $0x8] sm:$0xff] %v2693
        %s2698 = smul.u32 2, %s37
        %p2699 = scmp.lt.s32.totalorder %s2698, 3
        %s2700 = scalar_select %p2699, %s2698, 3
        %s2701 = smul.addr %s2700, 8
        %s2702 = scalar_lea.vmem %s16, %s2701
        // Predicated region
        $region101: #{legal_model_forward.2} parent=83 // pred_check
          %p2703 = pneg %p469
        $region102: #{legal_model_forward.2} parent=83 // pred_check_branch
          %2705 = sbr.rel (%p2703) target = $region104
        $region103: #{legal_model_forward.2} parent=83 // pred_region
          %s2706 = smul.u32 2, %s37
        $region104: #{legal_model_forward.2} parent=83 // pred_fallthru
          _
      $region84: #{legal_model_forward.2} parent=5 // pred_fallthru
        _
      %p2707 = scmp.le.s32.totalorder 2, %s28
      // Predicated region
      $region105: #{legal_model_forward.2} parent=5 // pred_check
        %p2708 = pneg %p2707
      $region106: #{legal_model_forward.2} parent=5 // pred_check_branch
        %2710 = sbr.rel (%p2708) target = $region108
      $region107: #{legal_model_forward.2} parent=5 // pred_region
        %s2711 = ssub.s32 %s28, 2
        // Predicated region
        $region109: #{legal_model_forward.2} parent=107 // pred_check
          %p2712 = pneg %p475
        $region110: #{legal_model_forward.2} parent=107 // pred_check_branch
          %2714 = sbr.rel (%p2712) target = $region112
        $region111: #{legal_model_forward.2} parent=107 // pred_region
          %s2715 = smul.u32 2, %s39
          %p2716 = scmp.lt.s32.totalorder %s2715, 3
          %s2717 = scalar_select %p2716, %s2715, 3
          %s2718 = smul.addr %s2717, 8
          %s2719 = scalar_lea.vmem %s16, %s2718
        $region112: #{legal_model_forward.2} parent=107 // pred_fallthru
          _
      $region108: #{legal_model_forward.2} parent=5 // pred_fallthru
        _
    $region6: #{legal_model_forward.2} parent=1 // loop_footer
      %s32 = sadd.s32 1, %s28
    $region7: #{legal_model_forward.2} parent=1 // loop_footer_branch
      %27 = sbr.rel target = $region3
    $region8: #{legal_model_forward.2} parent=1 // loop_exit
      _
    %2720 = vsyncpa [#allocation4], 1
    %s2721 = scalar_lea.sflag [#allocation4], 1
    %2722 = vsyncpa %s2721, 1
    %2723 = vsyncpa [#allocation6], 1
    %s2724 = scalar_lea.sflag [#allocation6], 1
    %2725 = vsyncpa %s2724, 1

</llo_original>
